<compile_context>
chip_gen: v7x
topology: tpu7x:2x2x1
jax: 0.10.0
libtpu: 0.0.40
codegen_flags: <defaults>
</compile_context>

<pallas_src>
import jax
import jax.numpy as jnp
import numpy as np
from jax.experimental import pallas as pl
from jax.experimental.pallas import tpu as pltpu

F = 3          # n_atom_basis (forced to 3 by the module's literal broadcasting, see header)
HID = 32       # hidden width of the compression / reconstruction MLPs
TWO_F = 2 * F
OUT_VALID = F + 3 * F + 9 * F          # 39 packed output columns actually used
OUT_PAD = 128                          # lane-dense (unmasked) store width
_HP = jax.lax.Precision.HIGHEST
_PAIRS = ((0, 0), (0, 1), (0, 2), (1, 1), (1, 2), (2, 2))   # i<=j combos (dtm symmetry)


# ----------------------------------------------------------------------------
# Pallas kernel: whole problem as one VMEM-resident block (grid = ()).
# ----------------------------------------------------------------------------
def painn_interaction_kernel(
    # inputs
    q_ref, mucat_ref, wij_ref, dir_ref, idxi_ref, idxj_ref,
    msum_ref, dsum_ref,
    w1_ref, b1_ref, w2_ref, b2_ref,
    wc1_ref, bc1_ref, wc2_ref, bc2_ref,
    wr1_ref, br1_ref, wr2_ref, br2_ref,
    # single lane-packed, lane-dense output: [q_out (F) | mu_out (3F) | dtm (9F) | zero pad]
    out_ref):
  f32 = jnp.float32
  N = q_ref.shape[0]
  P = wij_ref.shape[0]

  def mm(a, b):
    return jnp.dot(a, b, preferred_element_type=f32, precision=_HP)

  q = q_ref[...]                                    # (N, F)
  mu_cat = mucat_ref[...]                           # (N, 3*2F); plane a = [:, a*2F:(a+1)*2F]

  # ---- interatomic context net: Dense(F,F, silu) -> Dense(F, 3F) -----------
  h = mm(q, w1_ref[...]) + b1_ref[...]
  h = h * (1.0 / (1.0 + jnp.exp(-h)))               # exact silu (approx recip failed 2e-3)
  x = mm(h, w2_ref[...]) + b2_ref[...]              # (N, 3F)

  # ---- per-atom channel sums via 0/1 matmul (MXU; no cross-lane XLU sums) ---
  musum_atoms = mm(mu_cat, msum_ref[...])           # (N, 3)

  # ---- fused gather: ONE one-hot matmul for both idx_j and idx_i rows ------
  # TODO(synk): O(P*N); replace with scalar-prefetch index maps + tiled pair axis for large N/P.
  atom_iota = jax.lax.broadcasted_iota(jnp.int32, (P, N), 1)
  gj = (idxj_ref[...] == atom_iota).astype(f32)     # (P, N)
  gi = (idxi_ref[...] == atom_iota).astype(f32)     # (P, N)
  g_cat = jnp.concatenate([gj, gi], axis=0)         # (2P, N); P padded to multiple of 8

  src = jnp.concatenate([x, mu_cat, musum_atoms], axis=-1)   # (N, 3F + 3*2F + 3 = 30)
  gathered = mm(g_cat, src)                                  # (2P, 30)
  xj = gathered[:P, 0:3 * F]                                 # (P, 3F)
  mu_g = gathered[:, 3 * F:3 * F + 3 * TWO_F]                # (2P, 3*2F); rows :P = j, P: = i
  musum_g = gathered[:, 3 * F + 3 * TWO_F:]                  # (2P, 3)

  # ---- filter product and channel split -------------------------------------
  xw = wij_ref[...] * xj                                     # (P, 3F)
  dq = xw[:, 0:F]
  dmuR = xw[:, F:2 * F]
  dmumu = xw[:, 2 * F:3 * F]

  # ---- EquivariantCompressionLayer, ONCE on the stacked j/i invariants ------
  sc = jnp.sqrt(mu_g[:, 0:TWO_F] ** 2
                + mu_g[:, TWO_F:2 * TWO_F] ** 2
                + mu_g[:, 2 * TWO_F:3 * TWO_F] ** 2)         # (2P, 2F)
  hc = jnp.maximum(mm(sc, wc1_ref[...]) + bc1_ref[...], 0.0)
  logits = mm(hc, wc2_ref[...]) + bc2_ref[...]               # (2P, F=3)
  lmax = jnp.maximum(jnp.maximum(logits[:, 0:1], logits[:, 1:2]), logits[:, 2:3])
  e = jnp.exp(logits - lmax)
  w_all = e / (e[:, 0:1] + e[:, 1:2] + e[:, 2:3])            # exact softmax (2P, 3)
  wj, wi = w_all[:P], w_all[P:]
  musum_j, musum_i = musum_g[:P], musum_g[P:]

  # ---- dmu / fused scatter_add over idx_i -----------------------------------
  #   dmu[p,a,b] = dmuR[p,b]*dir[p,a] + dmumu[p,b]*wj[p,a]*musum_j[p,b]
  dir_pa = dir_ref[...]                                      # (P, 3)
  dmu_list = [dmuR * dir_pa[:, a:a + 1] + dmumu * (wj[:, a:a + 1] * musum_j)
              for a in range(3)]                             # 3 x (P, F)
  scat_src = jnp.concatenate([dq] + dmu_list, axis=-1)       # (P, F + 3F = 12)
  scat = jax.lax.dot_general(gi, scat_src, (((0,), (0,)), ((), ())),
                             preferred_element_type=f32, precision=_HP)   # (N, 12)

  q_out = q + scat[:, 0:F]                                   # (N, F)
  #   mu[n,a,b] = scatter(dmu)[n,a,b] + wi[n,b]*musum_i[n,a]   (needs P == N)
  mu_planes = [scat[:, F + a * F:F + (a + 1) * F] + wi * musum_i[:, a:a + 1]
               for a in range(3)]                            # 3 x (N, F)

  # ---- EquivariantReconstructionLayer ---------------------------------------
  sr = jnp.sqrt(mu_planes[0] ** 2 + mu_planes[1] ** 2 + mu_planes[2] ** 2)   # (N, F)
  hr = jnp.maximum(mm(sr, wr1_ref[...]) + br1_ref[...], 0.0)
  rw = mm(hr, wr2_ref[...]) + br2_ref[...]                   # (N, F*F)

  # dtm[n, r*9 + i*3 + j] = sum_c rw[n, r*F+c] * mu[n,i,c] * mu[n,j,c]
  # Symmetric in (i,j): compute i<=j only, then reduce over c, mirror and place columns with
  # one constant 0/1 (54, 27) matmul (MXU has slack; avoids lane slice-adds / (N,1) concats).
  rm = [[rw[:, r * F:(r + 1) * F] * mu_planes[i] for i in range(3)] for r in range(3)]
  slab = jnp.concatenate(
      [rm[r][i] * mu_planes[j] for r in range(3) for (i, j) in _PAIRS], axis=-1)  # (N, 54)
  dtm_block = mm(slab, dsum_ref[...])                        # (N, 27) lane-dense

  # ONE lane-dense (128-wide, unmasked) store of all three outputs.
  pad = jnp.zeros((N, OUT_PAD - OUT_VALID), f32)
  out_ref[...] = jnp.concatenate([q_out] + mu_planes + [dtm_block, pad], axis=-1)  # (N, 128)


# ----------------------------------------------------------------------------
# Constant 0/1 reduction matrices (structural, built once on the host).
# ----------------------------------------------------------------------------
def _musum_matrix():
  m = np.zeros((3 * TWO_F, 3), np.float32)
  for a in range(3):
    m[a * TWO_F:(a + 1) * TWO_F, a] = 1.0
  return m


def _dtm_sum_matrix():
  m = np.zeros((F * len(_PAIRS) * 3, 9 * F), np.float32)     # (54, 27)
  for r in range(F):
    for p, (i, j) in enumerate(_PAIRS):
      k = r * len(_PAIRS) + p
      for c in range(3):
        m[3 * k + c, r * 9 + i * 3 + j] = 1.0
        m[3 * k + c, r * 9 + j * 3 + i] = 1.0                # mirror (same entry when i == j)
  return m


def _pad_rows(a, rows):
  extra = rows - a.shape[0]
  if extra == 0:
    return a
  return jnp.concatenate([a, jnp.zeros((extra,) + a.shape[1:], a.dtype)], axis=0)


# ----------------------------------------------------------------------------
# Wrapper: layout plumbing (reshapes / plane packing / padding / output split) in plain JAX.
# ----------------------------------------------------------------------------
@jax.jit
def painn_interaction(q, mu, Wij, dir_ij, idx_i, idx_j, params):
  N = q.shape[0]
  P = Wij.shape[0]
  # The module's final per-pair + per-atom add is only well-defined when P == N.
  assert P == N, "PaiNNInteraction variant requires n_pairs == n_atoms"

  # Pad rows to a multiple of 8 so sublane concat / row splits are tile-aligned.
  # Zero-padded rows are inert (Wij = 0 => zero pair contribution; idx = 0 scatters zeros).
  NP = max(8, -(-N // 8) * 8)

  q2 = _pad_rows(q.reshape(N, F), NP)
  wij2 = _pad_rows(Wij.reshape(P, 3 * F), NP)
  mu_cat = _pad_rows(jnp.concatenate([mu[:, :, a] for a in range(3)], axis=-1), NP)
  dir2 = _pad_rows(dir_ij, NP)
  idx_i2 = _pad_rows(idx_i.reshape(P, 1).astype(jnp.int32), NP)
  idx_j2 = _pad_rows(idx_j.reshape(P, 1).astype(jnp.int32), NP)
  msum = jnp.asarray(_musum_matrix())
  dsum = jnp.asarray(_dtm_sum_matrix())

  inputs = (q2, mu_cat, wij2, dir2, idx_i2, idx_j2, msum, dsum, *params)
  vmem = pl.BlockSpec(memory_space=pltpu.MemorySpace.VMEM)

  # Advisory cost estimate + explicit scoped-VMEM sizing (defaults are 16/32 MiB).
  in_bytes = sum(int(np.prod(a.shape)) * a.dtype.itemsize for a in inputs)
  out_bytes = NP * OUT_PAD * 4
  flops = 2 * (2 * NP * NP * 30 + NP * NP * 12            # one-hot gather + scatter
               + NP * (F * F + F * 3 * F)                 # context MLP
               + 2 * NP * (2 * F * HID + HID * F)         # compression MLP (stacked j/i)
               + NP * (F * HID + HID * F * F)             # reconstruction MLP
               + NP * 3 * TWO_F * 3 + NP * 54 * 27)       # musum + dtm 0/1 matmuls
  cost = pl.CostEstimate(flops=int(flops), transcendentals=int(3 * NP * F),
                         bytes_accessed=int(in_bytes + out_bytes))
  work_bytes = (2 * NP * NP + 2 * NP * 30 + NP * (54 + 30 + 27)) * 4
  vmem_limit = int(min(64 << 20, max(4 << 20, 4 * (in_bytes + out_bytes + work_bytes))))

  packed = pl.pallas_call(
      painn_interaction_kernel,
      out_shape=jax.ShapeDtypeStruct((NP, OUT_PAD), jnp.float32),
      in_specs=[vmem] * len(inputs),
      out_specs=vmem,
      compiler_params=pltpu.CompilerParams(vmem_limit_bytes=vmem_limit),
      cost_estimate=cost,
  )(*inputs)

  q_out = packed[:N, 0:F].reshape(N, 1, F)
  mu_out = packed[:N, F:4 * F].reshape(N, 3, F)
  dtm = packed[:N, 4 * F:OUT_VALID].reshape(N, F, 3, 3)
  return q_out, mu_out, dtm


# ----------------------------------------------------------------------------
# Deterministic parameter init (Linear weights stored as (fan_in, fan_out)).
# ----------------------------------------------------------------------------
def init_params(key):
  shapes = [(F, F), (F, 3 * F),          # interatomic_context_net
            (2 * F, HID), (HID, F),      # compression_layer MLP
            (F, HID), (HID, F * F)]      # reconstruction_layer MLP
  ks = jax.random.split(key, 2 * len(shapes))
  params = []
  for n, (fi, fo) in enumerate(shapes):
    w = jax.random.normal(ks[2 * n], (fi, fo), jnp.float32) / np.sqrt(fi)
    b = 0.1 * jax.random.normal(ks[2 * n + 1], (1, fo), jnp.float32)
    params += [w, b]
  return tuple(params)


# ----------------------------------------------------------------------------
# Pure-JAX reference mirroring the (repaired) torch forward pass.
# ----------------------------------------------------------------------------
def reference_forward(q, mu, Wij, dir_ij, idx_i, idx_j, params, n_atoms):
  (w1, b1, w2, b2, wc1, bc1, wc2, bc2, wr1, br1, wr2, br2) = params
  N = q.shape[0]
  dot = lambda a, b: jnp.dot(a, b, precision=_HP)

  x = dot(q.reshape(N, F), w1) + b1
  x = jax.nn.silu(x)
  x = (dot(x, w2) + b2).reshape(N, 1, 3 * F)

  xj = x[idx_j]
  muj = mu[idx_j]
  mui = mu[idx_i]
  xw = Wij * xj
  dq, dmuR, dmumu = xw[..., :F], xw[..., F:2 * F], xw[..., 2 * F:]
  dq = jax.ops.segment_sum(dq, idx_i, num_segments=n_atoms)

  def compress(v):                                  # v: (B, 2F, 3)
    sc = jnp.linalg.norm(v, axis=-1)
    h = jnp.maximum(dot(sc, wc1) + bc1, 0.0)
    w = jax.nn.softmax(dot(h, wc2) + bc2, axis=-1)
    return jnp.einsum('bvc,bl->blc', v, w, precision=_HP)

  cvj = compress(muj)
  dmu = dmuR * dir_ij[..., None] + dmumu * cvj      # needs F == 3
  dmu = jax.ops.segment_sum(dmu, idx_i, num_segments=n_atoms)
  cvi = compress(mui)                               # repaired call (see header)

  q_out = q + dq
  mu_out = dmu + jnp.swapaxes(cvi, 1, 2)            # needs n_pairs == n_atoms

  cv = jnp.swapaxes(mu_out, 1, 2)                   # (N, F, 3)
  sr = jnp.linalg.norm(cv, axis=-1)
  rw = (dot(jnp.maximum(dot(sr, wr1) + br1, 0.0), wr2) + br2).reshape(N, F, F)
  rank2 = jnp.einsum('bci,bcj->bcij', cv, cv, precision=_HP)
  dtm = jnp.einsum('brc,bcij->brij', rw, rank2, precision=_HP)
  return q_out, mu_out, dtm


if __name__ == "__main__":
  key = jax.random.PRNGKey(0)
  k = jax.random.split(key, 7)

  N = 8    # n_atoms
  P = 8    # n_pairs (== n_atoms, required by the module's final add)

  q = jax.random.normal(k[0], (N, 1, F), jnp.float32)
  mu = jax.random.normal(k[1], (N, 2 * F, 3), jnp.float32)
  Wij = jax.random.normal(k[2], (P, 1, 3 * F), jnp.float32)
  d = jax.random.normal(k[3], (P, 3), jnp.float32)
  dir_ij = d / jnp.linalg.norm(d, axis=-1, keepdims=True)
  idx_i = jax.random.randint(k[4], (P,), 0, N, jnp.int32)
  idx_j = jax.random.randint(k[5], (P,), 0, N, jnp.int32)
  params = init_params(k[6])

  q_out, mu_out, dtm = painn_interaction(q, mu, Wij, dir_ij, idx_i, idx_j, params)
  jax.block_until_ready((q_out, mu_out, dtm))

  q_ref, mu_ref, dtm_ref = reference_forward(q, mu, Wij, dir_ij, idx_i, idx_j, params, N)
  np.testing.assert_allclose(np.asarray(q_out), np.asarray(q_ref), rtol=2e-3, atol=2e-3)
  np.testing.assert_allclose(np.asarray(mu_out), np.asarray(mu_ref), rtol=2e-3, atol=2e-3)
  np.testing.assert_allclose(np.asarray(dtm), np.asarray(dtm_ref), rtol=2e-3, atol=2e-3)
  print("KERNEL_OK")
</pallas_src>

<mosaic_0001>
module attributes {stable_mosaic.version = 11 : i64} {
  func.func @painn_interaction_kernel(%arg0: memref<8x3xf32, #tpu.memory_space<vmem>>, %arg1: memref<8x18xf32, #tpu.memory_space<vmem>>, %arg2: memref<8x9xf32, #tpu.memory_space<vmem>>, %arg3: memref<8x3xf32, #tpu.memory_space<vmem>>, %arg4: memref<8x1xi32, #tpu.memory_space<vmem>>, %arg5: memref<8x1xi32, #tpu.memory_space<vmem>>, %arg6: memref<18x3xf32, #tpu.memory_space<vmem>>, %arg7: memref<54x27xf32, #tpu.memory_space<vmem>>, %arg8: memref<3x3xf32, #tpu.memory_space<vmem>>, %arg9: memref<1x3xf32, #tpu.memory_space<vmem>>, %arg10: memref<3x9xf32, #tpu.memory_space<vmem>>, %arg11: memref<1x9xf32, #tpu.memory_space<vmem>>, %arg12: memref<6x32xf32, #tpu.memory_space<vmem>>, %arg13: memref<1x32xf32, #tpu.memory_space<vmem>>, %arg14: memref<32x3xf32, #tpu.memory_space<vmem>>, %arg15: memref<1x3xf32, #tpu.memory_space<vmem>>, %arg16: memref<3x32xf32, #tpu.memory_space<vmem>>, %arg17: memref<1x32xf32, #tpu.memory_space<vmem>>, %arg18: memref<32x9xf32, #tpu.memory_space<vmem>>, %arg19: memref<1x9xf32, #tpu.memory_space<vmem>>, %arg20: memref<8x128xf32, #tpu.memory_space<vmem>>) attributes {dimension_semantics = [], scalar_prefetch = 0 : i64, scratch_operands = 0 : i64, tpu.core_type = #tpu.core_type<tc>} {
    %c0 = arith.constant 0 : index
    %c0_0 = arith.constant 0 : index
    %0 = vector.load %arg0[%c0, %c0_0] : memref<8x3xf32, #tpu.memory_space<vmem>>, vector<8x3xf32>
    %c0_1 = arith.constant 0 : index
    %c0_2 = arith.constant 0 : index
    %1 = vector.load %arg1[%c0_1, %c0_2] : memref<8x18xf32, #tpu.memory_space<vmem>>, vector<8x18xf32>
    %c0_3 = arith.constant 0 : index
    %c0_4 = arith.constant 0 : index
    %2 = vector.load %arg8[%c0_3, %c0_4] : memref<3x3xf32, #tpu.memory_space<vmem>>, vector<3x3xf32>
    %cst = arith.constant dense<0.000000e+00> : vector<8x3xf32>
    %3 = tpu.matmul %0, %2, %cst {dimension_numbers = #tpu.dot_dimension_numbers<[1], [0], [0], [1], [0, 0, 1, 1], [], []>, precision = #tpu.contract_precision<fp32>} : vector<8x3xf32>, vector<3x3xf32>, vector<8x3xf32> -> vector<8x3xf32>
    %c0_5 = arith.constant 0 : index
    %c0_6 = arith.constant 0 : index
    %4 = vector.load %arg9[%c0_5, %c0_6] : memref<1x3xf32, #tpu.memory_space<vmem>>, vector<1x3xf32>
    %5 = vector.broadcast %4 : vector<1x3xf32> to vector<8x3xf32>
    %6 = arith.addf %3, %5 : vector<8x3xf32>
    %cst_7 = arith.constant 0.000000e+00 : f32
    %7 = vector.broadcast %cst_7 : f32 to vector<8x3xf32>
    %8 = arith.subf %7, %6 : vector<8x3xf32>
    %9 = math.exp %8 : vector<8x3xf32>
    %cst_8 = arith.constant 1.000000e+00 : f32
    %10 = vector.broadcast %cst_8 : f32 to vector<8x3xf32>
    %11 = arith.addf %10, %9 : vector<8x3xf32>
    %cst_9 = arith.constant 1.000000e+00 : f32
    %12 = vector.broadcast %cst_9 : f32 to vector<8x3xf32>
    %13 = arith.divf %12, %11 : vector<8x3xf32>
    %14 = arith.mulf %6, %13 : vector<8x3xf32>
    %c0_10 = arith.constant 0 : index
    %c0_11 = arith.constant 0 : index
    %15 = vector.load %arg10[%c0_10, %c0_11] : memref<3x9xf32, #tpu.memory_space<vmem>>, vector<3x9xf32>
    %cst_12 = arith.constant dense<0.000000e+00> : vector<8x9xf32>
    %16 = tpu.matmul %14, %15, %cst_12 {dimension_numbers = #tpu.dot_dimension_numbers<[1], [0], [0], [1], [0, 0, 1, 1], [], []>, precision = #tpu.contract_precision<fp32>} : vector<8x3xf32>, vector<3x9xf32>, vector<8x9xf32> -> vector<8x9xf32>
    %c0_13 = arith.constant 0 : index
    %c0_14 = arith.constant 0 : index
    %17 = vector.load %arg11[%c0_13, %c0_14] : memref<1x9xf32, #tpu.memory_space<vmem>>, vector<1x9xf32>
    %18 = vector.broadcast %17 : vector<1x9xf32> to vector<8x9xf32>
    %19 = arith.addf %16, %18 : vector<8x9xf32>
    %c0_15 = arith.constant 0 : index
    %c0_16 = arith.constant 0 : index
    %20 = vector.load %arg6[%c0_15, %c0_16] : memref<18x3xf32, #tpu.memory_space<vmem>>, vector<18x3xf32>
    %cst_17 = arith.constant dense<0.000000e+00> : vector<8x3xf32>
    %21 = tpu.matmul %1, %20, %cst_17 {dimension_numbers = #tpu.dot_dimension_numbers<[1], [0], [0], [1], [0, 0, 1, 1], [], []>, precision = #tpu.contract_precision<fp32>} : vector<8x18xf32>, vector<18x3xf32>, vector<8x3xf32> -> vector<8x3xf32>
    %22 = tpu.iota {dimensions = array<i32: 1>} : vector<8x8xi32>
    %c0_18 = arith.constant 0 : index
    %c0_19 = arith.constant 0 : index
    %23 = vector.load %arg5[%c0_18, %c0_19] : memref<8x1xi32, #tpu.memory_space<vmem>>, vector<8x1xi32>
    %24 = vector.broadcast %23 : vector<8x1xi32> to vector<8x8xi32>
    %25 = arith.cmpi eq, %24, %22 : vector<8x8xi32>
    %26 = arith.extui %25 : vector<8x8xi1> to vector<8x8xi32>
    %27 = arith.sitofp %26 : vector<8x8xi32> to vector<8x8xf32>
    %c0_20 = arith.constant 0 : index
    %c0_21 = arith.constant 0 : index
    %28 = vector.load %arg4[%c0_20, %c0_21] : memref<8x1xi32, #tpu.memory_space<vmem>>, vector<8x1xi32>
    %29 = vector.broadcast %28 : vector<8x1xi32> to vector<8x8xi32>
    %30 = arith.cmpi eq, %29, %22 : vector<8x8xi32>
    %31 = arith.extui %30 : vector<8x8xi1> to vector<8x8xi32>
    %32 = arith.sitofp %31 : vector<8x8xi32> to vector<8x8xf32>
    %33 = tpu.concatenate %27, %32 in 0 : vector<8x8xf32>, vector<8x8xf32> -> vector<16x8xf32>
    %34 = tpu.concatenate %19, %1, %21 in 1 : vector<8x9xf32>, vector<8x18xf32>, vector<8x3xf32> -> vector<8x30xf32>
    %cst_22 = arith.constant dense<0.000000e+00> : vector<16x30xf32>
    %35 = tpu.matmul %33, %34, %cst_22 {dimension_numbers = #tpu.dot_dimension_numbers<[1], [0], [0], [1], [0, 0, 1, 1], [], []>, precision = #tpu.contract_precision<fp32>} : vector<16x8xf32>, vector<8x30xf32>, vector<16x30xf32> -> vector<16x30xf32>
    %36 = vector.extract_strided_slice %35 {offsets = [0, 0], sizes = [8, 9], strides = [1, 1]} : vector<16x30xf32> to vector<8x9xf32>
    %37 = vector.extract_strided_slice %35 {offsets = [0, 9], sizes = [16, 18], strides = [1, 1]} : vector<16x30xf32> to vector<16x18xf32>
    %38 = vector.extract_strided_slice %35 {offsets = [0, 27], sizes = [16, 3], strides = [1, 1]} : vector<16x30xf32> to vector<16x3xf32>
    %c0_23 = arith.constant 0 : index
    %c0_24 = arith.constant 0 : index
    %39 = vector.load %arg2[%c0_23, %c0_24] : memref<8x9xf32, #tpu.memory_space<vmem>>, vector<8x9xf32>
    %40 = arith.mulf %39, %36 : vector<8x9xf32>
    %41 = vector.extract_strided_slice %40 {offsets = [0, 0], sizes = [8, 3], strides = [1, 1]} : vector<8x9xf32> to vector<8x3xf32>
    %42 = vector.extract_strided_slice %40 {offsets = [0, 3], sizes = [8, 3], strides = [1, 1]} : vector<8x9xf32> to vector<8x3xf32>
    %43 = vector.extract_strided_slice %40 {offsets = [0, 6], sizes = [8, 3], strides = [1, 1]} : vector<8x9xf32> to vector<8x3xf32>
    %44 = vector.extract_strided_slice %37 {offsets = [0, 0], sizes = [16, 6], strides = [1, 1]} : vector<16x18xf32> to vector<16x6xf32>
    %45 = arith.mulf %44, %44 : vector<16x6xf32>
    %46 = vector.extract_strided_slice %37 {offsets = [0, 6], sizes = [16, 6], strides = [1, 1]} : vector<16x18xf32> to vector<16x6xf32>
    %47 = arith.mulf %46, %46 : vector<16x6xf32>
    %48 = arith.addf %45, %47 : vector<16x6xf32>
    %49 = vector.extract_strided_slice %37 {offsets = [0, 12], sizes = [16, 6], strides = [1, 1]} : vector<16x18xf32> to vector<16x6xf32>
    %50 = arith.mulf %49, %49 : vector<16x6xf32>
    %51 = arith.addf %48, %50 : vector<16x6xf32>
    %52 = math.sqrt %51 : vector<16x6xf32>
    %c0_25 = arith.constant 0 : index
    %c0_26 = arith.constant 0 : index
    %53 = vector.load %arg12[%c0_25, %c0_26] : memref<6x32xf32, #tpu.memory_space<vmem>>, vector<6x32xf32>
    %cst_27 = arith.constant dense<0.000000e+00> : vector<16x32xf32>
    %54 = tpu.matmul %52, %53, %cst_27 {dimension_numbers = #tpu.dot_dimension_numbers<[1], [0], [0], [1], [0, 0, 1, 1], [], []>, precision = #tpu.contract_precision<fp32>} : vector<16x6xf32>, vector<6x32xf32>, vector<16x32xf32> -> vector<16x32xf32>
    %c0_28 = arith.constant 0 : index
    %c0_29 = arith.constant 0 : index
    %55 = vector.load %arg13[%c0_28, %c0_29] : memref<1x32xf32, #tpu.memory_space<vmem>>, vector<1x32xf32>
    %56 = vector.broadcast %55 : vector<1x32xf32> to vector<16x32xf32>
    %57 = arith.addf %54, %56 : vector<16x32xf32>
    %cst_30 = arith.constant 0.000000e+00 : f32
    %58 = vector.broadcast %cst_30 : f32 to vector<16x32xf32>
    %59 = arith.maximumf %57, %58 : vector<16x32xf32>
    %c0_31 = arith.constant 0 : index
    %c0_32 = arith.constant 0 : index
    %60 = vector.load %arg14[%c0_31, %c0_32] : memref<32x3xf32, #tpu.memory_space<vmem>>, vector<32x3xf32>
    %cst_33 = arith.constant dense<0.000000e+00> : vector<16x3xf32>
    %61 = tpu.matmul %59, %60, %cst_33 {dimension_numbers = #tpu.dot_dimension_numbers<[1], [0], [0], [1], [0, 0, 1, 1], [], []>, precision = #tpu.contract_precision<fp32>} : vector<16x32xf32>, vector<32x3xf32>, vector<16x3xf32> -> vector<16x3xf32>
    %c0_34 = arith.constant 0 : index
    %c0_35 = arith.constant 0 : index
    %62 = vector.load %arg15[%c0_34, %c0_35] : memref<1x3xf32, #tpu.memory_space<vmem>>, vector<1x3xf32>
    %63 = vector.broadcast %62 : vector<1x3xf32> to vector<16x3xf32>
    %64 = arith.addf %61, %63 : vector<16x3xf32>
    %65 = vector.extract_strided_slice %64 {offsets = [0, 0], sizes = [16, 1], strides = [1, 1]} : vector<16x3xf32> to vector<16x1xf32>
    %66 = vector.extract_strided_slice %64 {offsets = [0, 1], sizes = [16, 1], strides = [1, 1]} : vector<16x3xf32> to vector<16x1xf32>
    %67 = arith.maximumf %65, %66 : vector<16x1xf32>
    %68 = vector.extract_strided_slice %64 {offsets = [0, 2], sizes = [16, 1], strides = [1, 1]} : vector<16x3xf32> to vector<16x1xf32>
    %69 = arith.maximumf %67, %68 : vector<16x1xf32>
    %70 = vector.broadcast %69 : vector<16x1xf32> to vector<16x3xf32>
    %71 = arith.subf %64, %70 : vector<16x3xf32>
    %72 = math.exp %71 : vector<16x3xf32>
    %73 = vector.extract_strided_slice %72 {offsets = [0, 0], sizes = [16, 1], strides = [1, 1]} : vector<16x3xf32> to vector<16x1xf32>
    %74 = vector.extract_strided_slice %72 {offsets = [0, 1], sizes = [16, 1], strides = [1, 1]} : vector<16x3xf32> to vector<16x1xf32>
    %75 = arith.addf %73, %74 : vector<16x1xf32>
    %76 = vector.extract_strided_slice %72 {offsets = [0, 2], sizes = [16, 1], strides = [1, 1]} : vector<16x3xf32> to vector<16x1xf32>
    %77 = arith.addf %75, %76 : vector<16x1xf32>
    %78 = vector.broadcast %77 : vector<16x1xf32> to vector<16x3xf32>
    %79 = arith.divf %72, %78 : vector<16x3xf32>
    %80 = vector.extract_strided_slice %79 {offsets = [0, 0], sizes = [8, 3], strides = [1, 1]} : vector<16x3xf32> to vector<8x3xf32>
    %81 = vector.extract_strided_slice %79 {offsets = [8, 0], sizes = [8, 3], strides = [1, 1]} : vector<16x3xf32> to vector<8x3xf32>
    %82 = vector.extract_strided_slice %38 {offsets = [0, 0], sizes = [8, 3], strides = [1, 1]} : vector<16x3xf32> to vector<8x3xf32>
    %83 = vector.extract_strided_slice %38 {offsets = [8, 0], sizes = [8, 3], strides = [1, 1]} : vector<16x3xf32> to vector<8x3xf32>
    %c0_36 = arith.constant 0 : index
    %c0_37 = arith.constant 0 : index
    %84 = vector.load %arg3[%c0_36, %c0_37] : memref<8x3xf32, #tpu.memory_space<vmem>>, vector<8x3xf32>
    %85 = vector.extract_strided_slice %84 {offsets = [0, 0], sizes = [8, 1], strides = [1, 1]} : vector<8x3xf32> to vector<8x1xf32>
    %86 = vector.broadcast %85 : vector<8x1xf32> to vector<8x3xf32>
    %87 = arith.mulf %42, %86 : vector<8x3xf32>
    %88 = vector.extract_strided_slice %80 {offsets = [0, 0], sizes = [8, 1], strides = [1, 1]} : vector<8x3xf32> to vector<8x1xf32>
    %89 = vector.broadcast %88 : vector<8x1xf32> to vector<8x3xf32>
    %90 = arith.mulf %89, %82 : vector<8x3xf32>
    %91 = arith.mulf %43, %90 : vector<8x3xf32>
    %92 = arith.addf %87, %91 : vector<8x3xf32>
    %93 = vector.extract_strided_slice %84 {offsets = [0, 1], sizes = [8, 1], strides = [1, 1]} : vector<8x3xf32> to vector<8x1xf32>
    %94 = vector.broadcast %93 : vector<8x1xf32> to vector<8x3xf32>
    %95 = arith.mulf %42, %94 : vector<8x3xf32>
    %96 = vector.extract_strided_slice %80 {offsets = [0, 1], sizes = [8, 1], strides = [1, 1]} : vector<8x3xf32> to vector<8x1xf32>
    %97 = vector.broadcast %96 : vector<8x1xf32> to vector<8x3xf32>
    %98 = arith.mulf %97, %82 : vector<8x3xf32>
    %99 = arith.mulf %43, %98 : vector<8x3xf32>
    %100 = arith.addf %95, %99 : vector<8x3xf32>
    %101 = vector.extract_strided_slice %84 {offsets = [0, 2], sizes = [8, 1], strides = [1, 1]} : vector<8x3xf32> to vector<8x1xf32>
    %102 = vector.broadcast %101 : vector<8x1xf32> to vector<8x3xf32>
    %103 = arith.mulf %42, %102 : vector<8x3xf32>
    %104 = vector.extract_strided_slice %80 {offsets = [0, 2], sizes = [8, 1], strides = [1, 1]} : vector<8x3xf32> to vector<8x1xf32>
    %105 = vector.broadcast %104 : vector<8x1xf32> to vector<8x3xf32>
    %106 = arith.mulf %105, %82 : vector<8x3xf32>
    %107 = arith.mulf %43, %106 : vector<8x3xf32>
    %108 = arith.addf %103, %107 : vector<8x3xf32>
    %109 = tpu.concatenate %41, %92, %100, %108 in 1 : vector<8x3xf32>, vector<8x3xf32>, vector<8x3xf32>, vector<8x3xf32> -> vector<8x12xf32>
    %cst_38 = arith.constant dense<0.000000e+00> : vector<8x12xf32>
    %110 = tpu.matmul %32, %109, %cst_38 {dimension_numbers = #tpu.dot_dimension_numbers<[0], [0], [1], [1], [0, 1, 1, 1], [], []>, precision = #tpu.contract_precision<fp32>} : vector<8x8xf32>, vector<8x12xf32>, vector<8x12xf32> -> vector<8x12xf32>
    %111 = vector.extract_strided_slice %110 {offsets = [0, 0], sizes = [8, 3], strides = [1, 1]} : vector<8x12xf32> to vector<8x3xf32>
    %112 = arith.addf %0, %111 : vector<8x3xf32>
    %113 = vector.extract_strided_slice %110 {offsets = [0, 3], sizes = [8, 3], strides = [1, 1]} : vector<8x12xf32> to vector<8x3xf32>
    %114 = vector.extract_strided_slice %83 {offsets = [0, 0], sizes = [8, 1], strides = [1, 1]} : vector<8x3xf32> to vector<8x1xf32>
    %115 = vector.broadcast %114 : vector<8x1xf32> to vector<8x3xf32>
    %116 = arith.mulf %81, %115 : vector<8x3xf32>
    %117 = arith.addf %113, %116 : vector<8x3xf32>
    %118 = vector.extract_strided_slice %110 {offsets = [0, 6], sizes = [8, 3], strides = [1, 1]} : vector<8x12xf32> to vector<8x3xf32>
    %119 = vector.extract_strided_slice %83 {offsets = [0, 1], sizes = [8, 1], strides = [1, 1]} : vector<8x3xf32> to vector<8x1xf32>
    %120 = vector.broadcast %119 : vector<8x1xf32> to vector<8x3xf32>
    %121 = arith.mulf %81, %120 : vector<8x3xf32>
    %122 = arith.addf %118, %121 : vector<8x3xf32>
    %123 = vector.extract_strided_slice %110 {offsets = [0, 9], sizes = [8, 3], strides = [1, 1]} : vector<8x12xf32> to vector<8x3xf32>
    %124 = vector.extract_strided_slice %83 {offsets = [0, 2], sizes = [8, 1], strides = [1, 1]} : vector<8x3xf32> to vector<8x1xf32>
    %125 = vector.broadcast %124 : vector<8x1xf32> to vector<8x3xf32>
    %126 = arith.mulf %81, %125 : vector<8x3xf32>
    %127 = arith.addf %123, %126 : vector<8x3xf32>
    %128 = arith.mulf %117, %117 : vector<8x3xf32>
    %129 = arith.mulf %122, %122 : vector<8x3xf32>
    %130 = arith.addf %128, %129 : vector<8x3xf32>
    %131 = arith.mulf %127, %127 : vector<8x3xf32>
    %132 = arith.addf %130, %131 : vector<8x3xf32>
    %133 = math.sqrt %132 : vector<8x3xf32>
    %c0_39 = arith.constant 0 : index
    %c0_40 = arith.constant 0 : index
    %134 = vector.load %arg16[%c0_39, %c0_40] : memref<3x32xf32, #tpu.memory_space<vmem>>, vector<3x32xf32>
    %cst_41 = arith.constant dense<0.000000e+00> : vector<8x32xf32>
    %135 = tpu.matmul %133, %134, %cst_41 {dimension_numbers = #tpu.dot_dimension_numbers<[1], [0], [0], [1], [0, 0, 1, 1], [], []>, precision = #tpu.contract_precision<fp32>} : vector<8x3xf32>, vector<3x32xf32>, vector<8x32xf32> -> vector<8x32xf32>
    %c0_42 = arith.constant 0 : index
    %c0_43 = arith.constant 0 : index
    %136 = vector.load %arg17[%c0_42, %c0_43] : memref<1x32xf32, #tpu.memory_space<vmem>>, vector<1x32xf32>
    %137 = vector.broadcast %136 : vector<1x32xf32> to vector<8x32xf32>
    %138 = arith.addf %135, %137 : vector<8x32xf32>
    %cst_44 = arith.constant 0.000000e+00 : f32
    %139 = vector.broadcast %cst_44 : f32 to vector<8x32xf32>
    %140 = arith.maximumf %138, %139 : vector<8x32xf32>
    %c0_45 = arith.constant 0 : index
    %c0_46 = arith.constant 0 : index
    %141 = vector.load %arg18[%c0_45, %c0_46] : memref<32x9xf32, #tpu.memory_space<vmem>>, vector<32x9xf32>
    %cst_47 = arith.constant dense<0.000000e+00> : vector<8x9xf32>
    %142 = tpu.matmul %140, %141, %cst_47 {dimension_numbers = #tpu.dot_dimension_numbers<[1], [0], [0], [1], [0, 0, 1, 1], [], []>, precision = #tpu.contract_precision<fp32>} : vector<8x32xf32>, vector<32x9xf32>, vector<8x9xf32> -> vector<8x9xf32>
    %c0_48 = arith.constant 0 : index
    %c0_49 = arith.constant 0 : index
    %143 = vector.load %arg19[%c0_48, %c0_49] : memref<1x9xf32, #tpu.memory_space<vmem>>, vector<1x9xf32>
    %144 = vector.broadcast %143 : vector<1x9xf32> to vector<8x9xf32>
    %145 = arith.addf %142, %144 : vector<8x9xf32>
    %146 = vector.extract_strided_slice %145 {offsets = [0, 0], sizes = [8, 3], strides = [1, 1]} : vector<8x9xf32> to vector<8x3xf32>
    %147 = arith.mulf %146, %117 : vector<8x3xf32>
    %148 = vector.extract_strided_slice %145 {offsets = [0, 0], sizes = [8, 3], strides = [1, 1]} : vector<8x9xf32> to vector<8x3xf32>
    %149 = arith.mulf %148, %122 : vector<8x3xf32>
    %150 = vector.extract_strided_slice %145 {offsets = [0, 0], sizes = [8, 3], strides = [1, 1]} : vector<8x9xf32> to vector<8x3xf32>
    %151 = arith.mulf %150, %127 : vector<8x3xf32>
    %152 = vector.extract_strided_slice %145 {offsets = [0, 3], sizes = [8, 3], strides = [1, 1]} : vector<8x9xf32> to vector<8x3xf32>
    %153 = arith.mulf %152, %117 : vector<8x3xf32>
    %154 = vector.extract_strided_slice %145 {offsets = [0, 3], sizes = [8, 3], strides = [1, 1]} : vector<8x9xf32> to vector<8x3xf32>
    %155 = arith.mulf %154, %122 : vector<8x3xf32>
    %156 = vector.extract_strided_slice %145 {offsets = [0, 3], sizes = [8, 3], strides = [1, 1]} : vector<8x9xf32> to vector<8x3xf32>
    %157 = arith.mulf %156, %127 : vector<8x3xf32>
    %158 = vector.extract_strided_slice %145 {offsets = [0, 6], sizes = [8, 3], strides = [1, 1]} : vector<8x9xf32> to vector<8x3xf32>
    %159 = arith.mulf %158, %117 : vector<8x3xf32>
    %160 = vector.extract_strided_slice %145 {offsets = [0, 6], sizes = [8, 3], strides = [1, 1]} : vector<8x9xf32> to vector<8x3xf32>
    %161 = arith.mulf %160, %122 : vector<8x3xf32>
    %162 = vector.extract_strided_slice %145 {offsets = [0, 6], sizes = [8, 3], strides = [1, 1]} : vector<8x9xf32> to vector<8x3xf32>
    %163 = arith.mulf %162, %127 : vector<8x3xf32>
    %164 = arith.mulf %147, %117 : vector<8x3xf32>
    %165 = arith.mulf %147, %122 : vector<8x3xf32>
    %166 = arith.mulf %147, %127 : vector<8x3xf32>
    %167 = arith.mulf %149, %122 : vector<8x3xf32>
    %168 = arith.mulf %149, %127 : vector<8x3xf32>
    %169 = arith.mulf %151, %127 : vector<8x3xf32>
    %170 = arith.mulf %153, %117 : vector<8x3xf32>
    %171 = arith.mulf %153, %122 : vector<8x3xf32>
    %172 = arith.mulf %153, %127 : vector<8x3xf32>
    %173 = arith.mulf %155, %122 : vector<8x3xf32>
    %174 = arith.mulf %155, %127 : vector<8x3xf32>
    %175 = arith.mulf %157, %127 : vector<8x3xf32>
    %176 = arith.mulf %159, %117 : vector<8x3xf32>
    %177 = arith.mulf %159, %122 : vector<8x3xf32>
    %178 = arith.mulf %159, %127 : vector<8x3xf32>
    %179 = arith.mulf %161, %122 : vector<8x3xf32>
    %180 = arith.mulf %161, %127 : vector<8x3xf32>
    %181 = arith.mulf %163, %127 : vector<8x3xf32>
    %182 = tpu.concatenate %164, %165, %166, %167, %168, %169, %170, %171, %172, %173, %174, %175, %176, %177, %178, %179 in 1 : vector<8x3xf32>, vector<8x3xf32>, vector<8x3xf32>, vector<8x3xf32>, vector<8x3xf32>, vector<8x3xf32>, vector<8x3xf32>, vector<8x3xf32>, vector<8x3xf32>, vector<8x3xf32>, vector<8x3xf32>, vector<8x3xf32>, vector<8x3xf32>, vector<8x3xf32>, vector<8x3xf32>, vector<8x3xf32> -> vector<8x48xf32>
    %183 = tpu.concatenate %180, %181 in 1 : vector<8x3xf32>, vector<8x3xf32> -> vector<8x6xf32>
    %184 = tpu.concatenate %182, %183 in 1 : vector<8x48xf32>, vector<8x6xf32> -> vector<8x54xf32>
    %c0_50 = arith.constant 0 : index
    %c0_51 = arith.constant 0 : index
    %185 = vector.load %arg7[%c0_50, %c0_51] : memref<54x27xf32, #tpu.memory_space<vmem>>, vector<54x27xf32>
    %cst_52 = arith.constant dense<0.000000e+00> : vector<8x27xf32>
    %186 = tpu.matmul %184, %185, %cst_52 {dimension_numbers = #tpu.dot_dimension_numbers<[1], [0], [0], [1], [0, 0, 1, 1], [], []>, precision = #tpu.contract_precision<fp32>} : vector<8x54xf32>, vector<54x27xf32>, vector<8x27xf32> -> vector<8x27xf32>
    %cst_53 = arith.constant 0.000000e+00 : f32
    %187 = vector.broadcast %cst_53 : f32 to vector<8x89xf32>
    %188 = tpu.concatenate %112, %117, %122, %127, %186, %187 in 1 : vector<8x3xf32>, vector<8x3xf32>, vector<8x3xf32>, vector<8x3xf32>, vector<8x27xf32>, vector<8x89xf32> -> vector<8x128xf32>
    %c0_54 = arith.constant 0 : index
    %c0_55 = arith.constant 0 : index
    %189 = vector.load %arg20[%c0_54, %c0_55] : memref<8x128xf32, #tpu.memory_space<vmem>>, vector<8x128xf32>
    tpu.vector_store %arg20[%c0_54, %c0_55], %188 {strides = array<i32>} : memref<8x128xf32, #tpu.memory_space<vmem>>, vector<8x128xf32>,
    return
  }
}

</mosaic_0001>

<llo_original>
// kernel: painn_interaction.1
$region0: #{painn_interaction.1}
  #allocation0 [shape = 'u32[]', space=smem, size = 0x4, offset = 0x4, fixed_abs, tag = 'smem constant byte address 0x4 - core index']
  #allocation1 [shape = 'u32[144,128]{1,0:T(1,128)}', space=vmem, size = 0x12000, scoped, tag = 'internal scratch']
  %s0 = inlined_call_operand.vmem [shape: f32[8,3], index: 0, kind: input, shape index: {}]
  %s1 = inlined_call_operand.vmem [shape: f32[8,18], index: 1, kind: input, shape index: {}]
  %s2 = inlined_call_operand.vmem [shape: f32[8,9], index: 2, kind: input, shape index: {}]
  %s3 = inlined_call_operand.vmem [shape: f32[8,3], index: 3, kind: input, shape index: {}]
  %s4 = inlined_call_operand.vmem [shape: s32[8,1], index: 4, kind: input, shape index: {}]
  %s5 = inlined_call_operand.vmem [shape: s32[8,1], index: 5, kind: input, shape index: {}]
  %s6 = inlined_call_operand.vmem [shape: f32[18,3], index: 6, kind: input, shape index: {}]
  %s7 = inlined_call_operand.vmem [shape: f32[54,27], index: 7, kind: input, shape index: {}]
  %s8 = inlined_call_operand.vmem [shape: f32[3,3], index: 8, kind: input, shape index: {}]
  %s9 = inlined_call_operand.vmem [shape: f32[1,3], index: 9, kind: input, shape index: {}]
  %s10 = inlined_call_operand.vmem [shape: f32[3,9], index: 10, kind: input, shape index: {}]
  %s11 = inlined_call_operand.vmem [shape: f32[1,9], index: 11, kind: input, shape index: {}]
  %s12 = inlined_call_operand.vmem [shape: f32[6,32], index: 12, kind: input, shape index: {}]
  %s13 = inlined_call_operand.vmem [shape: f32[1,32], index: 13, kind: input, shape index: {}]
  %s14 = inlined_call_operand.vmem [shape: f32[32,3], index: 14, kind: input, shape index: {}]
  %s15 = inlined_call_operand.vmem [shape: f32[1,3], index: 15, kind: input, shape index: {}]
  %s16 = inlined_call_operand.vmem [shape: f32[3,32], index: 16, kind: input, shape index: {}]
  %s17 = inlined_call_operand.vmem [shape: f32[1,32], index: 17, kind: input, shape index: {}]
  %s18 = inlined_call_operand.vmem [shape: f32[32,9], index: 18, kind: input, shape index: {}]
  %s19 = inlined_call_operand.vmem [shape: f32[1,9], index: 19, kind: input, shape index: {}]
  %s20 = inlined_call_operand.vmem [shape: f32[8,128], index: 20, kind: output, shape index: {}]
  %s21 = sld [smem:[#allocation0]]
  $region90: #{painn_interaction.1} parent=0
    _
  %s23 = ssub.s32 1, %s21
  %s24 = scalar_select 0, %s23, %s21
  // Predicated region
  $region2: #{painn_interaction.1} parent=0 // pred_check
    _
  $region3: #{painn_interaction.1} parent=0 // pred_check_branch
    %26 = sbr.rel (0) target = $region5
  $region4: #{painn_interaction.1} parent=0 // pred_region
    _
  $region5: #{painn_interaction.1} parent=0 // pred_fallthru
    _
  // Predicated region
  $region6: #{painn_interaction.1} parent=0 // pred_check
    _
  $region7: #{painn_interaction.1} parent=0 // pred_check_branch
    %28 = sbr.rel (0) target = $region9
  $region8: #{painn_interaction.1} parent=0 // pred_region
    _
  $region9: #{painn_interaction.1} parent=0 // pred_fallthru
    _
  // Predicated region
  $region10: #{painn_interaction.1} parent=0 // pred_check
    _
  $region11: #{painn_interaction.1} parent=0 // pred_check_branch
    %30 = sbr.rel (0) target = $region13
  $region12: #{painn_interaction.1} parent=0 // pred_region
    _
  $region13: #{painn_interaction.1} parent=0 // pred_fallthru
    _
  // Predicated region
  $region14: #{painn_interaction.1} parent=0 // pred_check
    _
  $region15: #{painn_interaction.1} parent=0 // pred_check_branch
    %32 = sbr.rel (0) target = $region17
  $region16: #{painn_interaction.1} parent=0 // pred_region
    _
  $region17: #{painn_interaction.1} parent=0 // pred_fallthru
    _
  // Predicated region
  $region18: #{painn_interaction.1} parent=0 // pred_check
    _
  $region19: #{painn_interaction.1} parent=0 // pred_check_branch
    %34 = sbr.rel (0) target = $region21
  $region20: #{painn_interaction.1} parent=0 // pred_region
    _
  $region21: #{painn_interaction.1} parent=0 // pred_fallthru
    _
  // Predicated region
  $region22: #{painn_interaction.1} parent=0 // pred_check
    _
  $region23: #{painn_interaction.1} parent=0 // pred_check_branch
    %36 = sbr.rel (0) target = $region25
  $region24: #{painn_interaction.1} parent=0 // pred_region
    _
  $region25: #{painn_interaction.1} parent=0 // pred_fallthru
    _
  // Predicated region
  $region26: #{painn_interaction.1} parent=0 // pred_check
    _
  $region27: #{painn_interaction.1} parent=0 // pred_check_branch
    %38 = sbr.rel (0) target = $region29
  $region28: #{painn_interaction.1} parent=0 // pred_region
    _
  $region29: #{painn_interaction.1} parent=0 // pred_fallthru
    _
  // Predicated region
  $region30: #{painn_interaction.1} parent=0 // pred_check
    _
  $region31: #{painn_interaction.1} parent=0 // pred_check_branch
    %40 = sbr.rel (0) target = $region33
  $region32: #{painn_interaction.1} parent=0 // pred_region
    _
  $region33: #{painn_interaction.1} parent=0 // pred_fallthru
    _
  // Predicated region
  $region34: #{painn_interaction.1} parent=0 // pred_check
    _
  $region35: #{painn_interaction.1} parent=0 // pred_check_branch
    %42 = sbr.rel (0) target = $region37
  $region36: #{painn_interaction.1} parent=0 // pred_region
    _
  $region37: #{painn_interaction.1} parent=0 // pred_fallthru
    _
  // Predicated region
  $region38: #{painn_interaction.1} parent=0 // pred_check
    _
  $region39: #{painn_interaction.1} parent=0 // pred_check_branch
    %44 = sbr.rel (0) target = $region41
  $region40: #{painn_interaction.1} parent=0 // pred_region
    _
  $region41: #{painn_interaction.1} parent=0 // pred_fallthru
    _
  // Predicated region
  $region42: #{painn_interaction.1} parent=0 // pred_check
    _
  $region43: #{painn_interaction.1} parent=0 // pred_check_branch
    %46 = sbr.rel (0) target = $region45
  $region44: #{painn_interaction.1} parent=0 // pred_region
    _
  $region45: #{painn_interaction.1} parent=0 // pred_fallthru
    _
  // Predicated region
  $region46: #{painn_interaction.1} parent=0 // pred_check
    _
  $region47: #{painn_interaction.1} parent=0 // pred_check_branch
    %48 = sbr.rel (0) target = $region49
  $region48: #{painn_interaction.1} parent=0 // pred_region
    _
  $region49: #{painn_interaction.1} parent=0 // pred_fallthru
    _
  // Predicated region
  $region50: #{painn_interaction.1} parent=0 // pred_check
    _
  $region51: #{painn_interaction.1} parent=0 // pred_check_branch
    %50 = sbr.rel (0) target = $region53
  $region52: #{painn_interaction.1} parent=0 // pred_region
    _
  $region53: #{painn_interaction.1} parent=0 // pred_fallthru
    _
  // Predicated region
  $region54: #{painn_interaction.1} parent=0 // pred_check
    _
  $region55: #{painn_interaction.1} parent=0 // pred_check_branch
    %52 = sbr.rel (0) target = $region57
  $region56: #{painn_interaction.1} parent=0 // pred_region
    _
  $region57: #{painn_interaction.1} parent=0 // pred_fallthru
    _
  // Predicated region
  $region58: #{painn_interaction.1} parent=0 // pred_check
    _
  $region59: #{painn_interaction.1} parent=0 // pred_check_branch
    %54 = sbr.rel (0) target = $region61
  $region60: #{painn_interaction.1} parent=0 // pred_region
    _
  $region61: #{painn_interaction.1} parent=0 // pred_fallthru
    _
  // Predicated region
  $region62: #{painn_interaction.1} parent=0 // pred_check
    _
  $region63: #{painn_interaction.1} parent=0 // pred_check_branch
    %56 = sbr.rel (0) target = $region65
  $region64: #{painn_interaction.1} parent=0 // pred_region
    _
  $region65: #{painn_interaction.1} parent=0 // pred_fallthru
    _
  // Predicated region
  $region66: #{painn_interaction.1} parent=0 // pred_check
    _
  $region67: #{painn_interaction.1} parent=0 // pred_check_branch
    %58 = sbr.rel (0) target = $region69
  $region68: #{painn_interaction.1} parent=0 // pred_region
    _
  $region69: #{painn_interaction.1} parent=0 // pred_fallthru
    _
  // Predicated region
  $region70: #{painn_interaction.1} parent=0 // pred_check
    _
  $region71: #{painn_interaction.1} parent=0 // pred_check_branch
    %60 = sbr.rel (0) target = $region73
  $region72: #{painn_interaction.1} parent=0 // pred_region
    _
  $region73: #{painn_interaction.1} parent=0 // pred_fallthru
    _
  // Predicated region
  $region74: #{painn_interaction.1} parent=0 // pred_check
    _
  $region75: #{painn_interaction.1} parent=0 // pred_check_branch
    %62 = sbr.rel (0) target = $region77
  $region76: #{painn_interaction.1} parent=0 // pred_region
    _
  $region77: #{painn_interaction.1} parent=0 // pred_fallthru
    _
  // Predicated region
  $region78: #{painn_interaction.1} parent=0 // pred_check
    _
  $region79: #{painn_interaction.1} parent=0 // pred_check_branch
    %64 = sbr.rel (0) target = $region81
  $region80: #{painn_interaction.1} parent=0 // pred_region
    _
  $region81: #{painn_interaction.1} parent=0 // pred_fallthru
    _
  %v65 = vld [vmem:[%s0] sm:$0xff]
  %v66 = vld [vmem:[%s1] sm:$0xff]
  %v67 = vld [vmem:[%s8] sm:$0x7]
  %v68 = vld [vmem:[%s9] sm:$0x1]
  %v70 = vlaneseq
  %v71 = vshrl.u32 %v70, 7
  %v72 = vsub.s32 0, %v71
  %v73 = vrot.slane %v68, %v72
  %vm75 = vcmask 23552
  %v77 = vsel %vm75, %v65, 0
  %vm79 = vcmask 1042432
  %v81 = vsel %vm79, %v67, 0
  %83 = vmatprep.subr.mxu0 0.0
  %v84 = vand.u32 %v81, 4294901760
  %85 = vmatpush1.msra.mxu0 %v84
  %86 = vmatprep.subr.mxu0 0.0
  %87 = vmatpush1.msra.mxu0 0.0
  %88 = vmatprep.subr.mxu0 0.0
  %89 = vmatpush1.msra.mxu0 0.0
  %90 = vmatprep.subr.mxu0 0.0
  %91 = vmatpush1.msra.mxu0 0.0
  %92 = vmatprep.subr.mxu0 0.0
  %93 = vmatpush1.msra.mxu0 0.0
  %94 = vmatprep.subr.mxu0 0.0
  %95 = vmatpush1.msra.mxu0 0.0
  %96 = vmatprep.subr.mxu0 0.0
  %97 = vmatpush1.msra.mxu0 0.0
  %98 = vmatprep.subr.mxu0 0.0
  %99 = vmatpush1.msra.mxu0 0.0
  %100 = vmatprep.subr.mxu0 0.0
  %101 = vmatpush1.msra.mxu0 0.0
  %102 = vmatprep.subr.mxu0 0.0
  %103 = vmatpush1.msra.mxu0 0.0
  %104 = vmatprep.subr.mxu0 0.0
  %105 = vmatpush1.msra.mxu0 0.0
  %106 = vmatprep.subr.mxu0 0.0
  %107 = vmatpush1.msra.mxu0 0.0
  %108 = vmatprep.subr.mxu0 0.0
  %109 = vmatpush1.msra.mxu0 0.0
  %110 = vmatprep.subr.mxu0 0.0
  %111 = vmatpush1.msra.mxu0 0.0
  %112 = vmatprep.subr.mxu0 0.0
  %113 = vmatpush1.msra.mxu0 0.0
  %114 = vmatprep.subr.mxu0 0.0
  %115 = vmatpush1.msra.mxu0 0.0
  %116 = vmatprep.subr.mxu0 0.0
  %117 = vmatpush1.msra.mxu0 0.0
  %118 = vmatprep.subr.mxu0 0.0
  %119 = vmatpush1.msra.mxu0 0.0
  %120 = vmatprep.subr.mxu0 0.0
  %121 = vmatpush1.msra.mxu0 0.0
  %122 = vmatprep.subr.mxu0 0.0
  %123 = vmatpush1.msra.mxu0 0.0
  %124 = vmatprep.subr.mxu0 0.0
  %125 = vmatpush1.msra.mxu0 0.0
  %126 = vmatprep.subr.mxu0 0.0
  %127 = vmatpush1.msra.mxu0 0.0
  %128 = vmatprep.subr.mxu0 0.0
  %129 = vmatpush1.msra.mxu0 0.0
  %130 = vmatprep.subr.mxu0 0.0
  %131 = vmatpush1.msra.mxu0 0.0
  %132 = vmatprep.subr.mxu0 0.0
  %133 = vmatpush1.msra.mxu0 0.0
  %134 = vmatprep.subr.mxu0 0.0
  %135 = vmatpush1.msra.mxu0 0.0
  %136 = vmatprep.subr.mxu0 0.0
  %137 = vmatpush1.msra.mxu0 0.0
  %138 = vmatprep.subr.mxu0 0.0
  %139 = vmatpush1.msra.mxu0 0.0
  %140 = vmatprep.subr.mxu0 0.0
  %141 = vmatpush1.msra.mxu0 0.0
  %142 = vmatprep.subr.mxu0 0.0
  %143 = vmatpush1.msra.mxu0 0.0
  %144 = vmatprep.subr.mxu0 0.0
  %145 = vmatpush1.msra.mxu0 0.0
  %146 = vmatprep.subr.mxu0 0.0
  %147 = vmatpush1.msra.mxu0 0.0
  %148 = vmatprep.mubr.f32.mxu0 0.0
  %v149 = vand.u32 %v77, 4294901760
  %v150 = vsub.f32 %v77, %v149
  %v151 = vand.u32 %v150, 4294901760
  %v152 = vsub.f32 %v150, %v151
  %v153 = vand.u32 %v152, 4294901760
  %154 = vmatmul.mubr.f32.gmra.mrb[0].mxu0 %v153
  %v155 = vpop.f32.mrb[0].mxu0
  %v156 = vadd.f32 %v73, %v155
  %v157 = vpop.f32.mrb[0].mxu0
  %158 = vdwg.mxu0
  %159 = vmatprep.subr.mxu0 0.0
  %v160 = vand.u32 %v81, 4294901760
  %v161 = vsub.f32 %v81, %v160
  %v162 = vand.u32 %v161, 4294901760
  %v163 = vsub.f32 %v161, %v162
  %v164 = vand.u32 %v163, 4294901760
  %165 = vmatpush1.msra.mxu0 %v164
  %166 = vmatprep.subr.mxu0 0.0
  %167 = vmatpush1.msra.mxu0 0.0
  %168 = vmatprep.subr.mxu0 0.0
  %169 = vmatpush1.msra.mxu0 0.0
  %170 = vmatprep.subr.mxu0 0.0
  %171 = vmatpush1.msra.mxu0 0.0
  %172 = vmatprep.subr.mxu0 0.0
  %173 = vmatpush1.msra.mxu0 0.0
  %174 = vmatprep.subr.mxu0 0.0
  %175 = vmatpush1.msra.mxu0 0.0
  %176 = vmatprep.subr.mxu0 0.0
  %177 = vmatpush1.msra.mxu0 0.0
  %178 = vmatprep.subr.mxu0 0.0
  %179 = vmatpush1.msra.mxu0 0.0
  %180 = vmatprep.subr.mxu0 0.0
  %181 = vmatpush1.msra.mxu0 0.0
  %182 = vmatprep.subr.mxu0 0.0
  %183 = vmatpush1.msra.mxu0 0.0
  %184 = vmatprep.subr.mxu0 0.0
  %185 = vmatpush1.msra.mxu0 0.0
  %186 = vmatprep.subr.mxu0 0.0
  %187 = vmatpush1.msra.mxu0 0.0
  %188 = vmatprep.subr.mxu0 0.0
  %189 = vmatpush1.msra.mxu0 0.0
  %190 = vmatprep.subr.mxu0 0.0
  %191 = vmatpush1.msra.mxu0 0.0
  %192 = vmatprep.subr.mxu0 0.0
  %193 = vmatpush1.msra.mxu0 0.0
  %194 = vmatprep.subr.mxu0 0.0
  %195 = vmatpush1.msra.mxu0 0.0
  %196 = vmatprep.subr.mxu0 0.0
  %197 = vmatpush1.msra.mxu0 0.0
  %198 = vmatprep.subr.mxu0 0.0
  %199 = vmatpush1.msra.mxu0 0.0
  %200 = vmatprep.subr.mxu0 0.0
  %201 = vmatpush1.msra.mxu0 0.0
  %202 = vmatprep.subr.mxu0 0.0
  %203 = vmatpush1.msra.mxu0 0.0
  %204 = vmatprep.subr.mxu0 0.0
  %205 = vmatpush1.msra.mxu0 0.0
  %206 = vmatprep.subr.mxu0 0.0
  %207 = vmatpush1.msra.mxu0 0.0
  %208 = vmatprep.subr.mxu0 0.0
  %209 = vmatpush1.msra.mxu0 0.0
  %210 = vmatprep.subr.mxu0 0.0
  %211 = vmatpush1.msra.mxu0 0.0
  %212 = vmatprep.subr.mxu0 0.0
  %213 = vmatpush1.msra.mxu0 0.0
  %214 = vmatprep.subr.mxu0 0.0
  %215 = vmatpush1.msra.mxu0 0.0
  %216 = vmatprep.subr.mxu0 0.0
  %217 = vmatpush1.msra.mxu0 0.0
  %218 = vmatprep.subr.mxu0 0.0
  %219 = vmatpush1.msra.mxu0 0.0
  %220 = vmatprep.subr.mxu0 0.0
  %221 = vmatpush1.msra.mxu0 0.0
  %222 = vmatprep.subr.mxu0 0.0
  %223 = vmatpush1.msra.mxu0 0.0
  %224 = vmatprep.subr.mxu0 0.0
  %225 = vmatpush1.msra.mxu0 0.0
  %226 = vmatprep.subr.mxu0 0.0
  %227 = vmatpush1.msra.mxu0 0.0
  %228 = vmatprep.mubr.f32.mxu0 0.0
  %v229 = vand.u32 %v77, 4294901760
  %230 = vmatmul.mubr.f32.gmra.mrb[0].mxu0 %v229
  %v231 = vpop.f32.mrb[0].mxu0
  %v232 = vadd.f32 %v156, %v231
  %v233 = vpop.f32.mrb[0].mxu0
  %234 = vdwg.mxu0
  %235 = vmatprep.subr.mxu0 0.0
  %v236 = vand.u32 %v81, 4294901760
  %v237 = vsub.f32 %v81, %v236
  %238 = vmatpush1.msra.mxu0 %v237
  %239 = vmatprep.subr.mxu0 0.0
  %240 = vmatpush1.msra.mxu0 0.0
  %241 = vmatprep.subr.mxu0 0.0
  %242 = vmatpush1.msra.mxu0 0.0
  %243 = vmatprep.subr.mxu0 0.0
  %244 = vmatpush1.msra.mxu0 0.0
  %245 = vmatprep.subr.mxu0 0.0
  %246 = vmatpush1.msra.mxu0 0.0
  %247 = vmatprep.subr.mxu0 0.0
  %248 = vmatpush1.msra.mxu0 0.0
  %249 = vmatprep.subr.mxu0 0.0
  %250 = vmatpush1.msra.mxu0 0.0
  %251 = vmatprep.subr.mxu0 0.0
  %252 = vmatpush1.msra.mxu0 0.0
  %253 = vmatprep.subr.mxu0 0.0
  %254 = vmatpush1.msra.mxu0 0.0
  %255 = vmatprep.subr.mxu0 0.0
  %256 = vmatpush1.msra.mxu0 0.0
  %257 = vmatprep.subr.mxu0 0.0
  %258 = vmatpush1.msra.mxu0 0.0
  %259 = vmatprep.subr.mxu0 0.0
  %260 = vmatpush1.msra.mxu0 0.0
  %261 = vmatprep.subr.mxu0 0.0
  %262 = vmatpush1.msra.mxu0 0.0
  %263 = vmatprep.subr.mxu0 0.0
  %264 = vmatpush1.msra.mxu0 0.0
  %265 = vmatprep.subr.mxu0 0.0
  %266 = vmatpush1.msra.mxu0 0.0
  %267 = vmatprep.subr.mxu0 0.0
  %268 = vmatpush1.msra.mxu0 0.0
  %269 = vmatprep.subr.mxu0 0.0
  %270 = vmatpush1.msra.mxu0 0.0
  %271 = vmatprep.subr.mxu0 0.0
  %272 = vmatpush1.msra.mxu0 0.0
  %273 = vmatprep.subr.mxu0 0.0
  %274 = vmatpush1.msra.mxu0 0.0
  %275 = vmatprep.subr.mxu0 0.0
  %276 = vmatpush1.msra.mxu0 0.0
  %277 = vmatprep.subr.mxu0 0.0
  %278 = vmatpush1.msra.mxu0 0.0
  %279 = vmatprep.subr.mxu0 0.0
  %280 = vmatpush1.msra.mxu0 0.0
  %281 = vmatprep.subr.mxu0 0.0
  %282 = vmatpush1.msra.mxu0 0.0
  %283 = vmatprep.subr.mxu0 0.0
  %284 = vmatpush1.msra.mxu0 0.0
  %285 = vmatprep.subr.mxu0 0.0
  %286 = vmatpush1.msra.mxu0 0.0
  %287 = vmatprep.subr.mxu0 0.0
  %288 = vmatpush1.msra.mxu0 0.0
  %289 = vmatprep.subr.mxu0 0.0
  %290 = vmatpush1.msra.mxu0 0.0
  %291 = vmatprep.subr.mxu0 0.0
  %292 = vmatpush1.msra.mxu0 0.0
  %293 = vmatprep.subr.mxu0 0.0
  %294 = vmatpush1.msra.mxu0 0.0
  %295 = vmatprep.subr.mxu0 0.0
  %296 = vmatpush1.msra.mxu0 0.0
  %297 = vmatprep.subr.mxu0 0.0
  %298 = vmatpush1.msra.mxu0 0.0
  %299 = vmatprep.subr.mxu0 0.0
  %300 = vmatpush1.msra.mxu0 0.0
  %301 = vmatprep.mubr.f32.mxu0 0.0
  %v302 = vand.u32 %v77, 4294901760
  %v303 = vsub.f32 %v77, %v302
  %304 = vmatmul.mubr.f32.gmra.mrb[0].mxu0 %v303
  %v305 = vpop.f32.mrb[0].mxu0
  %v306 = vadd.f32 %v232, %v305
  %v307 = vpop.f32.mrb[0].mxu0
  %308 = vdwg.mxu0
  %309 = vmatprep.subr.mxu0 0.0
  %v310 = vand.u32 %v81, 4294901760
  %311 = vmatpush1.msra.mxu0 %v310
  %312 = vmatprep.subr.mxu0 0.0
  %313 = vmatpush1.msra.mxu0 0.0
  %314 = vmatprep.subr.mxu0 0.0
  %315 = vmatpush1.msra.mxu0 0.0
  %316 = vmatprep.subr.mxu0 0.0
  %317 = vmatpush1.msra.mxu0 0.0
  %318 = vmatprep.subr.mxu0 0.0
  %319 = vmatpush1.msra.mxu0 0.0
  %320 = vmatprep.subr.mxu0 0.0
  %321 = vmatpush1.msra.mxu0 0.0
  %322 = vmatprep.subr.mxu0 0.0
  %323 = vmatpush1.msra.mxu0 0.0
  %324 = vmatprep.subr.mxu0 0.0
  %325 = vmatpush1.msra.mxu0 0.0
  %326 = vmatprep.subr.mxu0 0.0
  %327 = vmatpush1.msra.mxu0 0.0
  %328 = vmatprep.subr.mxu0 0.0
  %329 = vmatpush1.msra.mxu0 0.0
  %330 = vmatprep.subr.mxu0 0.0
  %331 = vmatpush1.msra.mxu0 0.0
  %332 = vmatprep.subr.mxu0 0.0
  %333 = vmatpush1.msra.mxu0 0.0
  %334 = vmatprep.subr.mxu0 0.0
  %335 = vmatpush1.msra.mxu0 0.0
  %336 = vmatprep.subr.mxu0 0.0
  %337 = vmatpush1.msra.mxu0 0.0
  %338 = vmatprep.subr.mxu0 0.0
  %339 = vmatpush1.msra.mxu0 0.0
  %340 = vmatprep.subr.mxu0 0.0
  %341 = vmatpush1.msra.mxu0 0.0
  %342 = vmatprep.subr.mxu0 0.0
  %343 = vmatpush1.msra.mxu0 0.0
  %344 = vmatprep.subr.mxu0 0.0
  %345 = vmatpush1.msra.mxu0 0.0
  %346 = vmatprep.subr.mxu0 0.0
  %347 = vmatpush1.msra.mxu0 0.0
  %348 = vmatprep.subr.mxu0 0.0
  %349 = vmatpush1.msra.mxu0 0.0
  %350 = vmatprep.subr.mxu0 0.0
  %351 = vmatpush1.msra.mxu0 0.0
  %352 = vmatprep.subr.mxu0 0.0
  %353 = vmatpush1.msra.mxu0 0.0
  %354 = vmatprep.subr.mxu0 0.0
  %355 = vmatpush1.msra.mxu0 0.0
  %356 = vmatprep.subr.mxu0 0.0
  %357 = vmatpush1.msra.mxu0 0.0
  %358 = vmatprep.subr.mxu0 0.0
  %359 = vmatpush1.msra.mxu0 0.0
  %360 = vmatprep.subr.mxu0 0.0
  %361 = vmatpush1.msra.mxu0 0.0
  %362 = vmatprep.subr.mxu0 0.0
  %363 = vmatpush1.msra.mxu0 0.0
  %364 = vmatprep.subr.mxu0 0.0
  %365 = vmatpush1.msra.mxu0 0.0
  %366 = vmatprep.subr.mxu0 0.0
  %367 = vmatpush1.msra.mxu0 0.0
  %368 = vmatprep.subr.mxu0 0.0
  %369 = vmatpush1.msra.mxu0 0.0
  %370 = vmatprep.subr.mxu0 0.0
  %371 = vmatpush1.msra.mxu0 0.0
  %372 = vmatprep.subr.mxu0 0.0
  %373 = vmatpush1.msra.mxu0 0.0
  %374 = vmatprep.mubr.f32.mxu0 0.0
  %v375 = vand.u32 %v77, 4294901760
  %v376 = vsub.f32 %v77, %v375
  %v377 = vand.u32 %v376, 4294901760
  %378 = vmatmul.mubr.f32.gmra.mrb[0].mxu0 %v377
  %v379 = vpop.f32.mrb[0].mxu0
  %v380 = vadd.f32 %v306, %v379
  %v381 = vpop.f32.mrb[0].mxu0
  %382 = vdwg.mxu0
  %383 = vmatprep.subr.mxu0 0.0
  %v384 = vand.u32 %v81, 4294901760
  %v385 = vsub.f32 %v81, %v384
  %v386 = vand.u32 %v385, 4294901760
  %387 = vmatpush1.msra.mxu0 %v386
  %388 = vmatprep.subr.mxu0 0.0
  %389 = vmatpush1.msra.mxu0 0.0
  %390 = vmatprep.subr.mxu0 0.0
  %391 = vmatpush1.msra.mxu0 0.0
  %392 = vmatprep.subr.mxu0 0.0
  %393 = vmatpush1.msra.mxu0 0.0
  %394 = vmatprep.subr.mxu0 0.0
  %395 = vmatpush1.msra.mxu0 0.0
  %396 = vmatprep.subr.mxu0 0.0
  %397 = vmatpush1.msra.mxu0 0.0
  %398 = vmatprep.subr.mxu0 0.0
  %399 = vmatpush1.msra.mxu0 0.0
  %400 = vmatprep.subr.mxu0 0.0
  %401 = vmatpush1.msra.mxu0 0.0
  %402 = vmatprep.subr.mxu0 0.0
  %403 = vmatpush1.msra.mxu0 0.0
  %404 = vmatprep.subr.mxu0 0.0
  %405 = vmatpush1.msra.mxu0 0.0
  %406 = vmatprep.subr.mxu0 0.0
  %407 = vmatpush1.msra.mxu0 0.0
  %408 = vmatprep.subr.mxu0 0.0
  %409 = vmatpush1.msra.mxu0 0.0
  %410 = vmatprep.subr.mxu0 0.0
  %411 = vmatpush1.msra.mxu0 0.0
  %412 = vmatprep.subr.mxu0 0.0
  %413 = vmatpush1.msra.mxu0 0.0
  %414 = vmatprep.subr.mxu0 0.0
  %415 = vmatpush1.msra.mxu0 0.0
  %416 = vmatprep.subr.mxu0 0.0
  %417 = vmatpush1.msra.mxu0 0.0
  %418 = vmatprep.subr.mxu0 0.0
  %419 = vmatpush1.msra.mxu0 0.0
  %420 = vmatprep.subr.mxu0 0.0
  %421 = vmatpush1.msra.mxu0 0.0
  %422 = vmatprep.subr.mxu0 0.0
  %423 = vmatpush1.msra.mxu0 0.0
  %424 = vmatprep.subr.mxu0 0.0
  %425 = vmatpush1.msra.mxu0 0.0
  %426 = vmatprep.subr.mxu0 0.0
  %427 = vmatpush1.msra.mxu0 0.0
  %428 = vmatprep.subr.mxu0 0.0
  %429 = vmatpush1.msra.mxu0 0.0
  %430 = vmatprep.subr.mxu0 0.0
  %431 = vmatpush1.msra.mxu0 0.0
  %432 = vmatprep.subr.mxu0 0.0
  %433 = vmatpush1.msra.mxu0 0.0
  %434 = vmatprep.subr.mxu0 0.0
  %435 = vmatpush1.msra.mxu0 0.0
  %436 = vmatprep.subr.mxu0 0.0
  %437 = vmatpush1.msra.mxu0 0.0
  %438 = vmatprep.subr.mxu0 0.0
  %439 = vmatpush1.msra.mxu0 0.0
  %440 = vmatprep.subr.mxu0 0.0
  %441 = vmatpush1.msra.mxu0 0.0
  %442 = vmatprep.subr.mxu0 0.0
  %443 = vmatpush1.msra.mxu0 0.0
  %444 = vmatprep.subr.mxu0 0.0
  %445 = vmatpush1.msra.mxu0 0.0
  %446 = vmatprep.subr.mxu0 0.0
  %447 = vmatpush1.msra.mxu0 0.0
  %448 = vmatprep.subr.mxu0 0.0
  %449 = vmatpush1.msra.mxu0 0.0
  %450 = vmatprep.mubr.f32.mxu0 0.0
  %v451 = vand.u32 %v77, 4294901760
  %452 = vmatmul.mubr.f32.gmra.mrb[0].mxu0 %v451
  %v453 = vpop.f32.mrb[0].mxu0
  %v454 = vadd.f32 %v380, %v453
  %v455 = vpop.f32.mrb[0].mxu0
  %456 = vdwg.mxu0
  %457 = vmatprep.subr.mxu0 0.0
  %v458 = vand.u32 %v81, 4294901760
  %459 = vmatpush1.msra.mxu0 %v458
  %460 = vmatprep.subr.mxu0 0.0
  %461 = vmatpush1.msra.mxu0 0.0
  %462 = vmatprep.subr.mxu0 0.0
  %463 = vmatpush1.msra.mxu0 0.0
  %464 = vmatprep.subr.mxu0 0.0
  %465 = vmatpush1.msra.mxu0 0.0
  %466 = vmatprep.subr.mxu0 0.0
  %467 = vmatpush1.msra.mxu0 0.0
  %468 = vmatprep.subr.mxu0 0.0
  %469 = vmatpush1.msra.mxu0 0.0
  %470 = vmatprep.subr.mxu0 0.0
  %471 = vmatpush1.msra.mxu0 0.0
  %472 = vmatprep.subr.mxu0 0.0
  %473 = vmatpush1.msra.mxu0 0.0
  %474 = vmatprep.subr.mxu0 0.0
  %475 = vmatpush1.msra.mxu0 0.0
  %476 = vmatprep.subr.mxu0 0.0
  %477 = vmatpush1.msra.mxu0 0.0
  %478 = vmatprep.subr.mxu0 0.0
  %479 = vmatpush1.msra.mxu0 0.0
  %480 = vmatprep.subr.mxu0 0.0
  %481 = vmatpush1.msra.mxu0 0.0
  %482 = vmatprep.subr.mxu0 0.0
  %483 = vmatpush1.msra.mxu0 0.0
  %484 = vmatprep.subr.mxu0 0.0
  %485 = vmatpush1.msra.mxu0 0.0
  %486 = vmatprep.subr.mxu0 0.0
  %487 = vmatpush1.msra.mxu0 0.0
  %488 = vmatprep.subr.mxu0 0.0
  %489 = vmatpush1.msra.mxu0 0.0
  %490 = vmatprep.subr.mxu0 0.0
  %491 = vmatpush1.msra.mxu0 0.0
  %492 = vmatprep.subr.mxu0 0.0
  %493 = vmatpush1.msra.mxu0 0.0
  %494 = vmatprep.subr.mxu0 0.0
  %495 = vmatpush1.msra.mxu0 0.0
  %496 = vmatprep.subr.mxu0 0.0
  %497 = vmatpush1.msra.mxu0 0.0
  %498 = vmatprep.subr.mxu0 0.0
  %499 = vmatpush1.msra.mxu0 0.0
  %500 = vmatprep.subr.mxu0 0.0
  %501 = vmatpush1.msra.mxu0 0.0
  %502 = vmatprep.subr.mxu0 0.0
  %503 = vmatpush1.msra.mxu0 0.0
  %504 = vmatprep.subr.mxu0 0.0
  %505 = vmatpush1.msra.mxu0 0.0
  %506 = vmatprep.subr.mxu0 0.0
  %507 = vmatpush1.msra.mxu0 0.0
  %508 = vmatprep.subr.mxu0 0.0
  %509 = vmatpush1.msra.mxu0 0.0
  %510 = vmatprep.subr.mxu0 0.0
  %511 = vmatpush1.msra.mxu0 0.0
  %512 = vmatprep.subr.mxu0 0.0
  %513 = vmatpush1.msra.mxu0 0.0
  %514 = vmatprep.subr.mxu0 0.0
  %515 = vmatpush1.msra.mxu0 0.0
  %516 = vmatprep.subr.mxu0 0.0
  %517 = vmatpush1.msra.mxu0 0.0
  %518 = vmatprep.subr.mxu0 0.0
  %519 = vmatpush1.msra.mxu0 0.0
  %520 = vmatprep.subr.mxu0 0.0
  %521 = vmatpush1.msra.mxu0 0.0
  %522 = vmatprep.mubr.f32.mxu0 0.0
  %v523 = vand.u32 %v77, 4294901760
  %524 = vmatmul.mubr.f32.gmra.mrb[0].mxu0 %v523
  %v525 = vpop.f32.mrb[0].mxu0
  %v526 = vadd.f32 %v454, %v525
  %v527 = vpop.f32.mrb[0].mxu0
  %528 = vdwg.mxu0
  %v529 = vsub.f32 0.0, %v526
  %v530 = vmul.f32 %v529, 1.442695
  %v531 = vpow.pop %v530
  %v532 = vadd.f32 %v531, 1.0
  %v533 = vrcp.pop %v532
  %v534 = vmul.f32 1.0, %v533
  %v535 = vmul.f32 %v526, %v534
  %v536 = vld [vmem:[%s10] sm:$0x7]
  %v537 = vld [vmem:[%s11] sm:$0x1]
  %v539 = vlaneseq
  %v540 = vshrl.u32 %v539, 7
  %v541 = vsub.s32 0, %v540
  %v542 = vrot.slane %v537, %v541
  %v545 = vsel %vm75, %v535, 0
  %v548 = vsel %vm79, %v536, 0
  %550 = vmatprep.subr.mxu0 0.0
  %v551 = vand.u32 %v548, 4294901760
  %552 = vmatpush1.msra.mxu0 %v551
  %553 = vmatprep.subr.mxu0 0.0
  %554 = vmatpush1.msra.mxu0 0.0
  %555 = vmatprep.subr.mxu0 0.0
  %556 = vmatpush1.msra.mxu0 0.0
  %557 = vmatprep.subr.mxu0 0.0
  %558 = vmatpush1.msra.mxu0 0.0
  %559 = vmatprep.subr.mxu0 0.0
  %560 = vmatpush1.msra.mxu0 0.0
  %561 = vmatprep.subr.mxu0 0.0
  %562 = vmatpush1.msra.mxu0 0.0
  %563 = vmatprep.subr.mxu0 0.0
  %564 = vmatpush1.msra.mxu0 0.0
  %565 = vmatprep.subr.mxu0 0.0
  %566 = vmatpush1.msra.mxu0 0.0
  %567 = vmatprep.subr.mxu0 0.0
  %568 = vmatpush1.msra.mxu0 0.0
  %569 = vmatprep.subr.mxu0 0.0
  %570 = vmatpush1.msra.mxu0 0.0
  %571 = vmatprep.subr.mxu0 0.0
  %572 = vmatpush1.msra.mxu0 0.0
  %573 = vmatprep.subr.mxu0 0.0
  %574 = vmatpush1.msra.mxu0 0.0
  %575 = vmatprep.subr.mxu0 0.0
  %576 = vmatpush1.msra.mxu0 0.0
  %577 = vmatprep.subr.mxu0 0.0
  %578 = vmatpush1.msra.mxu0 0.0
  %579 = vmatprep.subr.mxu0 0.0
  %580 = vmatpush1.msra.mxu0 0.0
  %581 = vmatprep.subr.mxu0 0.0
  %582 = vmatpush1.msra.mxu0 0.0
  %583 = vmatprep.subr.mxu0 0.0
  %584 = vmatpush1.msra.mxu0 0.0
  %585 = vmatprep.subr.mxu0 0.0
  %586 = vmatpush1.msra.mxu0 0.0
  %587 = vmatprep.subr.mxu0 0.0
  %588 = vmatpush1.msra.mxu0 0.0
  %589 = vmatprep.subr.mxu0 0.0
  %590 = vmatpush1.msra.mxu0 0.0
  %591 = vmatprep.subr.mxu0 0.0
  %592 = vmatpush1.msra.mxu0 0.0
  %593 = vmatprep.subr.mxu0 0.0
  %594 = vmatpush1.msra.mxu0 0.0
  %595 = vmatprep.subr.mxu0 0.0
  %596 = vmatpush1.msra.mxu0 0.0
  %597 = vmatprep.subr.mxu0 0.0
  %598 = vmatpush1.msra.mxu0 0.0
  %599 = vmatprep.subr.mxu0 0.0
  %600 = vmatpush1.msra.mxu0 0.0
  %601 = vmatprep.subr.mxu0 0.0
  %602 = vmatpush1.msra.mxu0 0.0
  %603 = vmatprep.subr.mxu0 0.0
  %604 = vmatpush1.msra.mxu0 0.0
  %605 = vmatprep.subr.mxu0 0.0
  %606 = vmatpush1.msra.mxu0 0.0
  %607 = vmatprep.subr.mxu0 0.0
  %608 = vmatpush1.msra.mxu0 0.0
  %609 = vmatprep.subr.mxu0 0.0
  %610 = vmatpush1.msra.mxu0 0.0
  %611 = vmatprep.subr.mxu0 0.0
  %612 = vmatpush1.msra.mxu0 0.0
  %613 = vmatprep.subr.mxu0 0.0
  %614 = vmatpush1.msra.mxu0 0.0
  %615 = vmatprep.mubr.f32.mxu0 0.0
  %v616 = vand.u32 %v545, 4294901760
  %v617 = vsub.f32 %v545, %v616
  %v618 = vand.u32 %v617, 4294901760
  %v619 = vsub.f32 %v617, %v618
  %v620 = vand.u32 %v619, 4294901760
  %621 = vmatmul.mubr.f32.gmra.mrb[0].mxu0 %v620
  %v622 = vpop.f32.mrb[0].mxu0
  %v623 = vadd.f32 %v542, %v622
  %v624 = vpop.f32.mrb[0].mxu0
  %625 = vdwg.mxu0
  %626 = vmatprep.subr.mxu0 0.0
  %v627 = vand.u32 %v548, 4294901760
  %v628 = vsub.f32 %v548, %v627
  %v629 = vand.u32 %v628, 4294901760
  %v630 = vsub.f32 %v628, %v629
  %v631 = vand.u32 %v630, 4294901760
  %632 = vmatpush1.msra.mxu0 %v631
  %633 = vmatprep.subr.mxu0 0.0
  %634 = vmatpush1.msra.mxu0 0.0
  %635 = vmatprep.subr.mxu0 0.0
  %636 = vmatpush1.msra.mxu0 0.0
  %637 = vmatprep.subr.mxu0 0.0
  %638 = vmatpush1.msra.mxu0 0.0
  %639 = vmatprep.subr.mxu0 0.0
  %640 = vmatpush1.msra.mxu0 0.0
  %641 = vmatprep.subr.mxu0 0.0
  %642 = vmatpush1.msra.mxu0 0.0
  %643 = vmatprep.subr.mxu0 0.0
  %644 = vmatpush1.msra.mxu0 0.0
  %645 = vmatprep.subr.mxu0 0.0
  %646 = vmatpush1.msra.mxu0 0.0
  %647 = vmatprep.subr.mxu0 0.0
  %648 = vmatpush1.msra.mxu0 0.0
  %649 = vmatprep.subr.mxu0 0.0
  %650 = vmatpush1.msra.mxu0 0.0
  %651 = vmatprep.subr.mxu0 0.0
  %652 = vmatpush1.msra.mxu0 0.0
  %653 = vmatprep.subr.mxu0 0.0
  %654 = vmatpush1.msra.mxu0 0.0
  %655 = vmatprep.subr.mxu0 0.0
  %656 = vmatpush1.msra.mxu0 0.0
  %657 = vmatprep.subr.mxu0 0.0
  %658 = vmatpush1.msra.mxu0 0.0
  %659 = vmatprep.subr.mxu0 0.0
  %660 = vmatpush1.msra.mxu0 0.0
  %661 = vmatprep.subr.mxu0 0.0
  %662 = vmatpush1.msra.mxu0 0.0
  %663 = vmatprep.subr.mxu0 0.0
  %664 = vmatpush1.msra.mxu0 0.0
  %665 = vmatprep.subr.mxu0 0.0
  %666 = vmatpush1.msra.mxu0 0.0
  %667 = vmatprep.subr.mxu0 0.0
  %668 = vmatpush1.msra.mxu0 0.0
  %669 = vmatprep.subr.mxu0 0.0
  %670 = vmatpush1.msra.mxu0 0.0
  %671 = vmatprep.subr.mxu0 0.0
  %672 = vmatpush1.msra.mxu0 0.0
  %673 = vmatprep.subr.mxu0 0.0
  %674 = vmatpush1.msra.mxu0 0.0
  %675 = vmatprep.subr.mxu0 0.0
  %676 = vmatpush1.msra.mxu0 0.0
  %677 = vmatprep.subr.mxu0 0.0
  %678 = vmatpush1.msra.mxu0 0.0
  %679 = vmatprep.subr.mxu0 0.0
  %680 = vmatpush1.msra.mxu0 0.0
  %681 = vmatprep.subr.mxu0 0.0
  %682 = vmatpush1.msra.mxu0 0.0
  %683 = vmatprep.subr.mxu0 0.0
  %684 = vmatpush1.msra.mxu0 0.0
  %685 = vmatprep.subr.mxu0 0.0
  %686 = vmatpush1.msra.mxu0 0.0
  %687 = vmatprep.subr.mxu0 0.0
  %688 = vmatpush1.msra.mxu0 0.0
  %689 = vmatprep.subr.mxu0 0.0
  %690 = vmatpush1.msra.mxu0 0.0
  %691 = vmatprep.subr.mxu0 0.0
  %692 = vmatpush1.msra.mxu0 0.0
  %693 = vmatprep.subr.mxu0 0.0
  %694 = vmatpush1.msra.mxu0 0.0
  %695 = vmatprep.mubr.f32.mxu0 0.0
  %v696 = vand.u32 %v545, 4294901760
  %697 = vmatmul.mubr.f32.gmra.mrb[0].mxu0 %v696
  %v698 = vpop.f32.mrb[0].mxu0
  %v699 = vadd.f32 %v623, %v698
  %v700 = vpop.f32.mrb[0].mxu0
  %701 = vdwg.mxu0
  %702 = vmatprep.subr.mxu0 0.0
  %v703 = vand.u32 %v548, 4294901760
  %v704 = vsub.f32 %v548, %v703
  %705 = vmatpush1.msra.mxu0 %v704
  %706 = vmatprep.subr.mxu0 0.0
  %707 = vmatpush1.msra.mxu0 0.0
  %708 = vmatprep.subr.mxu0 0.0
  %709 = vmatpush1.msra.mxu0 0.0
  %710 = vmatprep.subr.mxu0 0.0
  %711 = vmatpush1.msra.mxu0 0.0
  %712 = vmatprep.subr.mxu0 0.0
  %713 = vmatpush1.msra.mxu0 0.0
  %714 = vmatprep.subr.mxu0 0.0
  %715 = vmatpush1.msra.mxu0 0.0
  %716 = vmatprep.subr.mxu0 0.0
  %717 = vmatpush1.msra.mxu0 0.0
  %718 = vmatprep.subr.mxu0 0.0
  %719 = vmatpush1.msra.mxu0 0.0
  %720 = vmatprep.subr.mxu0 0.0
  %721 = vmatpush1.msra.mxu0 0.0
  %722 = vmatprep.subr.mxu0 0.0
  %723 = vmatpush1.msra.mxu0 0.0
  %724 = vmatprep.subr.mxu0 0.0
  %725 = vmatpush1.msra.mxu0 0.0
  %726 = vmatprep.subr.mxu0 0.0
  %727 = vmatpush1.msra.mxu0 0.0
  %728 = vmatprep.subr.mxu0 0.0
  %729 = vmatpush1.msra.mxu0 0.0
  %730 = vmatprep.subr.mxu0 0.0
  %731 = vmatpush1.msra.mxu0 0.0
  %732 = vmatprep.subr.mxu0 0.0
  %733 = vmatpush1.msra.mxu0 0.0
  %734 = vmatprep.subr.mxu0 0.0
  %735 = vmatpush1.msra.mxu0 0.0
  %736 = vmatprep.subr.mxu0 0.0
  %737 = vmatpush1.msra.mxu0 0.0
  %738 = vmatprep.subr.mxu0 0.0
  %739 = vmatpush1.msra.mxu0 0.0
  %740 = vmatprep.subr.mxu0 0.0
  %741 = vmatpush1.msra.mxu0 0.0
  %742 = vmatprep.subr.mxu0 0.0
  %743 = vmatpush1.msra.mxu0 0.0
  %744 = vmatprep.subr.mxu0 0.0
  %745 = vmatpush1.msra.mxu0 0.0
  %746 = vmatprep.subr.mxu0 0.0
  %747 = vmatpush1.msra.mxu0 0.0
  %748 = vmatprep.subr.mxu0 0.0
  %749 = vmatpush1.msra.mxu0 0.0
  %750 = vmatprep.subr.mxu0 0.0
  %751 = vmatpush1.msra.mxu0 0.0
  %752 = vmatprep.subr.mxu0 0.0
  %753 = vmatpush1.msra.mxu0 0.0
  %754 = vmatprep.subr.mxu0 0.0
  %755 = vmatpush1.msra.mxu0 0.0
  %756 = vmatprep.subr.mxu0 0.0
  %757 = vmatpush1.msra.mxu0 0.0
  %758 = vmatprep.subr.mxu0 0.0
  %759 = vmatpush1.msra.mxu0 0.0
  %760 = vmatprep.subr.mxu0 0.0
  %761 = vmatpush1.msra.mxu0 0.0
  %762 = vmatprep.subr.mxu0 0.0
  %763 = vmatpush1.msra.mxu0 0.0
  %764 = vmatprep.subr.mxu0 0.0
  %765 = vmatpush1.msra.mxu0 0.0
  %766 = vmatprep.subr.mxu0 0.0
  %767 = vmatpush1.msra.mxu0 0.0
  %768 = vmatprep.mubr.f32.mxu0 0.0
  %v769 = vand.u32 %v545, 4294901760
  %v770 = vsub.f32 %v545, %v769
  %771 = vmatmul.mubr.f32.gmra.mrb[0].mxu0 %v770
  %v772 = vpop.f32.mrb[0].mxu0
  %v773 = vadd.f32 %v699, %v772
  %v774 = vpop.f32.mrb[0].mxu0
  %775 = vdwg.mxu0
  %776 = vmatprep.subr.mxu0 0.0
  %v777 = vand.u32 %v548, 4294901760
  %778 = vmatpush1.msra.mxu0 %v777
  %779 = vmatprep.subr.mxu0 0.0
  %780 = vmatpush1.msra.mxu0 0.0
  %781 = vmatprep.subr.mxu0 0.0
  %782 = vmatpush1.msra.mxu0 0.0
  %783 = vmatprep.subr.mxu0 0.0
  %784 = vmatpush1.msra.mxu0 0.0
  %785 = vmatprep.subr.mxu0 0.0
  %786 = vmatpush1.msra.mxu0 0.0
  %787 = vmatprep.subr.mxu0 0.0
  %788 = vmatpush1.msra.mxu0 0.0
  %789 = vmatprep.subr.mxu0 0.0
  %790 = vmatpush1.msra.mxu0 0.0
  %791 = vmatprep.subr.mxu0 0.0
  %792 = vmatpush1.msra.mxu0 0.0
  %793 = vmatprep.subr.mxu0 0.0
  %794 = vmatpush1.msra.mxu0 0.0
  %795 = vmatprep.subr.mxu0 0.0
  %796 = vmatpush1.msra.mxu0 0.0
  %797 = vmatprep.subr.mxu0 0.0
  %798 = vmatpush1.msra.mxu0 0.0
  %799 = vmatprep.subr.mxu0 0.0
  %800 = vmatpush1.msra.mxu0 0.0
  %801 = vmatprep.subr.mxu0 0.0
  %802 = vmatpush1.msra.mxu0 0.0
  %803 = vmatprep.subr.mxu0 0.0
  %804 = vmatpush1.msra.mxu0 0.0
  %805 = vmatprep.subr.mxu0 0.0
  %806 = vmatpush1.msra.mxu0 0.0
  %807 = vmatprep.subr.mxu0 0.0
  %808 = vmatpush1.msra.mxu0 0.0
  %809 = vmatprep.subr.mxu0 0.0
  %810 = vmatpush1.msra.mxu0 0.0
  %811 = vmatprep.subr.mxu0 0.0
  %812 = vmatpush1.msra.mxu0 0.0
  %813 = vmatprep.subr.mxu0 0.0
  %814 = vmatpush1.msra.mxu0 0.0
  %815 = vmatprep.subr.mxu0 0.0
  %816 = vmatpush1.msra.mxu0 0.0
  %817 = vmatprep.subr.mxu0 0.0
  %818 = vmatpush1.msra.mxu0 0.0
  %819 = vmatprep.subr.mxu0 0.0
  %820 = vmatpush1.msra.mxu0 0.0
  %821 = vmatprep.subr.mxu0 0.0
  %822 = vmatpush1.msra.mxu0 0.0
  %823 = vmatprep.subr.mxu0 0.0
  %824 = vmatpush1.msra.mxu0 0.0
  %825 = vmatprep.subr.mxu0 0.0
  %826 = vmatpush1.msra.mxu0 0.0
  %827 = vmatprep.subr.mxu0 0.0
  %828 = vmatpush1.msra.mxu0 0.0
  %829 = vmatprep.subr.mxu0 0.0
  %830 = vmatpush1.msra.mxu0 0.0
  %831 = vmatprep.subr.mxu0 0.0
  %832 = vmatpush1.msra.mxu0 0.0
  %833 = vmatprep.subr.mxu0 0.0
  %834 = vmatpush1.msra.mxu0 0.0
  %835 = vmatprep.subr.mxu0 0.0
  %836 = vmatpush1.msra.mxu0 0.0
  %837 = vmatprep.subr.mxu0 0.0
  %838 = vmatpush1.msra.mxu0 0.0
  %839 = vmatprep.subr.mxu0 0.0
  %840 = vmatpush1.msra.mxu0 0.0
  %841 = vmatprep.mubr.f32.mxu0 0.0
  %v842 = vand.u32 %v545, 4294901760
  %v843 = vsub.f32 %v545, %v842
  %v844 = vand.u32 %v843, 4294901760
  %845 = vmatmul.mubr.f32.gmra.mrb[0].mxu0 %v844
  %v846 = vpop.f32.mrb[0].mxu0
  %v847 = vadd.f32 %v773, %v846
  %v848 = vpop.f32.mrb[0].mxu0
  %849 = vdwg.mxu0
  %850 = vmatprep.subr.mxu0 0.0
  %v851 = vand.u32 %v548, 4294901760
  %v852 = vsub.f32 %v548, %v851
  %v853 = vand.u32 %v852, 4294901760
  %854 = vmatpush1.msra.mxu0 %v853
  %855 = vmatprep.subr.mxu0 0.0
  %856 = vmatpush1.msra.mxu0 0.0
  %857 = vmatprep.subr.mxu0 0.0
  %858 = vmatpush1.msra.mxu0 0.0
  %859 = vmatprep.subr.mxu0 0.0
  %860 = vmatpush1.msra.mxu0 0.0
  %861 = vmatprep.subr.mxu0 0.0
  %862 = vmatpush1.msra.mxu0 0.0
  %863 = vmatprep.subr.mxu0 0.0
  %864 = vmatpush1.msra.mxu0 0.0
  %865 = vmatprep.subr.mxu0 0.0
  %866 = vmatpush1.msra.mxu0 0.0
  %867 = vmatprep.subr.mxu0 0.0
  %868 = vmatpush1.msra.mxu0 0.0
  %869 = vmatprep.subr.mxu0 0.0
  %870 = vmatpush1.msra.mxu0 0.0
  %871 = vmatprep.subr.mxu0 0.0
  %872 = vmatpush1.msra.mxu0 0.0
  %873 = vmatprep.subr.mxu0 0.0
  %874 = vmatpush1.msra.mxu0 0.0
  %875 = vmatprep.subr.mxu0 0.0
  %876 = vmatpush1.msra.mxu0 0.0
  %877 = vmatprep.subr.mxu0 0.0
  %878 = vmatpush1.msra.mxu0 0.0
  %879 = vmatprep.subr.mxu0 0.0
  %880 = vmatpush1.msra.mxu0 0.0
  %881 = vmatprep.subr.mxu0 0.0
  %882 = vmatpush1.msra.mxu0 0.0
  %883 = vmatprep.subr.mxu0 0.0
  %884 = vmatpush1.msra.mxu0 0.0
  %885 = vmatprep.subr.mxu0 0.0
  %886 = vmatpush1.msra.mxu0 0.0
  %887 = vmatprep.subr.mxu0 0.0
  %888 = vmatpush1.msra.mxu0 0.0
  %889 = vmatprep.subr.mxu0 0.0
  %890 = vmatpush1.msra.mxu0 0.0
  %891 = vmatprep.subr.mxu0 0.0
  %892 = vmatpush1.msra.mxu0 0.0
  %893 = vmatprep.subr.mxu0 0.0
  %894 = vmatpush1.msra.mxu0 0.0
  %895 = vmatprep.subr.mxu0 0.0
  %896 = vmatpush1.msra.mxu0 0.0
  %897 = vmatprep.subr.mxu0 0.0
  %898 = vmatpush1.msra.mxu0 0.0
  %899 = vmatprep.subr.mxu0 0.0
  %900 = vmatpush1.msra.mxu0 0.0
  %901 = vmatprep.subr.mxu0 0.0
  %902 = vmatpush1.msra.mxu0 0.0
  %903 = vmatprep.subr.mxu0 0.0
  %904 = vmatpush1.msra.mxu0 0.0
  %905 = vmatprep.subr.mxu0 0.0
  %906 = vmatpush1.msra.mxu0 0.0
  %907 = vmatprep.subr.mxu0 0.0
  %908 = vmatpush1.msra.mxu0 0.0
  %909 = vmatprep.subr.mxu0 0.0
  %910 = vmatpush1.msra.mxu0 0.0
  %911 = vmatprep.subr.mxu0 0.0
  %912 = vmatpush1.msra.mxu0 0.0
  %913 = vmatprep.subr.mxu0 0.0
  %914 = vmatpush1.msra.mxu0 0.0
  %915 = vmatprep.subr.mxu0 0.0
  %916 = vmatpush1.msra.mxu0 0.0
  %917 = vmatprep.mubr.f32.mxu0 0.0
  %v918 = vand.u32 %v545, 4294901760
  %919 = vmatmul.mubr.f32.gmra.mrb[0].mxu0 %v918
  %v920 = vpop.f32.mrb[0].mxu0
  %v921 = vadd.f32 %v847, %v920
  %v922 = vpop.f32.mrb[0].mxu0
  %923 = vdwg.mxu0
  %924 = vmatprep.subr.mxu0 0.0
  %v925 = vand.u32 %v548, 4294901760
  %926 = vmatpush1.msra.mxu0 %v925
  %927 = vmatprep.subr.mxu0 0.0
  %928 = vmatpush1.msra.mxu0 0.0
  %929 = vmatprep.subr.mxu0 0.0
  %930 = vmatpush1.msra.mxu0 0.0
  %931 = vmatprep.subr.mxu0 0.0
  %932 = vmatpush1.msra.mxu0 0.0
  %933 = vmatprep.subr.mxu0 0.0
  %934 = vmatpush1.msra.mxu0 0.0
  %935 = vmatprep.subr.mxu0 0.0
  %936 = vmatpush1.msra.mxu0 0.0
  %937 = vmatprep.subr.mxu0 0.0
  %938 = vmatpush1.msra.mxu0 0.0
  %939 = vmatprep.subr.mxu0 0.0
  %940 = vmatpush1.msra.mxu0 0.0
  %941 = vmatprep.subr.mxu0 0.0
  %942 = vmatpush1.msra.mxu0 0.0
  %943 = vmatprep.subr.mxu0 0.0
  %944 = vmatpush1.msra.mxu0 0.0
  %945 = vmatprep.subr.mxu0 0.0
  %946 = vmatpush1.msra.mxu0 0.0
  %947 = vmatprep.subr.mxu0 0.0
  %948 = vmatpush1.msra.mxu0 0.0
  %949 = vmatprep.subr.mxu0 0.0
  %950 = vmatpush1.msra.mxu0 0.0
  %951 = vmatprep.subr.mxu0 0.0
  %952 = vmatpush1.msra.mxu0 0.0
  %953 = vmatprep.subr.mxu0 0.0
  %954 = vmatpush1.msra.mxu0 0.0
  %955 = vmatprep.subr.mxu0 0.0
  %956 = vmatpush1.msra.mxu0 0.0
  %957 = vmatprep.subr.mxu0 0.0
  %958 = vmatpush1.msra.mxu0 0.0
  %959 = vmatprep.subr.mxu0 0.0
  %960 = vmatpush1.msra.mxu0 0.0
  %961 = vmatprep.subr.mxu0 0.0
  %962 = vmatpush1.msra.mxu0 0.0
  %963 = vmatprep.subr.mxu0 0.0
  %964 = vmatpush1.msra.mxu0 0.0
  %965 = vmatprep.subr.mxu0 0.0
  %966 = vmatpush1.msra.mxu0 0.0
  %967 = vmatprep.subr.mxu0 0.0
  %968 = vmatpush1.msra.mxu0 0.0
  %969 = vmatprep.subr.mxu0 0.0
  %970 = vmatpush1.msra.mxu0 0.0
  %971 = vmatprep.subr.mxu0 0.0
  %972 = vmatpush1.msra.mxu0 0.0
  %973 = vmatprep.subr.mxu0 0.0
  %974 = vmatpush1.msra.mxu0 0.0
  %975 = vmatprep.subr.mxu0 0.0
  %976 = vmatpush1.msra.mxu0 0.0
  %977 = vmatprep.subr.mxu0 0.0
  %978 = vmatpush1.msra.mxu0 0.0
  %979 = vmatprep.subr.mxu0 0.0
  %980 = vmatpush1.msra.mxu0 0.0
  %981 = vmatprep.subr.mxu0 0.0
  %982 = vmatpush1.msra.mxu0 0.0
  %983 = vmatprep.subr.mxu0 0.0
  %984 = vmatpush1.msra.mxu0 0.0
  %985 = vmatprep.subr.mxu0 0.0
  %986 = vmatpush1.msra.mxu0 0.0
  %987 = vmatprep.subr.mxu0 0.0
  %988 = vmatpush1.msra.mxu0 0.0
  %989 = vmatprep.mubr.f32.mxu0 0.0
  %v990 = vand.u32 %v545, 4294901760
  %991 = vmatmul.mubr.f32.gmra.mrb[0].mxu0 %v990
  %v992 = vpop.f32.mrb[0].mxu0
  %v993 = vadd.f32 %v921, %v992
  %v994 = vpop.f32.mrb[0].mxu0
  %995 = vdwg.mxu0
  %v996 = vld [vmem:[%s6] sm:$0xff]
  %v997 = vld [vmem:[%s6 + $0x8] sm:$0xff]
  %v998 = vld [vmem:[%s6 + $0x10] sm:$0x3]
  %vm999 = vcmask 146432
  %v1001 = vsel %vm999, %v66, 0
  %vm1003 = vcmask 1041408
  %v1005 = vsel %vm1003, %v998, 0
  %1007 = vmatprep.subr.mxu0 0.0
  %v1008 = vand.u32 %v996, 4294901760
  %1009 = vmatpush1.msra.mxu0 %v1008
  %1010 = vmatprep.subr.mxu0 0.0
  %v1011 = vand.u32 %v997, 4294901760
  %1012 = vmatpush1.msra.mxu0 %v1011
  %1013 = vmatprep.subr.mxu0 0.0
  %v1014 = vand.u32 %v1005, 4294901760
  %1015 = vmatpush1.msra.mxu0 %v1014
  %1016 = vmatprep.subr.mxu0 0.0
  %1017 = vmatpush1.msra.mxu0 0.0
  %1018 = vmatprep.subr.mxu0 0.0
  %1019 = vmatpush1.msra.mxu0 0.0
  %1020 = vmatprep.subr.mxu0 0.0
  %1021 = vmatpush1.msra.mxu0 0.0
  %1022 = vmatprep.subr.mxu0 0.0
  %1023 = vmatpush1.msra.mxu0 0.0
  %1024 = vmatprep.subr.mxu0 0.0
  %1025 = vmatpush1.msra.mxu0 0.0
  %1026 = vmatprep.subr.mxu0 0.0
  %1027 = vmatpush1.msra.mxu0 0.0
  %1028 = vmatprep.subr.mxu0 0.0
  %1029 = vmatpush1.msra.mxu0 0.0
  %1030 = vmatprep.subr.mxu0 0.0
  %1031 = vmatpush1.msra.mxu0 0.0
  %1032 = vmatprep.subr.mxu0 0.0
  %1033 = vmatpush1.msra.mxu0 0.0
  %1034 = vmatprep.subr.mxu0 0.0
  %1035 = vmatpush1.msra.mxu0 0.0
  %1036 = vmatprep.subr.mxu0 0.0
  %1037 = vmatpush1.msra.mxu0 0.0
  %1038 = vmatprep.subr.mxu0 0.0
  %1039 = vmatpush1.msra.mxu0 0.0
  %1040 = vmatprep.subr.mxu0 0.0
  %1041 = vmatpush1.msra.mxu0 0.0
  %1042 = vmatprep.subr.mxu0 0.0
  %1043 = vmatpush1.msra.mxu0 0.0
  %1044 = vmatprep.subr.mxu0 0.0
  %1045 = vmatpush1.msra.mxu0 0.0
  %1046 = vmatprep.subr.mxu0 0.0
  %1047 = vmatpush1.msra.mxu0 0.0
  %1048 = vmatprep.subr.mxu0 0.0
  %1049 = vmatpush1.msra.mxu0 0.0
  %1050 = vmatprep.subr.mxu0 0.0
  %1051 = vmatpush1.msra.mxu0 0.0
  %1052 = vmatprep.subr.mxu0 0.0
  %1053 = vmatpush1.msra.mxu0 0.0
  %1054 = vmatprep.subr.mxu0 0.0
  %1055 = vmatpush1.msra.mxu0 0.0
  %1056 = vmatprep.subr.mxu0 0.0
  %1057 = vmatpush1.msra.mxu0 0.0
  %1058 = vmatprep.subr.mxu0 0.0
  %1059 = vmatpush1.msra.mxu0 0.0
  %1060 = vmatprep.subr.mxu0 0.0
  %1061 = vmatpush1.msra.mxu0 0.0
  %1062 = vmatprep.subr.mxu0 0.0
  %1063 = vmatpush1.msra.mxu0 0.0
  %1064 = vmatprep.subr.mxu0 0.0
  %1065 = vmatpush1.msra.mxu0 0.0
  %1066 = vmatprep.subr.mxu0 0.0
  %1067 = vmatpush1.msra.mxu0 0.0
  %1068 = vmatprep.subr.mxu0 0.0
  %1069 = vmatpush1.msra.mxu0 0.0
  %1070 = vmatprep.subr.mxu0 0.0
  %1071 = vmatpush1.msra.mxu0 0.0
  %1072 = vmatprep.subr.mxu0 0.0
  %1073 = vmatpush1.msra.mxu0 0.0
  %1074 = vmatprep.mubr.f32.mxu0 0.0
  %v1075 = vand.u32 %v1001, 4294901760
  %v1076 = vsub.f32 %v1001, %v1075
  %v1077 = vand.u32 %v1076, 4294901760
  %v1078 = vsub.f32 %v1076, %v1077
  %v1079 = vand.u32 %v1078, 4294901760
  %1080 = vmatmul.mubr.f32.gmra.mrb[0].mxu0 %v1079
  %v1081 = vpop.f32.mrb[0].mxu0
  %v1082 = vadd.f32 0.0, %v1081
  %v1083 = vpop.f32.mrb[0].mxu0
  %1084 = vdwg.mxu0
  %1085 = vmatprep.subr.mxu0 0.0
  %v1086 = vand.u32 %v996, 4294901760
  %v1087 = vsub.f32 %v996, %v1086
  %v1088 = vand.u32 %v1087, 4294901760
  %v1089 = vsub.f32 %v1087, %v1088
  %v1090 = vand.u32 %v1089, 4294901760
  %1091 = vmatpush1.msra.mxu0 %v1090
  %1092 = vmatprep.subr.mxu0 0.0
  %v1093 = vand.u32 %v997, 4294901760
  %v1094 = vsub.f32 %v997, %v1093
  %v1095 = vand.u32 %v1094, 4294901760
  %v1096 = vsub.f32 %v1094, %v1095
  %v1097 = vand.u32 %v1096, 4294901760
  %1098 = vmatpush1.msra.mxu0 %v1097
  %1099 = vmatprep.subr.mxu0 0.0
  %v1100 = vand.u32 %v1005, 4294901760
  %v1101 = vsub.f32 %v1005, %v1100
  %v1102 = vand.u32 %v1101, 4294901760
  %v1103 = vsub.f32 %v1101, %v1102
  %v1104 = vand.u32 %v1103, 4294901760
  %1105 = vmatpush1.msra.mxu0 %v1104
  %1106 = vmatprep.subr.mxu0 0.0
  %1107 = vmatpush1.msra.mxu0 0.0
  %1108 = vmatprep.subr.mxu0 0.0
  %1109 = vmatpush1.msra.mxu0 0.0
  %1110 = vmatprep.subr.mxu0 0.0
  %1111 = vmatpush1.msra.mxu0 0.0
  %1112 = vmatprep.subr.mxu0 0.0
  %1113 = vmatpush1.msra.mxu0 0.0
  %1114 = vmatprep.subr.mxu0 0.0
  %1115 = vmatpush1.msra.mxu0 0.0
  %1116 = vmatprep.subr.mxu0 0.0
  %1117 = vmatpush1.msra.mxu0 0.0
  %1118 = vmatprep.subr.mxu0 0.0
  %1119 = vmatpush1.msra.mxu0 0.0
  %1120 = vmatprep.subr.mxu0 0.0
  %1121 = vmatpush1.msra.mxu0 0.0
  %1122 = vmatprep.subr.mxu0 0.0
  %1123 = vmatpush1.msra.mxu0 0.0
  %1124 = vmatprep.subr.mxu0 0.0
  %1125 = vmatpush1.msra.mxu0 0.0
  %1126 = vmatprep.subr.mxu0 0.0
  %1127 = vmatpush1.msra.mxu0 0.0
  %1128 = vmatprep.subr.mxu0 0.0
  %1129 = vmatpush1.msra.mxu0 0.0
  %1130 = vmatprep.subr.mxu0 0.0
  %1131 = vmatpush1.msra.mxu0 0.0
  %1132 = vmatprep.subr.mxu0 0.0
  %1133 = vmatpush1.msra.mxu0 0.0
  %1134 = vmatprep.subr.mxu0 0.0
  %1135 = vmatpush1.msra.mxu0 0.0
  %1136 = vmatprep.subr.mxu0 0.0
  %1137 = vmatpush1.msra.mxu0 0.0
  %1138 = vmatprep.subr.mxu0 0.0
  %1139 = vmatpush1.msra.mxu0 0.0
  %1140 = vmatprep.subr.mxu0 0.0
  %1141 = vmatpush1.msra.mxu0 0.0
  %1142 = vmatprep.subr.mxu0 0.0
  %1143 = vmatpush1.msra.mxu0 0.0
  %1144 = vmatprep.subr.mxu0 0.0
  %1145 = vmatpush1.msra.mxu0 0.0
  %1146 = vmatprep.subr.mxu0 0.0
  %1147 = vmatpush1.msra.mxu0 0.0
  %1148 = vmatprep.subr.mxu0 0.0
  %1149 = vmatpush1.msra.mxu0 0.0
  %1150 = vmatprep.subr.mxu0 0.0
  %1151 = vmatpush1.msra.mxu0 0.0
  %1152 = vmatprep.subr.mxu0 0.0
  %1153 = vmatpush1.msra.mxu0 0.0
  %1154 = vmatprep.subr.mxu0 0.0
  %1155 = vmatpush1.msra.mxu0 0.0
  %1156 = vmatprep.subr.mxu0 0.0
  %1157 = vmatpush1.msra.mxu0 0.0
  %1158 = vmatprep.subr.mxu0 0.0
  %1159 = vmatpush1.msra.mxu0 0.0
  %1160 = vmatprep.subr.mxu0 0.0
  %1161 = vmatpush1.msra.mxu0 0.0
  %1162 = vmatprep.subr.mxu0 0.0
  %1163 = vmatpush1.msra.mxu0 0.0
  %1164 = vmatprep.mubr.f32.mxu0 0.0
  %v1165 = vand.u32 %v1001, 4294901760
  %1166 = vmatmul.mubr.f32.gmra.mrb[0].mxu0 %v1165
  %v1167 = vpop.f32.mrb[0].mxu0
  %v1168 = vadd.f32 %v1082, %v1167
  %v1169 = vpop.f32.mrb[0].mxu0
  %1170 = vdwg.mxu0
  %1171 = vmatprep.subr.mxu0 0.0
  %v1172 = vand.u32 %v996, 4294901760
  %v1173 = vsub.f32 %v996, %v1172
  %1174 = vmatpush1.msra.mxu0 %v1173
  %1175 = vmatprep.subr.mxu0 0.0
  %v1176 = vand.u32 %v997, 4294901760
  %v1177 = vsub.f32 %v997, %v1176
  %1178 = vmatpush1.msra.mxu0 %v1177
  %1179 = vmatprep.subr.mxu0 0.0
  %v1180 = vand.u32 %v1005, 4294901760
  %v1181 = vsub.f32 %v1005, %v1180
  %1182 = vmatpush1.msra.mxu0 %v1181
  %1183 = vmatprep.subr.mxu0 0.0
  %1184 = vmatpush1.msra.mxu0 0.0
  %1185 = vmatprep.subr.mxu0 0.0
  %1186 = vmatpush1.msra.mxu0 0.0
  %1187 = vmatprep.subr.mxu0 0.0
  %1188 = vmatpush1.msra.mxu0 0.0
  %1189 = vmatprep.subr.mxu0 0.0
  %1190 = vmatpush1.msra.mxu0 0.0
  %1191 = vmatprep.subr.mxu0 0.0
  %1192 = vmatpush1.msra.mxu0 0.0
  %1193 = vmatprep.subr.mxu0 0.0
  %1194 = vmatpush1.msra.mxu0 0.0
  %1195 = vmatprep.subr.mxu0 0.0
  %1196 = vmatpush1.msra.mxu0 0.0
  %1197 = vmatprep.subr.mxu0 0.0
  %1198 = vmatpush1.msra.mxu0 0.0
  %1199 = vmatprep.subr.mxu0 0.0
  %1200 = vmatpush1.msra.mxu0 0.0
  %1201 = vmatprep.subr.mxu0 0.0
  %1202 = vmatpush1.msra.mxu0 0.0
  %1203 = vmatprep.subr.mxu0 0.0
  %1204 = vmatpush1.msra.mxu0 0.0
  %1205 = vmatprep.subr.mxu0 0.0
  %1206 = vmatpush1.msra.mxu0 0.0
  %1207 = vmatprep.subr.mxu0 0.0
  %1208 = vmatpush1.msra.mxu0 0.0
  %1209 = vmatprep.subr.mxu0 0.0
  %1210 = vmatpush1.msra.mxu0 0.0
  %1211 = vmatprep.subr.mxu0 0.0
  %1212 = vmatpush1.msra.mxu0 0.0
  %1213 = vmatprep.subr.mxu0 0.0
  %1214 = vmatpush1.msra.mxu0 0.0
  %1215 = vmatprep.subr.mxu0 0.0
  %1216 = vmatpush1.msra.mxu0 0.0
  %1217 = vmatprep.subr.mxu0 0.0
  %1218 = vmatpush1.msra.mxu0 0.0
  %1219 = vmatprep.subr.mxu0 0.0
  %1220 = vmatpush1.msra.mxu0 0.0
  %1221 = vmatprep.subr.mxu0 0.0
  %1222 = vmatpush1.msra.mxu0 0.0
  %1223 = vmatprep.subr.mxu0 0.0
  %1224 = vmatpush1.msra.mxu0 0.0
  %1225 = vmatprep.subr.mxu0 0.0
  %1226 = vmatpush1.msra.mxu0 0.0
  %1227 = vmatprep.subr.mxu0 0.0
  %1228 = vmatpush1.msra.mxu0 0.0
  %1229 = vmatprep.subr.mxu0 0.0
  %1230 = vmatpush1.msra.mxu0 0.0
  %1231 = vmatprep.subr.mxu0 0.0
  %1232 = vmatpush1.msra.mxu0 0.0
  %1233 = vmatprep.subr.mxu0 0.0
  %1234 = vmatpush1.msra.mxu0 0.0
  %1235 = vmatprep.subr.mxu0 0.0
  %1236 = vmatpush1.msra.mxu0 0.0
  %1237 = vmatprep.subr.mxu0 0.0
  %1238 = vmatpush1.msra.mxu0 0.0
  %1239 = vmatprep.subr.mxu0 0.0
  %1240 = vmatpush1.msra.mxu0 0.0
  %1241 = vmatprep.mubr.f32.mxu0 0.0
  %v1242 = vand.u32 %v1001, 4294901760
  %v1243 = vsub.f32 %v1001, %v1242
  %1244 = vmatmul.mubr.f32.gmra.mrb[0].mxu0 %v1243
  %v1245 = vpop.f32.mrb[0].mxu0
  %v1246 = vadd.f32 %v1168, %v1245
  %v1247 = vpop.f32.mrb[0].mxu0
  %1248 = vdwg.mxu0
  %1249 = vmatprep.subr.mxu0 0.0
  %v1250 = vand.u32 %v996, 4294901760
  %1251 = vmatpush1.msra.mxu0 %v1250
  %1252 = vmatprep.subr.mxu0 0.0
  %v1253 = vand.u32 %v997, 4294901760
  %1254 = vmatpush1.msra.mxu0 %v1253
  %1255 = vmatprep.subr.mxu0 0.0
  %v1256 = vand.u32 %v1005, 4294901760
  %1257 = vmatpush1.msra.mxu0 %v1256
  %1258 = vmatprep.subr.mxu0 0.0
  %1259 = vmatpush1.msra.mxu0 0.0
  %1260 = vmatprep.subr.mxu0 0.0
  %1261 = vmatpush1.msra.mxu0 0.0
  %1262 = vmatprep.subr.mxu0 0.0
  %1263 = vmatpush1.msra.mxu0 0.0
  %1264 = vmatprep.subr.mxu0 0.0
  %1265 = vmatpush1.msra.mxu0 0.0
  %1266 = vmatprep.subr.mxu0 0.0
  %1267 = vmatpush1.msra.mxu0 0.0
  %1268 = vmatprep.subr.mxu0 0.0
  %1269 = vmatpush1.msra.mxu0 0.0
  %1270 = vmatprep.subr.mxu0 0.0
  %1271 = vmatpush1.msra.mxu0 0.0
  %1272 = vmatprep.subr.mxu0 0.0
  %1273 = vmatpush1.msra.mxu0 0.0
  %1274 = vmatprep.subr.mxu0 0.0
  %1275 = vmatpush1.msra.mxu0 0.0
  %1276 = vmatprep.subr.mxu0 0.0
  %1277 = vmatpush1.msra.mxu0 0.0
  %1278 = vmatprep.subr.mxu0 0.0
  %1279 = vmatpush1.msra.mxu0 0.0
  %1280 = vmatprep.subr.mxu0 0.0
  %1281 = vmatpush1.msra.mxu0 0.0
  %1282 = vmatprep.subr.mxu0 0.0
  %1283 = vmatpush1.msra.mxu0 0.0
  %1284 = vmatprep.subr.mxu0 0.0
  %1285 = vmatpush1.msra.mxu0 0.0
  %1286 = vmatprep.subr.mxu0 0.0
  %1287 = vmatpush1.msra.mxu0 0.0
  %1288 = vmatprep.subr.mxu0 0.0
  %1289 = vmatpush1.msra.mxu0 0.0
  %1290 = vmatprep.subr.mxu0 0.0
  %1291 = vmatpush1.msra.mxu0 0.0
  %1292 = vmatprep.subr.mxu0 0.0
  %1293 = vmatpush1.msra.mxu0 0.0
  %1294 = vmatprep.subr.mxu0 0.0
  %1295 = vmatpush1.msra.mxu0 0.0
  %1296 = vmatprep.subr.mxu0 0.0
  %1297 = vmatpush1.msra.mxu0 0.0
  %1298 = vmatprep.subr.mxu0 0.0
  %1299 = vmatpush1.msra.mxu0 0.0
  %1300 = vmatprep.subr.mxu0 0.0
  %1301 = vmatpush1.msra.mxu0 0.0
  %1302 = vmatprep.subr.mxu0 0.0
  %1303 = vmatpush1.msra.mxu0 0.0
  %1304 = vmatprep.subr.mxu0 0.0
  %1305 = vmatpush1.msra.mxu0 0.0
  %1306 = vmatprep.subr.mxu0 0.0
  %1307 = vmatpush1.msra.mxu0 0.0
  %1308 = vmatprep.subr.mxu0 0.0
  %1309 = vmatpush1.msra.mxu0 0.0
  %1310 = vmatprep.subr.mxu0 0.0
  %1311 = vmatpush1.msra.mxu0 0.0
  %1312 = vmatprep.subr.mxu0 0.0
  %1313 = vmatpush1.msra.mxu0 0.0
  %1314 = vmatprep.subr.mxu0 0.0
  %1315 = vmatpush1.msra.mxu0 0.0
  %1316 = vmatprep.mubr.f32.mxu0 0.0
  %v1317 = vand.u32 %v1001, 4294901760
  %v1318 = vsub.f32 %v1001, %v1317
  %v1319 = vand.u32 %v1318, 4294901760
  %1320 = vmatmul.mubr.f32.gmra.mrb[0].mxu0 %v1319
  %v1321 = vpop.f32.mrb[0].mxu0
  %v1322 = vadd.f32 %v1246, %v1321
  %v1323 = vpop.f32.mrb[0].mxu0
  %1324 = vdwg.mxu0
  %1325 = vmatprep.subr.mxu0 0.0
  %v1326 = vand.u32 %v996, 4294901760
  %v1327 = vsub.f32 %v996, %v1326
  %v1328 = vand.u32 %v1327, 4294901760
  %1329 = vmatpush1.msra.mxu0 %v1328
  %1330 = vmatprep.subr.mxu0 0.0
  %v1331 = vand.u32 %v997, 4294901760
  %v1332 = vsub.f32 %v997, %v1331
  %v1333 = vand.u32 %v1332, 4294901760
  %1334 = vmatpush1.msra.mxu0 %v1333
  %1335 = vmatprep.subr.mxu0 0.0
  %v1336 = vand.u32 %v1005, 4294901760
  %v1337 = vsub.f32 %v1005, %v1336
  %v1338 = vand.u32 %v1337, 4294901760
  %1339 = vmatpush1.msra.mxu0 %v1338
  %1340 = vmatprep.subr.mxu0 0.0
  %1341 = vmatpush1.msra.mxu0 0.0
  %1342 = vmatprep.subr.mxu0 0.0
  %1343 = vmatpush1.msra.mxu0 0.0
  %1344 = vmatprep.subr.mxu0 0.0
  %1345 = vmatpush1.msra.mxu0 0.0
  %1346 = vmatprep.subr.mxu0 0.0
  %1347 = vmatpush1.msra.mxu0 0.0
  %1348 = vmatprep.subr.mxu0 0.0
  %1349 = vmatpush1.msra.mxu0 0.0
  %1350 = vmatprep.subr.mxu0 0.0
  %1351 = vmatpush1.msra.mxu0 0.0
  %1352 = vmatprep.subr.mxu0 0.0
  %1353 = vmatpush1.msra.mxu0 0.0
  %1354 = vmatprep.subr.mxu0 0.0
  %1355 = vmatpush1.msra.mxu0 0.0
  %1356 = vmatprep.subr.mxu0 0.0
  %1357 = vmatpush1.msra.mxu0 0.0
  %1358 = vmatprep.subr.mxu0 0.0
  %1359 = vmatpush1.msra.mxu0 0.0
  %1360 = vmatprep.subr.mxu0 0.0
  %1361 = vmatpush1.msra.mxu0 0.0
  %1362 = vmatprep.subr.mxu0 0.0
  %1363 = vmatpush1.msra.mxu0 0.0
  %1364 = vmatprep.subr.mxu0 0.0
  %1365 = vmatpush1.msra.mxu0 0.0
  %1366 = vmatprep.subr.mxu0 0.0
  %1367 = vmatpush1.msra.mxu0 0.0
  %1368 = vmatprep.subr.mxu0 0.0
  %1369 = vmatpush1.msra.mxu0 0.0
  %1370 = vmatprep.subr.mxu0 0.0
  %1371 = vmatpush1.msra.mxu0 0.0
  %1372 = vmatprep.subr.mxu0 0.0
  %1373 = vmatpush1.msra.mxu0 0.0
  %1374 = vmatprep.subr.mxu0 0.0
  %1375 = vmatpush1.msra.mxu0 0.0
  %1376 = vmatprep.subr.mxu0 0.0
  %1377 = vmatpush1.msra.mxu0 0.0
  %1378 = vmatprep.subr.mxu0 0.0
  %1379 = vmatpush1.msra.mxu0 0.0
  %1380 = vmatprep.subr.mxu0 0.0
  %1381 = vmatpush1.msra.mxu0 0.0
  %1382 = vmatprep.subr.mxu0 0.0
  %1383 = vmatpush1.msra.mxu0 0.0
  %1384 = vmatprep.subr.mxu0 0.0
  %1385 = vmatpush1.msra.mxu0 0.0
  %1386 = vmatprep.subr.mxu0 0.0
  %1387 = vmatpush1.msra.mxu0 0.0
  %1388 = vmatprep.subr.mxu0 0.0
  %1389 = vmatpush1.msra.mxu0 0.0
  %1390 = vmatprep.subr.mxu0 0.0
  %1391 = vmatpush1.msra.mxu0 0.0
  %1392 = vmatprep.subr.mxu0 0.0
  %1393 = vmatpush1.msra.mxu0 0.0
  %1394 = vmatprep.subr.mxu0 0.0
  %1395 = vmatpush1.msra.mxu0 0.0
  %1396 = vmatprep.subr.mxu0 0.0
  %1397 = vmatpush1.msra.mxu0 0.0
  %1398 = vmatprep.mubr.f32.mxu0 0.0
  %v1399 = vand.u32 %v1001, 4294901760
  %1400 = vmatmul.mubr.f32.gmra.mrb[0].mxu0 %v1399
  %v1401 = vpop.f32.mrb[0].mxu0
  %v1402 = vadd.f32 %v1322, %v1401
  %v1403 = vpop.f32.mrb[0].mxu0
  %1404 = vdwg.mxu0
  %1405 = vmatprep.subr.mxu0 0.0
  %v1406 = vand.u32 %v996, 4294901760
  %1407 = vmatpush1.msra.mxu0 %v1406
  %1408 = vmatprep.subr.mxu0 0.0
  %v1409 = vand.u32 %v997, 4294901760
  %1410 = vmatpush1.msra.mxu0 %v1409
  %1411 = vmatprep.subr.mxu0 0.0
  %v1412 = vand.u32 %v1005, 4294901760
  %1413 = vmatpush1.msra.mxu0 %v1412
  %1414 = vmatprep.subr.mxu0 0.0
  %1415 = vmatpush1.msra.mxu0 0.0
  %1416 = vmatprep.subr.mxu0 0.0
  %1417 = vmatpush1.msra.mxu0 0.0
  %1418 = vmatprep.subr.mxu0 0.0
  %1419 = vmatpush1.msra.mxu0 0.0
  %1420 = vmatprep.subr.mxu0 0.0
  %1421 = vmatpush1.msra.mxu0 0.0
  %1422 = vmatprep.subr.mxu0 0.0
  %1423 = vmatpush1.msra.mxu0 0.0
  %1424 = vmatprep.subr.mxu0 0.0
  %1425 = vmatpush1.msra.mxu0 0.0
  %1426 = vmatprep.subr.mxu0 0.0
  %1427 = vmatpush1.msra.mxu0 0.0
  %1428 = vmatprep.subr.mxu0 0.0
  %1429 = vmatpush1.msra.mxu0 0.0
  %1430 = vmatprep.subr.mxu0 0.0
  %1431 = vmatpush1.msra.mxu0 0.0
  %1432 = vmatprep.subr.mxu0 0.0
  %1433 = vmatpush1.msra.mxu0 0.0
  %1434 = vmatprep.subr.mxu0 0.0
  %1435 = vmatpush1.msra.mxu0 0.0
  %1436 = vmatprep.subr.mxu0 0.0
  %1437 = vmatpush1.msra.mxu0 0.0
  %1438 = vmatprep.subr.mxu0 0.0
  %1439 = vmatpush1.msra.mxu0 0.0
  %1440 = vmatprep.subr.mxu0 0.0
  %1441 = vmatpush1.msra.mxu0 0.0
  %1442 = vmatprep.subr.mxu0 0.0
  %1443 = vmatpush1.msra.mxu0 0.0
  %1444 = vmatprep.subr.mxu0 0.0
  %1445 = vmatpush1.msra.mxu0 0.0
  %1446 = vmatprep.subr.mxu0 0.0
  %1447 = vmatpush1.msra.mxu0 0.0
  %1448 = vmatprep.subr.mxu0 0.0
  %1449 = vmatpush1.msra.mxu0 0.0
  %1450 = vmatprep.subr.mxu0 0.0
  %1451 = vmatpush1.msra.mxu0 0.0
  %1452 = vmatprep.subr.mxu0 0.0
  %1453 = vmatpush1.msra.mxu0 0.0
  %1454 = vmatprep.subr.mxu0 0.0
  %1455 = vmatpush1.msra.mxu0 0.0
  %1456 = vmatprep.subr.mxu0 0.0
  %1457 = vmatpush1.msra.mxu0 0.0
  %1458 = vmatprep.subr.mxu0 0.0
  %1459 = vmatpush1.msra.mxu0 0.0
  %1460 = vmatprep.subr.mxu0 0.0
  %1461 = vmatpush1.msra.mxu0 0.0
  %1462 = vmatprep.subr.mxu0 0.0
  %1463 = vmatpush1.msra.mxu0 0.0
  %1464 = vmatprep.subr.mxu0 0.0
  %1465 = vmatpush1.msra.mxu0 0.0
  %1466 = vmatprep.subr.mxu0 0.0
  %1467 = vmatpush1.msra.mxu0 0.0
  %1468 = vmatprep.subr.mxu0 0.0
  %1469 = vmatpush1.msra.mxu0 0.0
  %1470 = vmatprep.subr.mxu0 0.0
  %1471 = vmatpush1.msra.mxu0 0.0
  %1472 = vmatprep.mubr.f32.mxu0 0.0
  %v1473 = vand.u32 %v1001, 4294901760
  %1474 = vmatmul.mubr.f32.gmra.mrb[0].mxu0 %v1473
  %v1475 = vpop.f32.mrb[0].mxu0
  %v1476 = vadd.f32 %v1402, %v1475
  %v1477 = vpop.f32.mrb[0].mxu0
  %1478 = vdwg.mxu0
  %v1479 = vlaneseq
  %v1480 = vand.u32 %v1479, 127
  %v1481 = vld [vmem:[%s5] sm:$0xff]
  %1482 = vset.pattern.permute.xlu0 0
  %1483 = vperm.xlu0 %1482, %v1481
  %v1484 = vpop.permute.xlu0 %1483
  %vm1485 = vcmp.eq.s32.totalorder %v1484, %v1480
  %v1486 = vsel %vm1485, 1, 0
  %v1487 = vcvt.s32.f32 %v1486
  %v1488 = vld [vmem:[%s4] sm:$0xff]
  %1489 = vset.pattern.permute.xlu0 0
  %1490 = vperm.xlu0 %1489, %v1488
  %v1491 = vpop.permute.xlu0 %1490
  %vm1492 = vcmp.eq.s32.totalorder %v1491, %v1480
  %v1493 = vsel %vm1492, 1, 0
  %v1494 = vcvt.s32.f32 %v1493
  %1495 = vrot.lane.b32.xlu0 %v66, 9
  %v1496 = vpop.permute.xlu0 %1495
  %1499 = vrot.lane.b32.xlu0 %v1476, 27
  %v1500 = vpop.permute.xlu0 %1499
  %vm1502 = vcmask 72704
  %v1503 = vsel %vm1502, %v993, %v1496
  %vm1504 = vcmask 220160
  %v1505 = vsel %vm1504, %v1503, %v1500
  %vm1506 = vcmask 64512
  %v1508 = vsel %vm1506, %v1487, 0
  %v1511 = vsel %vm1506, %v1494, 0
  %1513 = vmatprep.subr.mxu0 0.0
  %v1514 = vand.u32 %v1505, 4294901760
  %1515 = vmatpush1.msra.mxu0 %v1514
  %1516 = vmatprep.subr.mxu0 0.0
  %1517 = vmatpush1.msra.mxu0 0.0
  %1518 = vmatprep.subr.mxu0 0.0
  %1519 = vmatpush1.msra.mxu0 0.0
  %1520 = vmatprep.subr.mxu0 0.0
  %1521 = vmatpush1.msra.mxu0 0.0
  %1522 = vmatprep.subr.mxu0 0.0
  %1523 = vmatpush1.msra.mxu0 0.0
  %1524 = vmatprep.subr.mxu0 0.0
  %1525 = vmatpush1.msra.mxu0 0.0
  %1526 = vmatprep.subr.mxu0 0.0
  %1527 = vmatpush1.msra.mxu0 0.0
  %1528 = vmatprep.subr.mxu0 0.0
  %1529 = vmatpush1.msra.mxu0 0.0
  %1530 = vmatprep.subr.mxu0 0.0
  %1531 = vmatpush1.msra.mxu0 0.0
  %1532 = vmatprep.subr.mxu0 0.0
  %1533 = vmatpush1.msra.mxu0 0.0
  %1534 = vmatprep.subr.mxu0 0.0
  %1535 = vmatpush1.msra.mxu0 0.0
  %1536 = vmatprep.subr.mxu0 0.0
  %1537 = vmatpush1.msra.mxu0 0.0
  %1538 = vmatprep.subr.mxu0 0.0
  %1539 = vmatpush1.msra.mxu0 0.0
  %1540 = vmatprep.subr.mxu0 0.0
  %1541 = vmatpush1.msra.mxu0 0.0
  %1542 = vmatprep.subr.mxu0 0.0
  %1543 = vmatpush1.msra.mxu0 0.0
  %1544 = vmatprep.subr.mxu0 0.0
  %1545 = vmatpush1.msra.mxu0 0.0
  %1546 = vmatprep.subr.mxu0 0.0
  %1547 = vmatpush1.msra.mxu0 0.0
  %1548 = vmatprep.subr.mxu0 0.0
  %1549 = vmatpush1.msra.mxu0 0.0
  %1550 = vmatprep.subr.mxu0 0.0
  %1551 = vmatpush1.msra.mxu0 0.0
  %1552 = vmatprep.subr.mxu0 0.0
  %1553 = vmatpush1.msra.mxu0 0.0
  %1554 = vmatprep.subr.mxu0 0.0
  %1555 = vmatpush1.msra.mxu0 0.0
  %1556 = vmatprep.subr.mxu0 0.0
  %1557 = vmatpush1.msra.mxu0 0.0
  %1558 = vmatprep.subr.mxu0 0.0
  %1559 = vmatpush1.msra.mxu0 0.0
  %1560 = vmatprep.subr.mxu0 0.0
  %1561 = vmatpush1.msra.mxu0 0.0
  %1562 = vmatprep.subr.mxu0 0.0
  %1563 = vmatpush1.msra.mxu0 0.0
  %1564 = vmatprep.subr.mxu0 0.0
  %1565 = vmatpush1.msra.mxu0 0.0
  %1566 = vmatprep.subr.mxu0 0.0
  %1567 = vmatpush1.msra.mxu0 0.0
  %1568 = vmatprep.subr.mxu0 0.0
  %1569 = vmatpush1.msra.mxu0 0.0
  %1570 = vmatprep.subr.mxu0 0.0
  %1571 = vmatpush1.msra.mxu0 0.0
  %1572 = vmatprep.subr.mxu0 0.0
  %1573 = vmatpush1.msra.mxu0 0.0
  %1574 = vmatprep.subr.mxu0 0.0
  %1575 = vmatpush1.msra.mxu0 0.0
  %1576 = vmatprep.subr.mxu0 0.0
  %1577 = vmatpush1.msra.mxu0 0.0
  %1578 = vmatprep.mubr.f32.mxu0 0.0
  %v1579 = vand.u32 %v1508, 4294901760
  %v1580 = vsub.f32 %v1508, %v1579
  %v1581 = vand.u32 %v1580, 4294901760
  %v1582 = vsub.f32 %v1580, %v1581
  %v1583 = vand.u32 %v1582, 4294901760
  %1584 = vmatmul.mubr.f32.gmra.mrb[0].mxu0 %v1583
  %v1585 = vpop.f32.mrb[0].mxu0
  %v1586 = vadd.f32 0.0, %v1585
  %v1587 = vpop.f32.mrb[0].mxu0
  %1588 = vmatprep.mubr.f32.mxu0 0.0
  %v1589 = vand.u32 %v1511, 4294901760
  %v1590 = vsub.f32 %v1511, %v1589
  %v1591 = vand.u32 %v1590, 4294901760
  %v1592 = vsub.f32 %v1590, %v1591
  %v1593 = vand.u32 %v1592, 4294901760
  %1594 = vmatmul.mubr.f32.gmra.mrb[0].mxu0 %v1593
  %v1595 = vpop.f32.mrb[0].mxu0
  %v1596 = vadd.f32 0.0, %v1595
  %v1597 = vpop.f32.mrb[0].mxu0
  %1598 = vdwg.mxu0
  %1599 = vmatprep.subr.mxu0 0.0
  %v1600 = vand.u32 %v1505, 4294901760
  %v1601 = vsub.f32 %v1505, %v1600
  %v1602 = vand.u32 %v1601, 4294901760
  %v1603 = vsub.f32 %v1601, %v1602
  %v1604 = vand.u32 %v1603, 4294901760
  %1605 = vmatpush1.msra.mxu0 %v1604
  %1606 = vmatprep.subr.mxu0 0.0
  %1607 = vmatpush1.msra.mxu0 0.0
  %1608 = vmatprep.subr.mxu0 0.0
  %1609 = vmatpush1.msra.mxu0 0.0
  %1610 = vmatprep.subr.mxu0 0.0
  %1611 = vmatpush1.msra.mxu0 0.0
  %1612 = vmatprep.subr.mxu0 0.0
  %1613 = vmatpush1.msra.mxu0 0.0
  %1614 = vmatprep.subr.mxu0 0.0
  %1615 = vmatpush1.msra.mxu0 0.0
  %1616 = vmatprep.subr.mxu0 0.0
  %1617 = vmatpush1.msra.mxu0 0.0
  %1618 = vmatprep.subr.mxu0 0.0
  %1619 = vmatpush1.msra.mxu0 0.0
  %1620 = vmatprep.subr.mxu0 0.0
  %1621 = vmatpush1.msra.mxu0 0.0
  %1622 = vmatprep.subr.mxu0 0.0
  %1623 = vmatpush1.msra.mxu0 0.0
  %1624 = vmatprep.subr.mxu0 0.0
  %1625 = vmatpush1.msra.mxu0 0.0
  %1626 = vmatprep.subr.mxu0 0.0
  %1627 = vmatpush1.msra.mxu0 0.0
  %1628 = vmatprep.subr.mxu0 0.0
  %1629 = vmatpush1.msra.mxu0 0.0
  %1630 = vmatprep.subr.mxu0 0.0
  %1631 = vmatpush1.msra.mxu0 0.0
  %1632 = vmatprep.subr.mxu0 0.0
  %1633 = vmatpush1.msra.mxu0 0.0
  %1634 = vmatprep.subr.mxu0 0.0
  %1635 = vmatpush1.msra.mxu0 0.0
  %1636 = vmatprep.subr.mxu0 0.0
  %1637 = vmatpush1.msra.mxu0 0.0
  %1638 = vmatprep.subr.mxu0 0.0
  %1639 = vmatpush1.msra.mxu0 0.0
  %1640 = vmatprep.subr.mxu0 0.0
  %1641 = vmatpush1.msra.mxu0 0.0
  %1642 = vmatprep.subr.mxu0 0.0
  %1643 = vmatpush1.msra.mxu0 0.0
  %1644 = vmatprep.subr.mxu0 0.0
  %1645 = vmatpush1.msra.mxu0 0.0
  %1646 = vmatprep.subr.mxu0 0.0
  %1647 = vmatpush1.msra.mxu0 0.0
  %1648 = vmatprep.subr.mxu0 0.0
  %1649 = vmatpush1.msra.mxu0 0.0
  %1650 = vmatprep.subr.mxu0 0.0
  %1651 = vmatpush1.msra.mxu0 0.0
  %1652 = vmatprep.subr.mxu0 0.0
  %1653 = vmatpush1.msra.mxu0 0.0
  %1654 = vmatprep.subr.mxu0 0.0
  %1655 = vmatpush1.msra.mxu0 0.0
  %1656 = vmatprep.subr.mxu0 0.0
  %1657 = vmatpush1.msra.mxu0 0.0
  %1658 = vmatprep.subr.mxu0 0.0
  %1659 = vmatpush1.msra.mxu0 0.0
  %1660 = vmatprep.subr.mxu0 0.0
  %1661 = vmatpush1.msra.mxu0 0.0
  %1662 = vmatprep.subr.mxu0 0.0
  %1663 = vmatpush1.msra.mxu0 0.0
  %1664 = vmatprep.subr.mxu0 0.0
  %1665 = vmatpush1.msra.mxu0 0.0
  %1666 = vmatprep.subr.mxu0 0.0
  %1667 = vmatpush1.msra.mxu0 0.0
  %1668 = vmatprep.mubr.f32.mxu0 0.0
  %v1669 = vand.u32 %v1508, 4294901760
  %1670 = vmatmul.mubr.f32.gmra.mrb[0].mxu0 %v1669
  %v1671 = vpop.f32.mrb[0].mxu0
  %v1672 = vadd.f32 %v1586, %v1671
  %v1673 = vpop.f32.mrb[0].mxu0
  %1674 = vmatprep.mubr.f32.mxu0 0.0
  %v1675 = vand.u32 %v1511, 4294901760
  %1676 = vmatmul.mubr.f32.gmra.mrb[0].mxu0 %v1675
  %v1677 = vpop.f32.mrb[0].mxu0
  %v1678 = vadd.f32 %v1596, %v1677
  %v1679 = vpop.f32.mrb[0].mxu0
  %1680 = vdwg.mxu0
  %1681 = vmatprep.subr.mxu0 0.0
  %v1682 = vand.u32 %v1505, 4294901760
  %v1683 = vsub.f32 %v1505, %v1682
  %1684 = vmatpush1.msra.mxu0 %v1683
  %1685 = vmatprep.subr.mxu0 0.0
  %1686 = vmatpush1.msra.mxu0 0.0
  %1687 = vmatprep.subr.mxu0 0.0
  %1688 = vmatpush1.msra.mxu0 0.0
  %1689 = vmatprep.subr.mxu0 0.0
  %1690 = vmatpush1.msra.mxu0 0.0
  %1691 = vmatprep.subr.mxu0 0.0
  %1692 = vmatpush1.msra.mxu0 0.0
  %1693 = vmatprep.subr.mxu0 0.0
  %1694 = vmatpush1.msra.mxu0 0.0
  %1695 = vmatprep.subr.mxu0 0.0
  %1696 = vmatpush1.msra.mxu0 0.0
  %1697 = vmatprep.subr.mxu0 0.0
  %1698 = vmatpush1.msra.mxu0 0.0
  %1699 = vmatprep.subr.mxu0 0.0
  %1700 = vmatpush1.msra.mxu0 0.0
  %1701 = vmatprep.subr.mxu0 0.0
  %1702 = vmatpush1.msra.mxu0 0.0
  %1703 = vmatprep.subr.mxu0 0.0
  %1704 = vmatpush1.msra.mxu0 0.0
  %1705 = vmatprep.subr.mxu0 0.0
  %1706 = vmatpush1.msra.mxu0 0.0
  %1707 = vmatprep.subr.mxu0 0.0
  %1708 = vmatpush1.msra.mxu0 0.0
  %1709 = vmatprep.subr.mxu0 0.0
  %1710 = vmatpush1.msra.mxu0 0.0
  %1711 = vmatprep.subr.mxu0 0.0
  %1712 = vmatpush1.msra.mxu0 0.0
  %1713 = vmatprep.subr.mxu0 0.0
  %1714 = vmatpush1.msra.mxu0 0.0
  %1715 = vmatprep.subr.mxu0 0.0
  %1716 = vmatpush1.msra.mxu0 0.0
  %1717 = vmatprep.subr.mxu0 0.0
  %1718 = vmatpush1.msra.mxu0 0.0
  %1719 = vmatprep.subr.mxu0 0.0
  %1720 = vmatpush1.msra.mxu0 0.0
  %1721 = vmatprep.subr.mxu0 0.0
  %1722 = vmatpush1.msra.mxu0 0.0
  %1723 = vmatprep.subr.mxu0 0.0
  %1724 = vmatpush1.msra.mxu0 0.0
  %1725 = vmatprep.subr.mxu0 0.0
  %1726 = vmatpush1.msra.mxu0 0.0
  %1727 = vmatprep.subr.mxu0 0.0
  %1728 = vmatpush1.msra.mxu0 0.0
  %1729 = vmatprep.subr.mxu0 0.0
  %1730 = vmatpush1.msra.mxu0 0.0
  %1731 = vmatprep.subr.mxu0 0.0
  %1732 = vmatpush1.msra.mxu0 0.0
  %1733 = vmatprep.subr.mxu0 0.0
  %1734 = vmatpush1.msra.mxu0 0.0
  %1735 = vmatprep.subr.mxu0 0.0
  %1736 = vmatpush1.msra.mxu0 0.0
  %1737 = vmatprep.subr.mxu0 0.0
  %1738 = vmatpush1.msra.mxu0 0.0
  %1739 = vmatprep.subr.mxu0 0.0
  %1740 = vmatpush1.msra.mxu0 0.0
  %1741 = vmatprep.subr.mxu0 0.0
  %1742 = vmatpush1.msra.mxu0 0.0
  %1743 = vmatprep.subr.mxu0 0.0
  %1744 = vmatpush1.msra.mxu0 0.0
  %1745 = vmatprep.subr.mxu0 0.0
  %1746 = vmatpush1.msra.mxu0 0.0
  %1747 = vmatprep.mubr.f32.mxu0 0.0
  %v1748 = vand.u32 %v1508, 4294901760
  %v1749 = vsub.f32 %v1508, %v1748
  %1750 = vmatmul.mubr.f32.gmra.mrb[0].mxu0 %v1749
  %v1751 = vpop.f32.mrb[0].mxu0
  %v1752 = vadd.f32 %v1672, %v1751
  %v1753 = vpop.f32.mrb[0].mxu0
  %1754 = vmatprep.mubr.f32.mxu0 0.0
  %v1755 = vand.u32 %v1511, 4294901760
  %v1756 = vsub.f32 %v1511, %v1755
  %1757 = vmatmul.mubr.f32.gmra.mrb[0].mxu0 %v1756
  %v1758 = vpop.f32.mrb[0].mxu0
  %v1759 = vadd.f32 %v1678, %v1758
  %v1760 = vpop.f32.mrb[0].mxu0
  %1761 = vdwg.mxu0
  %1762 = vmatprep.subr.mxu0 0.0
  %v1763 = vand.u32 %v1505, 4294901760
  %1764 = vmatpush1.msra.mxu0 %v1763
  %1765 = vmatprep.subr.mxu0 0.0
  %1766 = vmatpush1.msra.mxu0 0.0
  %1767 = vmatprep.subr.mxu0 0.0
  %1768 = vmatpush1.msra.mxu0 0.0
  %1769 = vmatprep.subr.mxu0 0.0
  %1770 = vmatpush1.msra.mxu0 0.0
  %1771 = vmatprep.subr.mxu0 0.0
  %1772 = vmatpush1.msra.mxu0 0.0
  %1773 = vmatprep.subr.mxu0 0.0
  %1774 = vmatpush1.msra.mxu0 0.0
  %1775 = vmatprep.subr.mxu0 0.0
  %1776 = vmatpush1.msra.mxu0 0.0
  %1777 = vmatprep.subr.mxu0 0.0
  %1778 = vmatpush1.msra.mxu0 0.0
  %1779 = vmatprep.subr.mxu0 0.0
  %1780 = vmatpush1.msra.mxu0 0.0
  %1781 = vmatprep.subr.mxu0 0.0
  %1782 = vmatpush1.msra.mxu0 0.0
  %1783 = vmatprep.subr.mxu0 0.0
  %1784 = vmatpush1.msra.mxu0 0.0
  %1785 = vmatprep.subr.mxu0 0.0
  %1786 = vmatpush1.msra.mxu0 0.0
  %1787 = vmatprep.subr.mxu0 0.0
  %1788 = vmatpush1.msra.mxu0 0.0
  %1789 = vmatprep.subr.mxu0 0.0
  %1790 = vmatpush1.msra.mxu0 0.0
  %1791 = vmatprep.subr.mxu0 0.0
  %1792 = vmatpush1.msra.mxu0 0.0
  %1793 = vmatprep.subr.mxu0 0.0
  %1794 = vmatpush1.msra.mxu0 0.0
  %1795 = vmatprep.subr.mxu0 0.0
  %1796 = vmatpush1.msra.mxu0 0.0
  %1797 = vmatprep.subr.mxu0 0.0
  %1798 = vmatpush1.msra.mxu0 0.0
  %1799 = vmatprep.subr.mxu0 0.0
  %1800 = vmatpush1.msra.mxu0 0.0
  %1801 = vmatprep.subr.mxu0 0.0
  %1802 = vmatpush1.msra.mxu0 0.0
  %1803 = vmatprep.subr.mxu0 0.0
  %1804 = vmatpush1.msra.mxu0 0.0
  %1805 = vmatprep.subr.mxu0 0.0
  %1806 = vmatpush1.msra.mxu0 0.0
  %1807 = vmatprep.subr.mxu0 0.0
  %1808 = vmatpush1.msra.mxu0 0.0
  %1809 = vmatprep.subr.mxu0 0.0
  %1810 = vmatpush1.msra.mxu0 0.0
  %1811 = vmatprep.subr.mxu0 0.0
  %1812 = vmatpush1.msra.mxu0 0.0
  %1813 = vmatprep.subr.mxu0 0.0
  %1814 = vmatpush1.msra.mxu0 0.0
  %1815 = vmatprep.subr.mxu0 0.0
  %1816 = vmatpush1.msra.mxu0 0.0
  %1817 = vmatprep.subr.mxu0 0.0
  %1818 = vmatpush1.msra.mxu0 0.0
  %1819 = vmatprep.subr.mxu0 0.0
  %1820 = vmatpush1.msra.mxu0 0.0
  %1821 = vmatprep.subr.mxu0 0.0
  %1822 = vmatpush1.msra.mxu0 0.0
  %1823 = vmatprep.subr.mxu0 0.0
  %1824 = vmatpush1.msra.mxu0 0.0
  %1825 = vmatprep.subr.mxu0 0.0
  %1826 = vmatpush1.msra.mxu0 0.0
  %1827 = vmatprep.mubr.f32.mxu0 0.0
  %v1828 = vand.u32 %v1508, 4294901760
  %v1829 = vsub.f32 %v1508, %v1828
  %v1830 = vand.u32 %v1829, 4294901760
  %1831 = vmatmul.mubr.f32.gmra.mrb[0].mxu0 %v1830
  %v1832 = vpop.f32.mrb[0].mxu0
  %v1833 = vadd.f32 %v1752, %v1832
  %v1834 = vpop.f32.mrb[0].mxu0
  %1835 = vmatprep.mubr.f32.mxu0 0.0
  %v1836 = vand.u32 %v1511, 4294901760
  %v1837 = vsub.f32 %v1511, %v1836
  %v1838 = vand.u32 %v1837, 4294901760
  %1839 = vmatmul.mubr.f32.gmra.mrb[0].mxu0 %v1838
  %v1840 = vpop.f32.mrb[0].mxu0
  %v1841 = vadd.f32 %v1759, %v1840
  %v1842 = vpop.f32.mrb[0].mxu0
  %1843 = vdwg.mxu0
  %1844 = vmatprep.subr.mxu0 0.0
  %v1845 = vand.u32 %v1505, 4294901760
  %v1846 = vsub.f32 %v1505, %v1845
  %v1847 = vand.u32 %v1846, 4294901760
  %1848 = vmatpush1.msra.mxu0 %v1847
  %1849 = vmatprep.subr.mxu0 0.0
  %1850 = vmatpush1.msra.mxu0 0.0
  %1851 = vmatprep.subr.mxu0 0.0
  %1852 = vmatpush1.msra.mxu0 0.0
  %1853 = vmatprep.subr.mxu0 0.0
  %1854 = vmatpush1.msra.mxu0 0.0
  %1855 = vmatprep.subr.mxu0 0.0
  %1856 = vmatpush1.msra.mxu0 0.0
  %1857 = vmatprep.subr.mxu0 0.0
  %1858 = vmatpush1.msra.mxu0 0.0
  %1859 = vmatprep.subr.mxu0 0.0
  %1860 = vmatpush1.msra.mxu0 0.0
  %1861 = vmatprep.subr.mxu0 0.0
  %1862 = vmatpush1.msra.mxu0 0.0
  %1863 = vmatprep.subr.mxu0 0.0
  %1864 = vmatpush1.msra.mxu0 0.0
  %1865 = vmatprep.subr.mxu0 0.0
  %1866 = vmatpush1.msra.mxu0 0.0
  %1867 = vmatprep.subr.mxu0 0.0
  %1868 = vmatpush1.msra.mxu0 0.0
  %1869 = vmatprep.subr.mxu0 0.0
  %1870 = vmatpush1.msra.mxu0 0.0
  %1871 = vmatprep.subr.mxu0 0.0
  %1872 = vmatpush1.msra.mxu0 0.0
  %1873 = vmatprep.subr.mxu0 0.0
  %1874 = vmatpush1.msra.mxu0 0.0
  %1875 = vmatprep.subr.mxu0 0.0
  %1876 = vmatpush1.msra.mxu0 0.0
  %1877 = vmatprep.subr.mxu0 0.0
  %1878 = vmatpush1.msra.mxu0 0.0
  %1879 = vmatprep.subr.mxu0 0.0
  %1880 = vmatpush1.msra.mxu0 0.0
  %1881 = vmatprep.subr.mxu0 0.0
  %1882 = vmatpush1.msra.mxu0 0.0
  %1883 = vmatprep.subr.mxu0 0.0
  %1884 = vmatpush1.msra.mxu0 0.0
  %1885 = vmatprep.subr.mxu0 0.0
  %1886 = vmatpush1.msra.mxu0 0.0
  %1887 = vmatprep.subr.mxu0 0.0
  %1888 = vmatpush1.msra.mxu0 0.0
  %1889 = vmatprep.subr.mxu0 0.0
  %1890 = vmatpush1.msra.mxu0 0.0
  %1891 = vmatprep.subr.mxu0 0.0
  %1892 = vmatpush1.msra.mxu0 0.0
  %1893 = vmatprep.subr.mxu0 0.0
  %1894 = vmatpush1.msra.mxu0 0.0
  %1895 = vmatprep.subr.mxu0 0.0
  %1896 = vmatpush1.msra.mxu0 0.0
  %1897 = vmatprep.subr.mxu0 0.0
  %1898 = vmatpush1.msra.mxu0 0.0
  %1899 = vmatprep.subr.mxu0 0.0
  %1900 = vmatpush1.msra.mxu0 0.0
  %1901 = vmatprep.subr.mxu0 0.0
  %1902 = vmatpush1.msra.mxu0 0.0
  %1903 = vmatprep.subr.mxu0 0.0
  %1904 = vmatpush1.msra.mxu0 0.0
  %1905 = vmatprep.subr.mxu0 0.0
  %1906 = vmatpush1.msra.mxu0 0.0
  %1907 = vmatprep.subr.mxu0 0.0
  %1908 = vmatpush1.msra.mxu0 0.0
  %1909 = vmatprep.subr.mxu0 0.0
  %1910 = vmatpush1.msra.mxu0 0.0
  %1911 = vmatprep.mubr.f32.mxu0 0.0
  %v1912 = vand.u32 %v1508, 4294901760
  %1913 = vmatmul.mubr.f32.gmra.mrb[0].mxu0 %v1912
  %v1914 = vpop.f32.mrb[0].mxu0
  %v1915 = vadd.f32 %v1833, %v1914
  %v1916 = vpop.f32.mrb[0].mxu0
  %1917 = vmatprep.mubr.f32.mxu0 0.0
  %v1918 = vand.u32 %v1511, 4294901760
  %1919 = vmatmul.mubr.f32.gmra.mrb[0].mxu0 %v1918
  %v1920 = vpop.f32.mrb[0].mxu0
  %v1921 = vadd.f32 %v1841, %v1920
  %v1922 = vpop.f32.mrb[0].mxu0
  %1923 = vdwg.mxu0
  %1924 = vmatprep.subr.mxu0 0.0
  %v1925 = vand.u32 %v1505, 4294901760
  %1926 = vmatpush1.msra.mxu0 %v1925
  %1927 = vmatprep.subr.mxu0 0.0
  %1928 = vmatpush1.msra.mxu0 0.0
  %1929 = vmatprep.subr.mxu0 0.0
  %1930 = vmatpush1.msra.mxu0 0.0
  %1931 = vmatprep.subr.mxu0 0.0
  %1932 = vmatpush1.msra.mxu0 0.0
  %1933 = vmatprep.subr.mxu0 0.0
  %1934 = vmatpush1.msra.mxu0 0.0
  %1935 = vmatprep.subr.mxu0 0.0
  %1936 = vmatpush1.msra.mxu0 0.0
  %1937 = vmatprep.subr.mxu0 0.0
  %1938 = vmatpush1.msra.mxu0 0.0
  %1939 = vmatprep.subr.mxu0 0.0
  %1940 = vmatpush1.msra.mxu0 0.0
  %1941 = vmatprep.subr.mxu0 0.0
  %1942 = vmatpush1.msra.mxu0 0.0
  %1943 = vmatprep.subr.mxu0 0.0
  %1944 = vmatpush1.msra.mxu0 0.0
  %1945 = vmatprep.subr.mxu0 0.0
  %1946 = vmatpush1.msra.mxu0 0.0
  %1947 = vmatprep.subr.mxu0 0.0
  %1948 = vmatpush1.msra.mxu0 0.0
  %1949 = vmatprep.subr.mxu0 0.0
  %1950 = vmatpush1.msra.mxu0 0.0
  %1951 = vmatprep.subr.mxu0 0.0
  %1952 = vmatpush1.msra.mxu0 0.0
  %1953 = vmatprep.subr.mxu0 0.0
  %1954 = vmatpush1.msra.mxu0 0.0
  %1955 = vmatprep.subr.mxu0 0.0
  %1956 = vmatpush1.msra.mxu0 0.0
  %1957 = vmatprep.subr.mxu0 0.0
  %1958 = vmatpush1.msra.mxu0 0.0
  %1959 = vmatprep.subr.mxu0 0.0
  %1960 = vmatpush1.msra.mxu0 0.0
  %1961 = vmatprep.subr.mxu0 0.0
  %1962 = vmatpush1.msra.mxu0 0.0
  %1963 = vmatprep.subr.mxu0 0.0
  %1964 = vmatpush1.msra.mxu0 0.0
  %1965 = vmatprep.subr.mxu0 0.0
  %1966 = vmatpush1.msra.mxu0 0.0
  %1967 = vmatprep.subr.mxu0 0.0
  %1968 = vmatpush1.msra.mxu0 0.0
  %1969 = vmatprep.subr.mxu0 0.0
  %1970 = vmatpush1.msra.mxu0 0.0
  %1971 = vmatprep.subr.mxu0 0.0
  %1972 = vmatpush1.msra.mxu0 0.0
  %1973 = vmatprep.subr.mxu0 0.0
  %1974 = vmatpush1.msra.mxu0 0.0
  %1975 = vmatprep.subr.mxu0 0.0
  %1976 = vmatpush1.msra.mxu0 0.0
  %1977 = vmatprep.subr.mxu0 0.0
  %1978 = vmatpush1.msra.mxu0 0.0
  %1979 = vmatprep.subr.mxu0 0.0
  %1980 = vmatpush1.msra.mxu0 0.0
  %1981 = vmatprep.subr.mxu0 0.0
  %1982 = vmatpush1.msra.mxu0 0.0
  %1983 = vmatprep.subr.mxu0 0.0
  %1984 = vmatpush1.msra.mxu0 0.0
  %1985 = vmatprep.subr.mxu0 0.0
  %1986 = vmatpush1.msra.mxu0 0.0
  %1987 = vmatprep.subr.mxu0 0.0
  %1988 = vmatpush1.msra.mxu0 0.0
  %1989 = vmatprep.mubr.f32.mxu0 0.0
  %v1990 = vand.u32 %v1508, 4294901760
  %1991 = vmatmul.mubr.f32.gmra.mrb[0].mxu0 %v1990
  %v1992 = vpop.f32.mrb[0].mxu0
  %v1993 = vadd.f32 %v1915, %v1992
  %v1994 = vpop.f32.mrb[0].mxu0
  %1995 = vmatprep.mubr.f32.mxu0 0.0
  %v1996 = vand.u32 %v1511, 4294901760
  %1997 = vmatmul.mubr.f32.gmra.mrb[0].mxu0 %v1996
  %v1998 = vpop.f32.mrb[0].mxu0
  %v1999 = vadd.f32 %v1921, %v1998
  %v2000 = vpop.f32.mrb[0].mxu0
  %2001 = vdwg.mxu0
  %v2002 = vld [vmem:[%s2] sm:$0xff]
  %v2003 = vmul.f32 %v2002, %v1993
  %v2004 = vmul.f32 %v1993, %v1993
  %v2005 = vmul.f32 %v1999, %v1999
  %2008 = vrot.lane.b32.xlu0 %v2004, 122
  %v2009 = vpop.permute.xlu0 %2008
  %2010 = vrot.lane.b32.xlu0 %v2005, 122
  %v2011 = vpop.permute.xlu0 %2010
  %v2014 = vadd.f32 %v2004, %v2009
  %v2015 = vadd.f32 %v2005, %v2011
  %2016 = vrot.lane.b32.xlu0 %v2004, 116
  %v2017 = vpop.permute.xlu0 %2016
  %2018 = vrot.lane.b32.xlu0 %v2005, 116
  %v2019 = vpop.permute.xlu0 %2018
  %v2022 = vadd.f32 %v2014, %v2017
  %v2023 = vadd.f32 %v2015, %v2019
  %v2024 = vrsqrt.pop %v2022
  %v2025 = vmul.f32 %v2022, %v2024
  %vm2026 = vcmp.eq.f32.partialorder %v2022, inf
  %v2027 = vsel %vm2026, %v2022, %v2025
  %vm2028 = vcmp.eq.f32.partialorder %v2022, 0.0
  %v2029 = vand.u32 %v2022, 2147483648
  %v2030 = vsel %vm2028, %v2029, %v2027
  %v2031 = vrsqrt.pop %v2023
  %v2032 = vmul.f32 %v2023, %v2031
  %vm2033 = vcmp.eq.f32.partialorder %v2023, inf
  %v2034 = vsel %vm2033, %v2023, %v2032
  %vm2035 = vcmp.eq.f32.partialorder %v2023, 0.0
  %v2036 = vand.u32 %v2023, 2147483648
  %v2037 = vsel %vm2035, %v2036, %v2034
  %v2038 = vld [vmem:[%s12] sm:$0x3f]
  %v2039 = vld [vmem:[%s13] sm:$0x1]
  %v2041 = vlaneseq
  %v2042 = vshrl.u32 %v2041, 7
  %v2043 = vsub.s32 0, %v2042
  %v2044 = vrot.slane %v2039, %v2043
  %2048 = vrot.lane.b32.xlu0 %v2030, 119
  %v2049 = vpop.permute.xlu0 %2048
  %2050 = vrot.lane.b32.xlu0 %v2037, 119
  %v2051 = vpop.permute.xlu0 %2050
  %vm2052 = vcmask 48128
  %v2053 = vsel %vm2052, %v2049, 0
  %v2055 = vsel %vm2052, %v2051, 0
  %vm2057 = vcmask 1045504
  %v2059 = vsel %vm2057, %v2038, 0
  %2061 = vmatprep.subr.mxu0 0.0
  %v2062 = vand.u32 %v2059, 4294901760
  %2063 = vmatpush1.msra.mxu0 %v2062
  %2064 = vmatprep.subr.mxu0 0.0
  %2065 = vmatpush1.msra.mxu0 0.0
  %2066 = vmatprep.subr.mxu0 0.0
  %2067 = vmatpush1.msra.mxu0 0.0
  %2068 = vmatprep.subr.mxu0 0.0
  %2069 = vmatpush1.msra.mxu0 0.0
  %2070 = vmatprep.subr.mxu0 0.0
  %2071 = vmatpush1.msra.mxu0 0.0
  %2072 = vmatprep.subr.mxu0 0.0
  %2073 = vmatpush1.msra.mxu0 0.0
  %2074 = vmatprep.subr.mxu0 0.0
  %2075 = vmatpush1.msra.mxu0 0.0
  %2076 = vmatprep.subr.mxu0 0.0
  %2077 = vmatpush1.msra.mxu0 0.0
  %2078 = vmatprep.subr.mxu0 0.0
  %2079 = vmatpush1.msra.mxu0 0.0
  %2080 = vmatprep.subr.mxu0 0.0
  %2081 = vmatpush1.msra.mxu0 0.0
  %2082 = vmatprep.subr.mxu0 0.0
  %2083 = vmatpush1.msra.mxu0 0.0
  %2084 = vmatprep.subr.mxu0 0.0
  %2085 = vmatpush1.msra.mxu0 0.0
  %2086 = vmatprep.subr.mxu0 0.0
  %2087 = vmatpush1.msra.mxu0 0.0
  %2088 = vmatprep.subr.mxu0 0.0
  %2089 = vmatpush1.msra.mxu0 0.0
  %2090 = vmatprep.subr.mxu0 0.0
  %2091 = vmatpush1.msra.mxu0 0.0
  %2092 = vmatprep.subr.mxu0 0.0
  %2093 = vmatpush1.msra.mxu0 0.0
  %2094 = vmatprep.subr.mxu0 0.0
  %2095 = vmatpush1.msra.mxu0 0.0
  %2096 = vmatprep.subr.mxu0 0.0
  %2097 = vmatpush1.msra.mxu0 0.0
  %2098 = vmatprep.subr.mxu0 0.0
  %2099 = vmatpush1.msra.mxu0 0.0
  %2100 = vmatprep.subr.mxu0 0.0
  %2101 = vmatpush1.msra.mxu0 0.0
  %2102 = vmatprep.subr.mxu0 0.0
  %2103 = vmatpush1.msra.mxu0 0.0
  %2104 = vmatprep.subr.mxu0 0.0
  %2105 = vmatpush1.msra.mxu0 0.0
  %2106 = vmatprep.subr.mxu0 0.0
  %2107 = vmatpush1.msra.mxu0 0.0
  %2108 = vmatprep.subr.mxu0 0.0
  %2109 = vmatpush1.msra.mxu0 0.0
  %2110 = vmatprep.subr.mxu0 0.0
  %2111 = vmatpush1.msra.mxu0 0.0
  %2112 = vmatprep.subr.mxu0 0.0
  %2113 = vmatpush1.msra.mxu0 0.0
  %2114 = vmatprep.subr.mxu0 0.0
  %2115 = vmatpush1.msra.mxu0 0.0
  %2116 = vmatprep.subr.mxu0 0.0
  %2117 = vmatpush1.msra.mxu0 0.0
  %2118 = vmatprep.subr.mxu0 0.0
  %2119 = vmatpush1.msra.mxu0 0.0
  %2120 = vmatprep.subr.mxu0 0.0
  %2121 = vmatpush1.msra.mxu0 0.0
  %2122 = vmatprep.subr.mxu0 0.0
  %2123 = vmatpush1.msra.mxu0 0.0
  %2124 = vmatprep.subr.mxu0 0.0
  %2125 = vmatpush1.msra.mxu0 0.0
  %2126 = vmatprep.mubr.f32.mxu0 0.0
  %v2127 = vand.u32 %v2053, 4294901760
  %v2128 = vsub.f32 %v2053, %v2127
  %v2129 = vand.u32 %v2128, 4294901760
  %v2130 = vsub.f32 %v2128, %v2129
  %v2131 = vand.u32 %v2130, 4294901760
  %2132 = vmatmul.mubr.f32.gmra.mrb[0].mxu0 %v2131
  %v2133 = vpop.f32.mrb[0].mxu0
  %v2134 = vadd.f32 %v2044, %v2133
  %v2135 = vpop.f32.mrb[0].mxu0
  %2136 = vmatprep.mubr.f32.mxu0 0.0
  %v2137 = vand.u32 %v2055, 4294901760
  %v2138 = vsub.f32 %v2055, %v2137
  %v2139 = vand.u32 %v2138, 4294901760
  %v2140 = vsub.f32 %v2138, %v2139
  %v2141 = vand.u32 %v2140, 4294901760
  %2142 = vmatmul.mubr.f32.gmra.mrb[0].mxu0 %v2141
  %v2143 = vpop.f32.mrb[0].mxu0
  %v2144 = vadd.f32 %v2044, %v2143
  %v2145 = vpop.f32.mrb[0].mxu0
  %2146 = vdwg.mxu0
  %2147 = vmatprep.subr.mxu0 0.0
  %v2148 = vand.u32 %v2059, 4294901760
  %v2149 = vsub.f32 %v2059, %v2148
  %v2150 = vand.u32 %v2149, 4294901760
  %v2151 = vsub.f32 %v2149, %v2150
  %v2152 = vand.u32 %v2151, 4294901760
  %2153 = vmatpush1.msra.mxu0 %v2152
  %2154 = vmatprep.subr.mxu0 0.0
  %2155 = vmatpush1.msra.mxu0 0.0
  %2156 = vmatprep.subr.mxu0 0.0
  %2157 = vmatpush1.msra.mxu0 0.0
  %2158 = vmatprep.subr.mxu0 0.0
  %2159 = vmatpush1.msra.mxu0 0.0
  %2160 = vmatprep.subr.mxu0 0.0
  %2161 = vmatpush1.msra.mxu0 0.0
  %2162 = vmatprep.subr.mxu0 0.0
  %2163 = vmatpush1.msra.mxu0 0.0
  %2164 = vmatprep.subr.mxu0 0.0
  %2165 = vmatpush1.msra.mxu0 0.0
  %2166 = vmatprep.subr.mxu0 0.0
  %2167 = vmatpush1.msra.mxu0 0.0
  %2168 = vmatprep.subr.mxu0 0.0
  %2169 = vmatpush1.msra.mxu0 0.0
  %2170 = vmatprep.subr.mxu0 0.0
  %2171 = vmatpush1.msra.mxu0 0.0
  %2172 = vmatprep.subr.mxu0 0.0
  %2173 = vmatpush1.msra.mxu0 0.0
  %2174 = vmatprep.subr.mxu0 0.0
  %2175 = vmatpush1.msra.mxu0 0.0
  %2176 = vmatprep.subr.mxu0 0.0
  %2177 = vmatpush1.msra.mxu0 0.0
  %2178 = vmatprep.subr.mxu0 0.0
  %2179 = vmatpush1.msra.mxu0 0.0
  %2180 = vmatprep.subr.mxu0 0.0
  %2181 = vmatpush1.msra.mxu0 0.0
  %2182 = vmatprep.subr.mxu0 0.0
  %2183 = vmatpush1.msra.mxu0 0.0
  %2184 = vmatprep.subr.mxu0 0.0
  %2185 = vmatpush1.msra.mxu0 0.0
  %2186 = vmatprep.subr.mxu0 0.0
  %2187 = vmatpush1.msra.mxu0 0.0
  %2188 = vmatprep.subr.mxu0 0.0
  %2189 = vmatpush1.msra.mxu0 0.0
  %2190 = vmatprep.subr.mxu0 0.0
  %2191 = vmatpush1.msra.mxu0 0.0
  %2192 = vmatprep.subr.mxu0 0.0
  %2193 = vmatpush1.msra.mxu0 0.0
  %2194 = vmatprep.subr.mxu0 0.0
  %2195 = vmatpush1.msra.mxu0 0.0
  %2196 = vmatprep.subr.mxu0 0.0
  %2197 = vmatpush1.msra.mxu0 0.0
  %2198 = vmatprep.subr.mxu0 0.0
  %2199 = vmatpush1.msra.mxu0 0.0
  %2200 = vmatprep.subr.mxu0 0.0
  %2201 = vmatpush1.msra.mxu0 0.0
  %2202 = vmatprep.subr.mxu0 0.0
  %2203 = vmatpush1.msra.mxu0 0.0
  %2204 = vmatprep.subr.mxu0 0.0
  %2205 = vmatpush1.msra.mxu0 0.0
  %2206 = vmatprep.subr.mxu0 0.0
  %2207 = vmatpush1.msra.mxu0 0.0
  %2208 = vmatprep.subr.mxu0 0.0
  %2209 = vmatpush1.msra.mxu0 0.0
  %2210 = vmatprep.subr.mxu0 0.0
  %2211 = vmatpush1.msra.mxu0 0.0
  %2212 = vmatprep.subr.mxu0 0.0
  %2213 = vmatpush1.msra.mxu0 0.0
  %2214 = vmatprep.subr.mxu0 0.0
  %2215 = vmatpush1.msra.mxu0 0.0
  %2216 = vmatprep.mubr.f32.mxu0 0.0
  %v2217 = vand.u32 %v2053, 4294901760
  %2218 = vmatmul.mubr.f32.gmra.mrb[0].mxu0 %v2217
  %v2219 = vpop.f32.mrb[0].mxu0
  %v2220 = vadd.f32 %v2134, %v2219
  %v2221 = vpop.f32.mrb[0].mxu0
  %2222 = vmatprep.mubr.f32.mxu0 0.0
  %v2223 = vand.u32 %v2055, 4294901760
  %2224 = vmatmul.mubr.f32.gmra.mrb[0].mxu0 %v2223
  %v2225 = vpop.f32.mrb[0].mxu0
  %v2226 = vadd.f32 %v2144, %v2225
  %v2227 = vpop.f32.mrb[0].mxu0
  %2228 = vdwg.mxu0
  %2229 = vmatprep.subr.mxu0 0.0
  %v2230 = vand.u32 %v2059, 4294901760
  %v2231 = vsub.f32 %v2059, %v2230
  %2232 = vmatpush1.msra.mxu0 %v2231
  %2233 = vmatprep.subr.mxu0 0.0
  %2234 = vmatpush1.msra.mxu0 0.0
  %2235 = vmatprep.subr.mxu0 0.0
  %2236 = vmatpush1.msra.mxu0 0.0
  %2237 = vmatprep.subr.mxu0 0.0
  %2238 = vmatpush1.msra.mxu0 0.0
  %2239 = vmatprep.subr.mxu0 0.0
  %2240 = vmatpush1.msra.mxu0 0.0
  %2241 = vmatprep.subr.mxu0 0.0
  %2242 = vmatpush1.msra.mxu0 0.0
  %2243 = vmatprep.subr.mxu0 0.0
  %2244 = vmatpush1.msra.mxu0 0.0
  %2245 = vmatprep.subr.mxu0 0.0
  %2246 = vmatpush1.msra.mxu0 0.0
  %2247 = vmatprep.subr.mxu0 0.0
  %2248 = vmatpush1.msra.mxu0 0.0
  %2249 = vmatprep.subr.mxu0 0.0
  %2250 = vmatpush1.msra.mxu0 0.0
  %2251 = vmatprep.subr.mxu0 0.0
  %2252 = vmatpush1.msra.mxu0 0.0
  %2253 = vmatprep.subr.mxu0 0.0
  %2254 = vmatpush1.msra.mxu0 0.0
  %2255 = vmatprep.subr.mxu0 0.0
  %2256 = vmatpush1.msra.mxu0 0.0
  %2257 = vmatprep.subr.mxu0 0.0
  %2258 = vmatpush1.msra.mxu0 0.0
  %2259 = vmatprep.subr.mxu0 0.0
  %2260 = vmatpush1.msra.mxu0 0.0
  %2261 = vmatprep.subr.mxu0 0.0
  %2262 = vmatpush1.msra.mxu0 0.0
  %2263 = vmatprep.subr.mxu0 0.0
  %2264 = vmatpush1.msra.mxu0 0.0
  %2265 = vmatprep.subr.mxu0 0.0
  %2266 = vmatpush1.msra.mxu0 0.0
  %2267 = vmatprep.subr.mxu0 0.0
  %2268 = vmatpush1.msra.mxu0 0.0
  %2269 = vmatprep.subr.mxu0 0.0
  %2270 = vmatpush1.msra.mxu0 0.0
  %2271 = vmatprep.subr.mxu0 0.0
  %2272 = vmatpush1.msra.mxu0 0.0
  %2273 = vmatprep.subr.mxu0 0.0
  %2274 = vmatpush1.msra.mxu0 0.0
  %2275 = vmatprep.subr.mxu0 0.0
  %2276 = vmatpush1.msra.mxu0 0.0
  %2277 = vmatprep.subr.mxu0 0.0
  %2278 = vmatpush1.msra.mxu0 0.0
  %2279 = vmatprep.subr.mxu0 0.0
  %2280 = vmatpush1.msra.mxu0 0.0
  %2281 = vmatprep.subr.mxu0 0.0
  %2282 = vmatpush1.msra.mxu0 0.0
  %2283 = vmatprep.subr.mxu0 0.0
  %2284 = vmatpush1.msra.mxu0 0.0
  %2285 = vmatprep.subr.mxu0 0.0
  %2286 = vmatpush1.msra.mxu0 0.0
  %2287 = vmatprep.subr.mxu0 0.0
  %2288 = vmatpush1.msra.mxu0 0.0
  %2289 = vmatprep.subr.mxu0 0.0
  %2290 = vmatpush1.msra.mxu0 0.0
  %2291 = vmatprep.subr.mxu0 0.0
  %2292 = vmatpush1.msra.mxu0 0.0
  %2293 = vmatprep.subr.mxu0 0.0
  %2294 = vmatpush1.msra.mxu0 0.0
  %2295 = vmatprep.mubr.f32.mxu0 0.0
  %v2296 = vand.u32 %v2053, 4294901760
  %v2297 = vsub.f32 %v2053, %v2296
  %2298 = vmatmul.mubr.f32.gmra.mrb[0].mxu0 %v2297
  %v2299 = vpop.f32.mrb[0].mxu0
  %v2300 = vadd.f32 %v2220, %v2299
  %v2301 = vpop.f32.mrb[0].mxu0
  %2302 = vmatprep.mubr.f32.mxu0 0.0
  %v2303 = vand.u32 %v2055, 4294901760
  %v2304 = vsub.f32 %v2055, %v2303
  %2305 = vmatmul.mubr.f32.gmra.mrb[0].mxu0 %v2304
  %v2306 = vpop.f32.mrb[0].mxu0
  %v2307 = vadd.f32 %v2226, %v2306
  %v2308 = vpop.f32.mrb[0].mxu0
  %2309 = vdwg.mxu0
  %2310 = vmatprep.subr.mxu0 0.0
  %v2311 = vand.u32 %v2059, 4294901760
  %2312 = vmatpush1.msra.mxu0 %v2311
  %2313 = vmatprep.subr.mxu0 0.0
  %2314 = vmatpush1.msra.mxu0 0.0
  %2315 = vmatprep.subr.mxu0 0.0
  %2316 = vmatpush1.msra.mxu0 0.0
  %2317 = vmatprep.subr.mxu0 0.0
  %2318 = vmatpush1.msra.mxu0 0.0
  %2319 = vmatprep.subr.mxu0 0.0
  %2320 = vmatpush1.msra.mxu0 0.0
  %2321 = vmatprep.subr.mxu0 0.0
  %2322 = vmatpush1.msra.mxu0 0.0
  %2323 = vmatprep.subr.mxu0 0.0
  %2324 = vmatpush1.msra.mxu0 0.0
  %2325 = vmatprep.subr.mxu0 0.0
  %2326 = vmatpush1.msra.mxu0 0.0
  %2327 = vmatprep.subr.mxu0 0.0
  %2328 = vmatpush1.msra.mxu0 0.0
  %2329 = vmatprep.subr.mxu0 0.0
  %2330 = vmatpush1.msra.mxu0 0.0
  %2331 = vmatprep.subr.mxu0 0.0
  %2332 = vmatpush1.msra.mxu0 0.0
  %2333 = vmatprep.subr.mxu0 0.0
  %2334 = vmatpush1.msra.mxu0 0.0
  %2335 = vmatprep.subr.mxu0 0.0
  %2336 = vmatpush1.msra.mxu0 0.0
  %2337 = vmatprep.subr.mxu0 0.0
  %2338 = vmatpush1.msra.mxu0 0.0
  %2339 = vmatprep.subr.mxu0 0.0
  %2340 = vmatpush1.msra.mxu0 0.0
  %2341 = vmatprep.subr.mxu0 0.0
  %2342 = vmatpush1.msra.mxu0 0.0
  %2343 = vmatprep.subr.mxu0 0.0
  %2344 = vmatpush1.msra.mxu0 0.0
  %2345 = vmatprep.subr.mxu0 0.0
  %2346 = vmatpush1.msra.mxu0 0.0
  %2347 = vmatprep.subr.mxu0 0.0
  %2348 = vmatpush1.msra.mxu0 0.0
  %2349 = vmatprep.subr.mxu0 0.0
  %2350 = vmatpush1.msra.mxu0 0.0
  %2351 = vmatprep.subr.mxu0 0.0
  %2352 = vmatpush1.msra.mxu0 0.0
  %2353 = vmatprep.subr.mxu0 0.0
  %2354 = vmatpush1.msra.mxu0 0.0
  %2355 = vmatprep.subr.mxu0 0.0
  %2356 = vmatpush1.msra.mxu0 0.0
  %2357 = vmatprep.subr.mxu0 0.0
  %2358 = vmatpush1.msra.mxu0 0.0
  %2359 = vmatprep.subr.mxu0 0.0
  %2360 = vmatpush1.msra.mxu0 0.0
  %2361 = vmatprep.subr.mxu0 0.0
  %2362 = vmatpush1.msra.mxu0 0.0
  %2363 = vmatprep.subr.mxu0 0.0
  %2364 = vmatpush1.msra.mxu0 0.0
  %2365 = vmatprep.subr.mxu0 0.0
  %2366 = vmatpush1.msra.mxu0 0.0
  %2367 = vmatprep.subr.mxu0 0.0
  %2368 = vmatpush1.msra.mxu0 0.0
  %2369 = vmatprep.subr.mxu0 0.0
  %2370 = vmatpush1.msra.mxu0 0.0
  %2371 = vmatprep.subr.mxu0 0.0
  %2372 = vmatpush1.msra.mxu0 0.0
  %2373 = vmatprep.subr.mxu0 0.0
  %2374 = vmatpush1.msra.mxu0 0.0
  %2375 = vmatprep.mubr.f32.mxu0 0.0
  %v2376 = vand.u32 %v2053, 4294901760
  %v2377 = vsub.f32 %v2053, %v2376
  %v2378 = vand.u32 %v2377, 4294901760
  %2379 = vmatmul.mubr.f32.gmra.mrb[0].mxu0 %v2378
  %v2380 = vpop.f32.mrb[0].mxu0
  %v2381 = vadd.f32 %v2300, %v2380
  %v2382 = vpop.f32.mrb[0].mxu0
  %2383 = vmatprep.mubr.f32.mxu0 0.0
  %v2384 = vand.u32 %v2055, 4294901760
  %v2385 = vsub.f32 %v2055, %v2384
  %v2386 = vand.u32 %v2385, 4294901760
  %2387 = vmatmul.mubr.f32.gmra.mrb[0].mxu0 %v2386
  %v2388 = vpop.f32.mrb[0].mxu0
  %v2389 = vadd.f32 %v2307, %v2388
  %v2390 = vpop.f32.mrb[0].mxu0
  %2391 = vdwg.mxu0
  %2392 = vmatprep.subr.mxu0 0.0
  %v2393 = vand.u32 %v2059, 4294901760
  %v2394 = vsub.f32 %v2059, %v2393
  %v2395 = vand.u32 %v2394, 4294901760
  %2396 = vmatpush1.msra.mxu0 %v2395
  %2397 = vmatprep.subr.mxu0 0.0
  %2398 = vmatpush1.msra.mxu0 0.0
  %2399 = vmatprep.subr.mxu0 0.0
  %2400 = vmatpush1.msra.mxu0 0.0
  %2401 = vmatprep.subr.mxu0 0.0
  %2402 = vmatpush1.msra.mxu0 0.0
  %2403 = vmatprep.subr.mxu0 0.0
  %2404 = vmatpush1.msra.mxu0 0.0
  %2405 = vmatprep.subr.mxu0 0.0
  %2406 = vmatpush1.msra.mxu0 0.0
  %2407 = vmatprep.subr.mxu0 0.0
  %2408 = vmatpush1.msra.mxu0 0.0
  %2409 = vmatprep.subr.mxu0 0.0
  %2410 = vmatpush1.msra.mxu0 0.0
  %2411 = vmatprep.subr.mxu0 0.0
  %2412 = vmatpush1.msra.mxu0 0.0
  %2413 = vmatprep.subr.mxu0 0.0
  %2414 = vmatpush1.msra.mxu0 0.0
  %2415 = vmatprep.subr.mxu0 0.0
  %2416 = vmatpush1.msra.mxu0 0.0
  %2417 = vmatprep.subr.mxu0 0.0
  %2418 = vmatpush1.msra.mxu0 0.0
  %2419 = vmatprep.subr.mxu0 0.0
  %2420 = vmatpush1.msra.mxu0 0.0
  %2421 = vmatprep.subr.mxu0 0.0
  %2422 = vmatpush1.msra.mxu0 0.0
  %2423 = vmatprep.subr.mxu0 0.0
  %2424 = vmatpush1.msra.mxu0 0.0
  %2425 = vmatprep.subr.mxu0 0.0
  %2426 = vmatpush1.msra.mxu0 0.0
  %2427 = vmatprep.subr.mxu0 0.0
  %2428 = vmatpush1.msra.mxu0 0.0
  %2429 = vmatprep.subr.mxu0 0.0
  %2430 = vmatpush1.msra.mxu0 0.0
  %2431 = vmatprep.subr.mxu0 0.0
  %2432 = vmatpush1.msra.mxu0 0.0
  %2433 = vmatprep.subr.mxu0 0.0
  %2434 = vmatpush1.msra.mxu0 0.0
  %2435 = vmatprep.subr.mxu0 0.0
  %2436 = vmatpush1.msra.mxu0 0.0
  %2437 = vmatprep.subr.mxu0 0.0
  %2438 = vmatpush1.msra.mxu0 0.0
  %2439 = vmatprep.subr.mxu0 0.0
  %2440 = vmatpush1.msra.mxu0 0.0
  %2441 = vmatprep.subr.mxu0 0.0
  %2442 = vmatpush1.msra.mxu0 0.0
  %2443 = vmatprep.subr.mxu0 0.0
  %2444 = vmatpush1.msra.mxu0 0.0
  %2445 = vmatprep.subr.mxu0 0.0
  %2446 = vmatpush1.msra.mxu0 0.0
  %2447 = vmatprep.subr.mxu0 0.0
  %2448 = vmatpush1.msra.mxu0 0.0
  %2449 = vmatprep.subr.mxu0 0.0
  %2450 = vmatpush1.msra.mxu0 0.0
  %2451 = vmatprep.subr.mxu0 0.0
  %2452 = vmatpush1.msra.mxu0 0.0
  %2453 = vmatprep.subr.mxu0 0.0
  %2454 = vmatpush1.msra.mxu0 0.0
  %2455 = vmatprep.subr.mxu0 0.0
  %2456 = vmatpush1.msra.mxu0 0.0
  %2457 = vmatprep.subr.mxu0 0.0
  %2458 = vmatpush1.msra.mxu0 0.0
  %2459 = vmatprep.mubr.f32.mxu0 0.0
  %v2460 = vand.u32 %v2053, 4294901760
  %2461 = vmatmul.mubr.f32.gmra.mrb[0].mxu0 %v2460
  %v2462 = vpop.f32.mrb[0].mxu0
  %v2463 = vadd.f32 %v2381, %v2462
  %v2464 = vpop.f32.mrb[0].mxu0
  %2465 = vmatprep.mubr.f32.mxu0 0.0
  %v2466 = vand.u32 %v2055, 4294901760
  %2467 = vmatmul.mubr.f32.gmra.mrb[0].mxu0 %v2466
  %v2468 = vpop.f32.mrb[0].mxu0
  %v2469 = vadd.f32 %v2389, %v2468
  %v2470 = vpop.f32.mrb[0].mxu0
  %2471 = vdwg.mxu0
  %2472 = vmatprep.subr.mxu0 0.0
  %v2473 = vand.u32 %v2059, 4294901760
  %2474 = vmatpush1.msra.mxu0 %v2473
  %2475 = vmatprep.subr.mxu0 0.0
  %2476 = vmatpush1.msra.mxu0 0.0
  %2477 = vmatprep.subr.mxu0 0.0
  %2478 = vmatpush1.msra.mxu0 0.0
  %2479 = vmatprep.subr.mxu0 0.0
  %2480 = vmatpush1.msra.mxu0 0.0
  %2481 = vmatprep.subr.mxu0 0.0
  %2482 = vmatpush1.msra.mxu0 0.0
  %2483 = vmatprep.subr.mxu0 0.0
  %2484 = vmatpush1.msra.mxu0 0.0
  %2485 = vmatprep.subr.mxu0 0.0
  %2486 = vmatpush1.msra.mxu0 0.0
  %2487 = vmatprep.subr.mxu0 0.0
  %2488 = vmatpush1.msra.mxu0 0.0
  %2489 = vmatprep.subr.mxu0 0.0
  %2490 = vmatpush1.msra.mxu0 0.0
  %2491 = vmatprep.subr.mxu0 0.0
  %2492 = vmatpush1.msra.mxu0 0.0
  %2493 = vmatprep.subr.mxu0 0.0
  %2494 = vmatpush1.msra.mxu0 0.0
  %2495 = vmatprep.subr.mxu0 0.0
  %2496 = vmatpush1.msra.mxu0 0.0
  %2497 = vmatprep.subr.mxu0 0.0
  %2498 = vmatpush1.msra.mxu0 0.0
  %2499 = vmatprep.subr.mxu0 0.0
  %2500 = vmatpush1.msra.mxu0 0.0
  %2501 = vmatprep.subr.mxu0 0.0
  %2502 = vmatpush1.msra.mxu0 0.0
  %2503 = vmatprep.subr.mxu0 0.0
  %2504 = vmatpush1.msra.mxu0 0.0
  %2505 = vmatprep.subr.mxu0 0.0
  %2506 = vmatpush1.msra.mxu0 0.0
  %2507 = vmatprep.subr.mxu0 0.0
  %2508 = vmatpush1.msra.mxu0 0.0
  %2509 = vmatprep.subr.mxu0 0.0
  %2510 = vmatpush1.msra.mxu0 0.0
  %2511 = vmatprep.subr.mxu0 0.0
  %2512 = vmatpush1.msra.mxu0 0.0
  %2513 = vmatprep.subr.mxu0 0.0
  %2514 = vmatpush1.msra.mxu0 0.0
  %2515 = vmatprep.subr.mxu0 0.0
  %2516 = vmatpush1.msra.mxu0 0.0
  %2517 = vmatprep.subr.mxu0 0.0
  %2518 = vmatpush1.msra.mxu0 0.0
  %2519 = vmatprep.subr.mxu0 0.0
  %2520 = vmatpush1.msra.mxu0 0.0
  %2521 = vmatprep.subr.mxu0 0.0
  %2522 = vmatpush1.msra.mxu0 0.0
  %2523 = vmatprep.subr.mxu0 0.0
  %2524 = vmatpush1.msra.mxu0 0.0
  %2525 = vmatprep.subr.mxu0 0.0
  %2526 = vmatpush1.msra.mxu0 0.0
  %2527 = vmatprep.subr.mxu0 0.0
  %2528 = vmatpush1.msra.mxu0 0.0
  %2529 = vmatprep.subr.mxu0 0.0
  %2530 = vmatpush1.msra.mxu0 0.0
  %2531 = vmatprep.subr.mxu0 0.0
  %2532 = vmatpush1.msra.mxu0 0.0
  %2533 = vmatprep.subr.mxu0 0.0
  %2534 = vmatpush1.msra.mxu0 0.0
  %2535 = vmatprep.subr.mxu0 0.0
  %2536 = vmatpush1.msra.mxu0 0.0
  %2537 = vmatprep.mubr.f32.mxu0 0.0
  %v2538 = vand.u32 %v2053, 4294901760
  %2539 = vmatmul.mubr.f32.gmra.mrb[0].mxu0 %v2538
  %v2540 = vpop.f32.mrb[0].mxu0
  %v2541 = vadd.f32 %v2463, %v2540
  %v2542 = vpop.f32.mrb[0].mxu0
  %2543 = vmatprep.mubr.f32.mxu0 0.0
  %v2544 = vand.u32 %v2055, 4294901760
  %2545 = vmatmul.mubr.f32.gmra.mrb[0].mxu0 %v2544
  %v2546 = vpop.f32.mrb[0].mxu0
  %v2547 = vadd.f32 %v2469, %v2546
  %v2548 = vpop.f32.mrb[0].mxu0
  %2549 = vdwg.mxu0
  %v2550 = vmax.f32 %v2541, 0.0
  %v2551 = vmax.f32 %v2547, 0.0
  %v2552 = vld [vmem:[%s14] sm:$0xff]
  %v2553 = vld [vmem:[%s14 + $0x8] sm:$0xff]
  %v2554 = vld [vmem:[%s14 + $0x10] sm:$0xff]
  %v2555 = vld [vmem:[%s14 + $0x18] sm:$0xff]
  %v2556 = vld [vmem:[%s15] sm:$0x1]
  %v2558 = vlaneseq
  %v2559 = vshrl.u32 %v2558, 7
  %v2560 = vsub.s32 0, %v2559
  %v2561 = vrot.slane %v2556, %v2560
  %vm2563 = vcmask 261120
  %v2565 = vsel %vm2563, %v2550, 0
  %v2568 = vsel %vm2563, %v2551, 0
  %2570 = vmatprep.subr.mxu0 0.0
  %v2571 = vand.u32 %v2552, 4294901760
  %2572 = vmatpush1.msra.mxu0 %v2571
  %2573 = vmatprep.subr.mxu0 0.0
  %v2574 = vand.u32 %v2553, 4294901760
  %2575 = vmatpush1.msra.mxu0 %v2574
  %2576 = vmatprep.subr.mxu0 0.0
  %v2577 = vand.u32 %v2554, 4294901760
  %2578 = vmatpush1.msra.mxu0 %v2577
  %2579 = vmatprep.subr.mxu0 0.0
  %v2580 = vand.u32 %v2555, 4294901760
  %2581 = vmatpush1.msra.mxu0 %v2580
  %2582 = vmatprep.subr.mxu0 0.0
  %2583 = vmatpush1.msra.mxu0 0.0
  %2584 = vmatprep.subr.mxu0 0.0
  %2585 = vmatpush1.msra.mxu0 0.0
  %2586 = vmatprep.subr.mxu0 0.0
  %2587 = vmatpush1.msra.mxu0 0.0
  %2588 = vmatprep.subr.mxu0 0.0
  %2589 = vmatpush1.msra.mxu0 0.0
  %2590 = vmatprep.subr.mxu0 0.0
  %2591 = vmatpush1.msra.mxu0 0.0
  %2592 = vmatprep.subr.mxu0 0.0
  %2593 = vmatpush1.msra.mxu0 0.0
  %2594 = vmatprep.subr.mxu0 0.0
  %2595 = vmatpush1.msra.mxu0 0.0
  %2596 = vmatprep.subr.mxu0 0.0
  %2597 = vmatpush1.msra.mxu0 0.0
  %2598 = vmatprep.subr.mxu0 0.0
  %2599 = vmatpush1.msra.mxu0 0.0
  %2600 = vmatprep.subr.mxu0 0.0
  %2601 = vmatpush1.msra.mxu0 0.0
  %2602 = vmatprep.subr.mxu0 0.0
  %2603 = vmatpush1.msra.mxu0 0.0
  %2604 = vmatprep.subr.mxu0 0.0
  %2605 = vmatpush1.msra.mxu0 0.0
  %2606 = vmatprep.subr.mxu0 0.0
  %2607 = vmatpush1.msra.mxu0 0.0
  %2608 = vmatprep.subr.mxu0 0.0
  %2609 = vmatpush1.msra.mxu0 0.0
  %2610 = vmatprep.subr.mxu0 0.0
  %2611 = vmatpush1.msra.mxu0 0.0
  %2612 = vmatprep.subr.mxu0 0.0
  %2613 = vmatpush1.msra.mxu0 0.0
  %2614 = vmatprep.subr.mxu0 0.0
  %2615 = vmatpush1.msra.mxu0 0.0
  %2616 = vmatprep.subr.mxu0 0.0
  %2617 = vmatpush1.msra.mxu0 0.0
  %2618 = vmatprep.subr.mxu0 0.0
  %2619 = vmatpush1.msra.mxu0 0.0
  %2620 = vmatprep.subr.mxu0 0.0
  %2621 = vmatpush1.msra.mxu0 0.0
  %2622 = vmatprep.subr.mxu0 0.0
  %2623 = vmatpush1.msra.mxu0 0.0
  %2624 = vmatprep.subr.mxu0 0.0
  %2625 = vmatpush1.msra.mxu0 0.0
  %2626 = vmatprep.subr.mxu0 0.0
  %2627 = vmatpush1.msra.mxu0 0.0
  %2628 = vmatprep.subr.mxu0 0.0
  %2629 = vmatpush1.msra.mxu0 0.0
  %2630 = vmatprep.subr.mxu0 0.0
  %2631 = vmatpush1.msra.mxu0 0.0
  %2632 = vmatprep.subr.mxu0 0.0
  %2633 = vmatpush1.msra.mxu0 0.0
  %2634 = vmatprep.subr.mxu0 0.0
  %2635 = vmatpush1.msra.mxu0 0.0
  %2636 = vmatprep.subr.mxu0 0.0
  %2637 = vmatpush1.msra.mxu0 0.0
  %2638 = vmatprep.mubr.f32.mxu0 0.0
  %v2639 = vand.u32 %v2565, 4294901760
  %v2640 = vsub.f32 %v2565, %v2639
  %v2641 = vand.u32 %v2640, 4294901760
  %v2642 = vsub.f32 %v2640, %v2641
  %v2643 = vand.u32 %v2642, 4294901760
  %2644 = vmatmul.mubr.f32.gmra.mrb[0].mxu0 %v2643
  %v2645 = vpop.f32.mrb[0].mxu0
  %v2646 = vadd.f32 %v2561, %v2645
  %v2647 = vpop.f32.mrb[0].mxu0
  %2648 = vmatprep.mubr.f32.mxu0 0.0
  %v2649 = vand.u32 %v2568, 4294901760
  %v2650 = vsub.f32 %v2568, %v2649
  %v2651 = vand.u32 %v2650, 4294901760
  %v2652 = vsub.f32 %v2650, %v2651
  %v2653 = vand.u32 %v2652, 4294901760
  %2654 = vmatmul.mubr.f32.gmra.mrb[0].mxu0 %v2653
  %v2655 = vpop.f32.mrb[0].mxu0
  %v2656 = vadd.f32 %v2561, %v2655
  %v2657 = vpop.f32.mrb[0].mxu0
  %2658 = vdwg.mxu0
  %2659 = vmatprep.subr.mxu0 0.0
  %v2660 = vand.u32 %v2552, 4294901760
  %v2661 = vsub.f32 %v2552, %v2660
  %v2662 = vand.u32 %v2661, 4294901760
  %v2663 = vsub.f32 %v2661, %v2662
  %v2664 = vand.u32 %v2663, 4294901760
  %2665 = vmatpush1.msra.mxu0 %v2664
  %2666 = vmatprep.subr.mxu0 0.0
  %v2667 = vand.u32 %v2553, 4294901760
  %v2668 = vsub.f32 %v2553, %v2667
  %v2669 = vand.u32 %v2668, 4294901760
  %v2670 = vsub.f32 %v2668, %v2669
  %v2671 = vand.u32 %v2670, 4294901760
  %2672 = vmatpush1.msra.mxu0 %v2671
  %2673 = vmatprep.subr.mxu0 0.0
  %v2674 = vand.u32 %v2554, 4294901760
  %v2675 = vsub.f32 %v2554, %v2674
  %v2676 = vand.u32 %v2675, 4294901760
  %v2677 = vsub.f32 %v2675, %v2676
  %v2678 = vand.u32 %v2677, 4294901760
  %2679 = vmatpush1.msra.mxu0 %v2678
  %2680 = vmatprep.subr.mxu0 0.0
  %v2681 = vand.u32 %v2555, 4294901760
  %v2682 = vsub.f32 %v2555, %v2681
  %v2683 = vand.u32 %v2682, 4294901760
  %v2684 = vsub.f32 %v2682, %v2683
  %v2685 = vand.u32 %v2684, 4294901760
  %2686 = vmatpush1.msra.mxu0 %v2685
  %2687 = vmatprep.subr.mxu0 0.0
  %2688 = vmatpush1.msra.mxu0 0.0
  %2689 = vmatprep.subr.mxu0 0.0
  %2690 = vmatpush1.msra.mxu0 0.0
  %2691 = vmatprep.subr.mxu0 0.0
  %2692 = vmatpush1.msra.mxu0 0.0
  %2693 = vmatprep.subr.mxu0 0.0
  %2694 = vmatpush1.msra.mxu0 0.0
  %2695 = vmatprep.subr.mxu0 0.0
  %2696 = vmatpush1.msra.mxu0 0.0
  %2697 = vmatprep.subr.mxu0 0.0
  %2698 = vmatpush1.msra.mxu0 0.0
  %2699 = vmatprep.subr.mxu0 0.0
  %2700 = vmatpush1.msra.mxu0 0.0
  %2701 = vmatprep.subr.mxu0 0.0
  %2702 = vmatpush1.msra.mxu0 0.0
  %2703 = vmatprep.subr.mxu0 0.0
  %2704 = vmatpush1.msra.mxu0 0.0
  %2705 = vmatprep.subr.mxu0 0.0
  %2706 = vmatpush1.msra.mxu0 0.0
  %2707 = vmatprep.subr.mxu0 0.0
  %2708 = vmatpush1.msra.mxu0 0.0
  %2709 = vmatprep.subr.mxu0 0.0
  %2710 = vmatpush1.msra.mxu0 0.0
  %2711 = vmatprep.subr.mxu0 0.0
  %2712 = vmatpush1.msra.mxu0 0.0
  %2713 = vmatprep.subr.mxu0 0.0
  %2714 = vmatpush1.msra.mxu0 0.0
  %2715 = vmatprep.subr.mxu0 0.0
  %2716 = vmatpush1.msra.mxu0 0.0
  %2717 = vmatprep.subr.mxu0 0.0
  %2718 = vmatpush1.msra.mxu0 0.0
  %2719 = vmatprep.subr.mxu0 0.0
  %2720 = vmatpush1.msra.mxu0 0.0
  %2721 = vmatprep.subr.mxu0 0.0
  %2722 = vmatpush1.msra.mxu0 0.0
  %2723 = vmatprep.subr.mxu0 0.0
  %2724 = vmatpush1.msra.mxu0 0.0
  %2725 = vmatprep.subr.mxu0 0.0
  %2726 = vmatpush1.msra.mxu0 0.0
  %2727 = vmatprep.subr.mxu0 0.0
  %2728 = vmatpush1.msra.mxu0 0.0
  %2729 = vmatprep.subr.mxu0 0.0
  %2730 = vmatpush1.msra.mxu0 0.0
  %2731 = vmatprep.subr.mxu0 0.0
  %2732 = vmatpush1.msra.mxu0 0.0
  %2733 = vmatprep.subr.mxu0 0.0
  %2734 = vmatpush1.msra.mxu0 0.0
  %2735 = vmatprep.subr.mxu0 0.0
  %2736 = vmatpush1.msra.mxu0 0.0
  %2737 = vmatprep.subr.mxu0 0.0
  %2738 = vmatpush1.msra.mxu0 0.0
  %2739 = vmatprep.subr.mxu0 0.0
  %2740 = vmatpush1.msra.mxu0 0.0
  %2741 = vmatprep.subr.mxu0 0.0
  %2742 = vmatpush1.msra.mxu0 0.0
  %2743 = vmatprep.mubr.f32.mxu0 0.0
  %v2744 = vand.u32 %v2565, 4294901760
  %2745 = vmatmul.mubr.f32.gmra.mrb[0].mxu0 %v2744
  %v2746 = vpop.f32.mrb[0].mxu0
  %v2747 = vadd.f32 %v2646, %v2746
  %v2748 = vpop.f32.mrb[0].mxu0
  %2749 = vmatprep.mubr.f32.mxu0 0.0
  %v2750 = vand.u32 %v2568, 4294901760
  %2751 = vmatmul.mubr.f32.gmra.mrb[0].mxu0 %v2750
  %v2752 = vpop.f32.mrb[0].mxu0
  %v2753 = vadd.f32 %v2656, %v2752
  %v2754 = vpop.f32.mrb[0].mxu0
  %2755 = vdwg.mxu0
  %2756 = vmatprep.subr.mxu0 0.0
  %v2757 = vand.u32 %v2552, 4294901760
  %v2758 = vsub.f32 %v2552, %v2757
  %2759 = vmatpush1.msra.mxu0 %v2758
  %2760 = vmatprep.subr.mxu0 0.0
  %v2761 = vand.u32 %v2553, 4294901760
  %v2762 = vsub.f32 %v2553, %v2761
  %2763 = vmatpush1.msra.mxu0 %v2762
  %2764 = vmatprep.subr.mxu0 0.0
  %v2765 = vand.u32 %v2554, 4294901760
  %v2766 = vsub.f32 %v2554, %v2765
  %2767 = vmatpush1.msra.mxu0 %v2766
  %2768 = vmatprep.subr.mxu0 0.0
  %v2769 = vand.u32 %v2555, 4294901760
  %v2770 = vsub.f32 %v2555, %v2769
  %2771 = vmatpush1.msra.mxu0 %v2770
  %2772 = vmatprep.subr.mxu0 0.0
  %2773 = vmatpush1.msra.mxu0 0.0
  %2774 = vmatprep.subr.mxu0 0.0
  %2775 = vmatpush1.msra.mxu0 0.0
  %2776 = vmatprep.subr.mxu0 0.0
  %2777 = vmatpush1.msra.mxu0 0.0
  %2778 = vmatprep.subr.mxu0 0.0
  %2779 = vmatpush1.msra.mxu0 0.0
  %2780 = vmatprep.subr.mxu0 0.0
  %2781 = vmatpush1.msra.mxu0 0.0
  %2782 = vmatprep.subr.mxu0 0.0
  %2783 = vmatpush1.msra.mxu0 0.0
  %2784 = vmatprep.subr.mxu0 0.0
  %2785 = vmatpush1.msra.mxu0 0.0
  %2786 = vmatprep.subr.mxu0 0.0
  %2787 = vmatpush1.msra.mxu0 0.0
  %2788 = vmatprep.subr.mxu0 0.0
  %2789 = vmatpush1.msra.mxu0 0.0
  %2790 = vmatprep.subr.mxu0 0.0
  %2791 = vmatpush1.msra.mxu0 0.0
  %2792 = vmatprep.subr.mxu0 0.0
  %2793 = vmatpush1.msra.mxu0 0.0
  %2794 = vmatprep.subr.mxu0 0.0
  %2795 = vmatpush1.msra.mxu0 0.0
  %2796 = vmatprep.subr.mxu0 0.0
  %2797 = vmatpush1.msra.mxu0 0.0
  %2798 = vmatprep.subr.mxu0 0.0
  %2799 = vmatpush1.msra.mxu0 0.0
  %2800 = vmatprep.subr.mxu0 0.0
  %2801 = vmatpush1.msra.mxu0 0.0
  %2802 = vmatprep.subr.mxu0 0.0
  %2803 = vmatpush1.msra.mxu0 0.0
  %2804 = vmatprep.subr.mxu0 0.0
  %2805 = vmatpush1.msra.mxu0 0.0
  %2806 = vmatprep.subr.mxu0 0.0
  %2807 = vmatpush1.msra.mxu0 0.0
  %2808 = vmatprep.subr.mxu0 0.0
  %2809 = vmatpush1.msra.mxu0 0.0
  %2810 = vmatprep.subr.mxu0 0.0
  %2811 = vmatpush1.msra.mxu0 0.0
  %2812 = vmatprep.subr.mxu0 0.0
  %2813 = vmatpush1.msra.mxu0 0.0
  %2814 = vmatprep.subr.mxu0 0.0
  %2815 = vmatpush1.msra.mxu0 0.0
  %2816 = vmatprep.subr.mxu0 0.0
  %2817 = vmatpush1.msra.mxu0 0.0
  %2818 = vmatprep.subr.mxu0 0.0
  %2819 = vmatpush1.msra.mxu0 0.0
  %2820 = vmatprep.subr.mxu0 0.0
  %2821 = vmatpush1.msra.mxu0 0.0
  %2822 = vmatprep.subr.mxu0 0.0
  %2823 = vmatpush1.msra.mxu0 0.0
  %2824 = vmatprep.subr.mxu0 0.0
  %2825 = vmatpush1.msra.mxu0 0.0
  %2826 = vmatprep.subr.mxu0 0.0
  %2827 = vmatpush1.msra.mxu0 0.0
  %2828 = vmatprep.mubr.f32.mxu0 0.0
  %v2829 = vand.u32 %v2565, 4294901760
  %v2830 = vsub.f32 %v2565, %v2829
  %2831 = vmatmul.mubr.f32.gmra.mrb[0].mxu0 %v2830
  %v2832 = vpop.f32.mrb[0].mxu0
  %v2833 = vadd.f32 %v2747, %v2832
  %v2834 = vpop.f32.mrb[0].mxu0
  %2835 = vmatprep.mubr.f32.mxu0 0.0
  %v2836 = vand.u32 %v2568, 4294901760
  %v2837 = vsub.f32 %v2568, %v2836
  %2838 = vmatmul.mubr.f32.gmra.mrb[0].mxu0 %v2837
  %v2839 = vpop.f32.mrb[0].mxu0
  %v2840 = vadd.f32 %v2753, %v2839
  %v2841 = vpop.f32.mrb[0].mxu0
  %2842 = vdwg.mxu0
  %2843 = vmatprep.subr.mxu0 0.0
  %v2844 = vand.u32 %v2552, 4294901760
  %2845 = vmatpush1.msra.mxu0 %v2844
  %2846 = vmatprep.subr.mxu0 0.0
  %v2847 = vand.u32 %v2553, 4294901760
  %2848 = vmatpush1.msra.mxu0 %v2847
  %2849 = vmatprep.subr.mxu0 0.0
  %v2850 = vand.u32 %v2554, 4294901760
  %2851 = vmatpush1.msra.mxu0 %v2850
  %2852 = vmatprep.subr.mxu0 0.0
  %v2853 = vand.u32 %v2555, 4294901760
  %2854 = vmatpush1.msra.mxu0 %v2853
  %2855 = vmatprep.subr.mxu0 0.0
  %2856 = vmatpush1.msra.mxu0 0.0
  %2857 = vmatprep.subr.mxu0 0.0
  %2858 = vmatpush1.msra.mxu0 0.0
  %2859 = vmatprep.subr.mxu0 0.0
  %2860 = vmatpush1.msra.mxu0 0.0
  %2861 = vmatprep.subr.mxu0 0.0
  %2862 = vmatpush1.msra.mxu0 0.0
  %2863 = vmatprep.subr.mxu0 0.0
  %2864 = vmatpush1.msra.mxu0 0.0
  %2865 = vmatprep.subr.mxu0 0.0
  %2866 = vmatpush1.msra.mxu0 0.0
  %2867 = vmatprep.subr.mxu0 0.0
  %2868 = vmatpush1.msra.mxu0 0.0
  %2869 = vmatprep.subr.mxu0 0.0
  %2870 = vmatpush1.msra.mxu0 0.0
  %2871 = vmatprep.subr.mxu0 0.0
  %2872 = vmatpush1.msra.mxu0 0.0
  %2873 = vmatprep.subr.mxu0 0.0
  %2874 = vmatpush1.msra.mxu0 0.0
  %2875 = vmatprep.subr.mxu0 0.0
  %2876 = vmatpush1.msra.mxu0 0.0
  %2877 = vmatprep.subr.mxu0 0.0
  %2878 = vmatpush1.msra.mxu0 0.0
  %2879 = vmatprep.subr.mxu0 0.0
  %2880 = vmatpush1.msra.mxu0 0.0
  %2881 = vmatprep.subr.mxu0 0.0
  %2882 = vmatpush1.msra.mxu0 0.0
  %2883 = vmatprep.subr.mxu0 0.0
  %2884 = vmatpush1.msra.mxu0 0.0
  %2885 = vmatprep.subr.mxu0 0.0
  %2886 = vmatpush1.msra.mxu0 0.0
  %2887 = vmatprep.subr.mxu0 0.0
  %2888 = vmatpush1.msra.mxu0 0.0
  %2889 = vmatprep.subr.mxu0 0.0
  %2890 = vmatpush1.msra.mxu0 0.0
  %2891 = vmatprep.subr.mxu0 0.0
  %2892 = vmatpush1.msra.mxu0 0.0
  %2893 = vmatprep.subr.mxu0 0.0
  %2894 = vmatpush1.msra.mxu0 0.0
  %2895 = vmatprep.subr.mxu0 0.0
  %2896 = vmatpush1.msra.mxu0 0.0
  %2897 = vmatprep.subr.mxu0 0.0
  %2898 = vmatpush1.msra.mxu0 0.0
  %2899 = vmatprep.subr.mxu0 0.0
  %2900 = vmatpush1.msra.mxu0 0.0
  %2901 = vmatprep.subr.mxu0 0.0
  %2902 = vmatpush1.msra.mxu0 0.0
  %2903 = vmatprep.subr.mxu0 0.0
  %2904 = vmatpush1.msra.mxu0 0.0
  %2905 = vmatprep.subr.mxu0 0.0
  %2906 = vmatpush1.msra.mxu0 0.0
  %2907 = vmatprep.subr.mxu0 0.0
  %2908 = vmatpush1.msra.mxu0 0.0
  %2909 = vmatprep.subr.mxu0 0.0
  %2910 = vmatpush1.msra.mxu0 0.0
  %2911 = vmatprep.mubr.f32.mxu0 0.0
  %v2912 = vand.u32 %v2565, 4294901760
  %v2913 = vsub.f32 %v2565, %v2912
  %v2914 = vand.u32 %v2913, 4294901760
  %2915 = vmatmul.mubr.f32.gmra.mrb[0].mxu0 %v2914
  %v2916 = vpop.f32.mrb[0].mxu0
  %v2917 = vadd.f32 %v2833, %v2916
  %v2918 = vpop.f32.mrb[0].mxu0
  %2919 = vmatprep.mubr.f32.mxu0 0.0
  %v2920 = vand.u32 %v2568, 4294901760
  %v2921 = vsub.f32 %v2568, %v2920
  %v2922 = vand.u32 %v2921, 4294901760
  %2923 = vmatmul.mubr.f32.gmra.mrb[0].mxu0 %v2922
  %v2924 = vpop.f32.mrb[0].mxu0
  %v2925 = vadd.f32 %v2840, %v2924
  %v2926 = vpop.f32.mrb[0].mxu0
  %2927 = vdwg.mxu0
  %2928 = vmatprep.subr.mxu0 0.0
  %v2929 = vand.u32 %v2552, 4294901760
  %v2930 = vsub.f32 %v2552, %v2929
  %v2931 = vand.u32 %v2930, 4294901760
  %2932 = vmatpush1.msra.mxu0 %v2931
  %2933 = vmatprep.subr.mxu0 0.0
  %v2934 = vand.u32 %v2553, 4294901760
  %v2935 = vsub.f32 %v2553, %v2934
  %v2936 = vand.u32 %v2935, 4294901760
  %2937 = vmatpush1.msra.mxu0 %v2936
  %2938 = vmatprep.subr.mxu0 0.0
  %v2939 = vand.u32 %v2554, 4294901760
  %v2940 = vsub.f32 %v2554, %v2939
  %v2941 = vand.u32 %v2940, 4294901760
  %2942 = vmatpush1.msra.mxu0 %v2941
  %2943 = vmatprep.subr.mxu0 0.0
  %v2944 = vand.u32 %v2555, 4294901760
  %v2945 = vsub.f32 %v2555, %v2944
  %v2946 = vand.u32 %v2945, 4294901760
  %2947 = vmatpush1.msra.mxu0 %v2946
  %2948 = vmatprep.subr.mxu0 0.0
  %2949 = vmatpush1.msra.mxu0 0.0
  %2950 = vmatprep.subr.mxu0 0.0
  %2951 = vmatpush1.msra.mxu0 0.0
  %2952 = vmatprep.subr.mxu0 0.0
  %2953 = vmatpush1.msra.mxu0 0.0
  %2954 = vmatprep.subr.mxu0 0.0
  %2955 = vmatpush1.msra.mxu0 0.0
  %2956 = vmatprep.subr.mxu0 0.0
  %2957 = vmatpush1.msra.mxu0 0.0
  %2958 = vmatprep.subr.mxu0 0.0
  %2959 = vmatpush1.msra.mxu0 0.0
  %2960 = vmatprep.subr.mxu0 0.0
  %2961 = vmatpush1.msra.mxu0 0.0
  %2962 = vmatprep.subr.mxu0 0.0
  %2963 = vmatpush1.msra.mxu0 0.0
  %2964 = vmatprep.subr.mxu0 0.0
  %2965 = vmatpush1.msra.mxu0 0.0
  %2966 = vmatprep.subr.mxu0 0.0
  %2967 = vmatpush1.msra.mxu0 0.0
  %2968 = vmatprep.subr.mxu0 0.0
  %2969 = vmatpush1.msra.mxu0 0.0
  %2970 = vmatprep.subr.mxu0 0.0
  %2971 = vmatpush1.msra.mxu0 0.0
  %2972 = vmatprep.subr.mxu0 0.0
  %2973 = vmatpush1.msra.mxu0 0.0
  %2974 = vmatprep.subr.mxu0 0.0
  %2975 = vmatpush1.msra.mxu0 0.0
  %2976 = vmatprep.subr.mxu0 0.0
  %2977 = vmatpush1.msra.mxu0 0.0
  %2978 = vmatprep.subr.mxu0 0.0
  %2979 = vmatpush1.msra.mxu0 0.0
  %2980 = vmatprep.subr.mxu0 0.0
  %2981 = vmatpush1.msra.mxu0 0.0
  %2982 = vmatprep.subr.mxu0 0.0
  %2983 = vmatpush1.msra.mxu0 0.0
  %2984 = vmatprep.subr.mxu0 0.0
  %2985 = vmatpush1.msra.mxu0 0.0
  %2986 = vmatprep.subr.mxu0 0.0
  %2987 = vmatpush1.msra.mxu0 0.0
  %2988 = vmatprep.subr.mxu0 0.0
  %2989 = vmatpush1.msra.mxu0 0.0
  %2990 = vmatprep.subr.mxu0 0.0
  %2991 = vmatpush1.msra.mxu0 0.0
  %2992 = vmatprep.subr.mxu0 0.0
  %2993 = vmatpush1.msra.mxu0 0.0
  %2994 = vmatprep.subr.mxu0 0.0
  %2995 = vmatpush1.msra.mxu0 0.0
  %2996 = vmatprep.subr.mxu0 0.0
  %2997 = vmatpush1.msra.mxu0 0.0
  %2998 = vmatprep.subr.mxu0 0.0
  %2999 = vmatpush1.msra.mxu0 0.0
  %3000 = vmatprep.subr.mxu0 0.0
  %3001 = vmatpush1.msra.mxu0 0.0
  %3002 = vmatprep.subr.mxu0 0.0
  %3003 = vmatpush1.msra.mxu0 0.0
  %3004 = vmatprep.mubr.f32.mxu0 0.0
  %v3005 = vand.u32 %v2565, 4294901760
  %3006 = vmatmul.mubr.f32.gmra.mrb[0].mxu0 %v3005
  %v3007 = vpop.f32.mrb[0].mxu0
  %v3008 = vadd.f32 %v2917, %v3007
  %v3009 = vpop.f32.mrb[0].mxu0
  %3010 = vmatprep.mubr.f32.mxu0 0.0
  %v3011 = vand.u32 %v2568, 4294901760
  %3012 = vmatmul.mubr.f32.gmra.mrb[0].mxu0 %v3011
  %v3013 = vpop.f32.mrb[0].mxu0
  %v3014 = vadd.f32 %v2925, %v3013
  %v3015 = vpop.f32.mrb[0].mxu0
  %3016 = vdwg.mxu0
  %3017 = vmatprep.subr.mxu0 0.0
  %v3018 = vand.u32 %v2552, 4294901760
  %3019 = vmatpush1.msra.mxu0 %v3018
  %3020 = vmatprep.subr.mxu0 0.0
  %v3021 = vand.u32 %v2553, 4294901760
  %3022 = vmatpush1.msra.mxu0 %v3021
  %3023 = vmatprep.subr.mxu0 0.0
  %v3024 = vand.u32 %v2554, 4294901760
  %3025 = vmatpush1.msra.mxu0 %v3024
  %3026 = vmatprep.subr.mxu0 0.0
  %v3027 = vand.u32 %v2555, 4294901760
  %3028 = vmatpush1.msra.mxu0 %v3027
  %3029 = vmatprep.subr.mxu0 0.0
  %3030 = vmatpush1.msra.mxu0 0.0
  %3031 = vmatprep.subr.mxu0 0.0
  %3032 = vmatpush1.msra.mxu0 0.0
  %3033 = vmatprep.subr.mxu0 0.0
  %3034 = vmatpush1.msra.mxu0 0.0
  %3035 = vmatprep.subr.mxu0 0.0
  %3036 = vmatpush1.msra.mxu0 0.0
  %3037 = vmatprep.subr.mxu0 0.0
  %3038 = vmatpush1.msra.mxu0 0.0
  %3039 = vmatprep.subr.mxu0 0.0
  %3040 = vmatpush1.msra.mxu0 0.0
  %3041 = vmatprep.subr.mxu0 0.0
  %3042 = vmatpush1.msra.mxu0 0.0
  %3043 = vmatprep.subr.mxu0 0.0
  %3044 = vmatpush1.msra.mxu0 0.0
  %3045 = vmatprep.subr.mxu0 0.0
  %3046 = vmatpush1.msra.mxu0 0.0
  %3047 = vmatprep.subr.mxu0 0.0
  %3048 = vmatpush1.msra.mxu0 0.0
  %3049 = vmatprep.subr.mxu0 0.0
  %3050 = vmatpush1.msra.mxu0 0.0
  %3051 = vmatprep.subr.mxu0 0.0
  %3052 = vmatpush1.msra.mxu0 0.0
  %3053 = vmatprep.subr.mxu0 0.0
  %3054 = vmatpush1.msra.mxu0 0.0
  %3055 = vmatprep.subr.mxu0 0.0
  %3056 = vmatpush1.msra.mxu0 0.0
  %3057 = vmatprep.subr.mxu0 0.0
  %3058 = vmatpush1.msra.mxu0 0.0
  %3059 = vmatprep.subr.mxu0 0.0
  %3060 = vmatpush1.msra.mxu0 0.0
  %3061 = vmatprep.subr.mxu0 0.0
  %3062 = vmatpush1.msra.mxu0 0.0
  %3063 = vmatprep.subr.mxu0 0.0
  %3064 = vmatpush1.msra.mxu0 0.0
  %3065 = vmatprep.subr.mxu0 0.0
  %3066 = vmatpush1.msra.mxu0 0.0
  %3067 = vmatprep.subr.mxu0 0.0
  %3068 = vmatpush1.msra.mxu0 0.0
  %3069 = vmatprep.subr.mxu0 0.0
  %3070 = vmatpush1.msra.mxu0 0.0
  %3071 = vmatprep.subr.mxu0 0.0
  %3072 = vmatpush1.msra.mxu0 0.0
  %3073 = vmatprep.subr.mxu0 0.0
  %3074 = vmatpush1.msra.mxu0 0.0
  %3075 = vmatprep.subr.mxu0 0.0
  %3076 = vmatpush1.msra.mxu0 0.0
  %3077 = vmatprep.subr.mxu0 0.0
  %3078 = vmatpush1.msra.mxu0 0.0
  %3079 = vmatprep.subr.mxu0 0.0
  %3080 = vmatpush1.msra.mxu0 0.0
  %3081 = vmatprep.subr.mxu0 0.0
  %3082 = vmatpush1.msra.mxu0 0.0
  %3083 = vmatprep.subr.mxu0 0.0
  %3084 = vmatpush1.msra.mxu0 0.0
  %3085 = vmatprep.mubr.f32.mxu0 0.0
  %v3086 = vand.u32 %v2565, 4294901760
  %3087 = vmatmul.mubr.f32.gmra.mrb[0].mxu0 %v3086
  %v3088 = vpop.f32.mrb[0].mxu0
  %v3089 = vadd.f32 %v3008, %v3088
  %v3090 = vpop.f32.mrb[0].mxu0
  %3091 = vmatprep.mubr.f32.mxu0 0.0
  %v3092 = vand.u32 %v2568, 4294901760
  %3093 = vmatmul.mubr.f32.gmra.mrb[0].mxu0 %v3092
  %v3094 = vpop.f32.mrb[0].mxu0
  %v3095 = vadd.f32 %v3014, %v3094
  %v3096 = vpop.f32.mrb[0].mxu0
  %3097 = vdwg.mxu0
  %3100 = vrot.lane.b32.xlu0 %v3089, 127
  %v3101 = vpop.permute.xlu0 %3100
  %3102 = vrot.lane.b32.xlu0 %v3095, 127
  %v3103 = vpop.permute.xlu0 %3102
  %v3106 = vmax.f32 %v3089, %v3101
  %v3107 = vmax.f32 %v3095, %v3103
  %3108 = vrot.lane.b32.xlu0 %v3089, 126
  %v3109 = vpop.permute.xlu0 %3108
  %3110 = vrot.lane.b32.xlu0 %v3095, 126
  %v3111 = vpop.permute.xlu0 %3110
  %v3114 = vmax.f32 %v3106, %v3109
  %v3115 = vmax.f32 %v3107, %v3111
  %3117 = vset.pattern.permute.xlu0 0
  %3118 = vperm.xlu0 %3117, %v3114
  %v3119 = vpop.permute.xlu0 %3118
  %3122 = vset.pattern.permute.xlu0 0
  %3123 = vperm.xlu0 %3122, %v3115
  %v3124 = vpop.permute.xlu0 %3123
  %v3126 = vsub.f32 %v3089, %v3119
  %v3127 = vsub.f32 %v3095, %v3124
  %v3128 = vmul.f32 %v3126, 1.442695
  %v3129 = vpow.pop %v3128
  %v3130 = vmul.f32 %v3127, 1.442695
  %v3131 = vpow.pop %v3130
  %3134 = vrot.lane.b32.xlu0 %v3129, 127
  %v3135 = vpop.permute.xlu0 %3134
  %3136 = vrot.lane.b32.xlu0 %v3131, 127
  %v3137 = vpop.permute.xlu0 %3136
  %v3140 = vadd.f32 %v3129, %v3135
  %v3141 = vadd.f32 %v3131, %v3137
  %3142 = vrot.lane.b32.xlu0 %v3129, 126
  %v3143 = vpop.permute.xlu0 %3142
  %3144 = vrot.lane.b32.xlu0 %v3131, 126
  %v3145 = vpop.permute.xlu0 %3144
  %v3148 = vadd.f32 %v3140, %v3143
  %v3149 = vadd.f32 %v3141, %v3145
  %3151 = vset.pattern.permute.xlu0 0
  %3152 = vperm.xlu0 %3151, %v3148
  %v3153 = vpop.permute.xlu0 %3152
  %3156 = vset.pattern.permute.xlu0 0
  %3157 = vperm.xlu0 %3156, %v3149
  %v3158 = vpop.permute.xlu0 %3157
  %v3160 = vrcp.pop %v3153
  %v3161 = vmul.f32 %v3129, %v3160
  %v3162 = vrcp.pop %v3158
  %v3163 = vmul.f32 %v3131, %v3162
  %v3164 = vld [vmem:[%s3] sm:$0xff]
  %3166 = vset.pattern.permute.xlu0 0
  %3167 = vperm.xlu0 %3166, %v3164
  %v3168 = vpop.permute.xlu0 %3167
  %v3170 = vmul.f32 %v2003, %v3168
  %3172 = vset.pattern.permute.xlu0 0
  %3173 = vperm.xlu0 %3172, %v3161
  %v3174 = vpop.permute.xlu0 %3173
  %v3176 = vmul.f32 %v3174, %v1993
  %3178 = vrot.lane.b32.xlu0 %v3176, 107
  %v3179 = vpop.permute.xlu0 %3178
  %v3181 = vmul.f32 %v2003, %v3179
  %3183 = vrot.lane.b32.xlu0 %v3181, 125
  %v3184 = vpop.permute.xlu0 %3183
  %v3186 = vadd.f32 %v3170, %v3184
  %3187 = vset.pattern.permute.xlu0 1
  %3188 = vperm.xlu0 %3187, %v3164
  %v3189 = vpop.permute.xlu0 %3188
  %v3191 = vmul.f32 %v2003, %v3189
  %3192 = vset.pattern.permute.xlu0 1
  %3193 = vperm.xlu0 %3192, %v3161
  %v3194 = vpop.permute.xlu0 %3193
  %v3196 = vmul.f32 %v3194, %v1993
  %3198 = vrot.lane.b32.xlu0 %v3196, 107
  %v3199 = vpop.permute.xlu0 %3198
  %v3201 = vmul.f32 %v2003, %v3199
  %3203 = vrot.lane.b32.xlu0 %v3201, 125
  %v3204 = vpop.permute.xlu0 %3203
  %v3206 = vadd.f32 %v3191, %v3204
  %3207 = vset.pattern.permute.xlu0 2
  %3208 = vperm.xlu0 %3207, %v3164
  %v3209 = vpop.permute.xlu0 %3208
  %v3211 = vmul.f32 %v2003, %v3209
  %3212 = vset.pattern.permute.xlu0 2
  %3213 = vperm.xlu0 %3212, %v3161
  %v3214 = vpop.permute.xlu0 %3213
  %v3216 = vmul.f32 %v3214, %v1993
  %3218 = vrot.lane.b32.xlu0 %v3216, 107
  %v3219 = vpop.permute.xlu0 %3218
  %v3221 = vmul.f32 %v2003, %v3219
  %3223 = vrot.lane.b32.xlu0 %v3221, 125
  %v3224 = vpop.permute.xlu0 %3223
  %v3226 = vadd.f32 %v3211, %v3224
  %3228 = vrot.lane.b32.xlu0 %v3206, 3
  %v3229 = vpop.permute.xlu0 %3228
  %3232 = vrot.lane.b32.xlu0 %v3226, 6
  %v3233 = vpop.permute.xlu0 %3232
  %v3235 = vsel %vm75, %v2003, %v3186
  %v3236 = vsel %vm2052, %v3235, %v3229
  %v3237 = vsel %vm1502, %v3236, %v3233
  %3238 = vxpose.xlu0.b32.start [1/16] %v1494, 128
  %3239 = vxpose.xlu0.b32.cont [2/16] 0.0, 128
  %3240 = vxpose.xlu0.b32.cont [3/16] 0.0, 128
  %3241 = vxpose.xlu0.b32.cont [4/16] 0.0, 128
  %3242 = vxpose.xlu0.b32.cont [5/16] 0.0, 128
  %3243 = vxpose.xlu0.b32.cont [6/16] 0.0, 128
  %3244 = vxpose.xlu0.b32.cont [7/16] 0.0, 128
  %3245 = vxpose.xlu0.b32.cont [8/16] 0.0, 128
  %3246 = vxpose.xlu0.b32.cont [9/16] 0.0, 128
  %3247 = vxpose.xlu0.b32.cont [10/16] 0.0, 128
  %3248 = vxpose.xlu0.b32.cont [11/16] 0.0, 128
  %3249 = vxpose.xlu0.b32.cont [12/16] 0.0, 128
  %3250 = vxpose.xlu0.b32.cont [13/16] 0.0, 128
  %3251 = vxpose.xlu0.b32.cont [14/16] 0.0, 128
  %3252 = vxpose.xlu0.b32.cont [15/16] 0.0, 128
  %3253 = vxpose.xlu0.b32.end [16/16] 0.0, 128
  %v3254 = vpop.trf.xlu0
  %v3255 = vpop.trf.xlu0
  %v3256 = vpop.trf.xlu0
  %v3257 = vpop.trf.xlu0
  %v3258 = vpop.trf.xlu0
  %v3259 = vpop.trf.xlu0
  %v3260 = vpop.trf.xlu0
  %v3261 = vpop.trf.xlu0
  %v3262 = vpop.trf.xlu0
  %v3263 = vpop.trf.xlu0
  %v3264 = vpop.trf.xlu0
  %v3265 = vpop.trf.xlu0
  %v3266 = vpop.trf.xlu0
  %v3267 = vpop.trf.xlu0
  %v3268 = vpop.trf.xlu0
  %v3269 = vpop.trf.xlu0
  %v3271 = vsel %vm1506, %v3254, 0
  %3273 = vmatprep.subr.mxu0 0.0
  %v3274 = vand.u32 %v3237, 4294901760
  %3275 = vmatpush1.msra.mxu0 %v3274
  %3276 = vmatprep.subr.mxu0 0.0
  %3277 = vmatpush1.msra.mxu0 0.0
  %3278 = vmatprep.subr.mxu0 0.0
  %3279 = vmatpush1.msra.mxu0 0.0
  %3280 = vmatprep.subr.mxu0 0.0
  %3281 = vmatpush1.msra.mxu0 0.0
  %3282 = vmatprep.subr.mxu0 0.0
  %3283 = vmatpush1.msra.mxu0 0.0
  %3284 = vmatprep.subr.mxu0 0.0
  %3285 = vmatpush1.msra.mxu0 0.0
  %3286 = vmatprep.subr.mxu0 0.0
  %3287 = vmatpush1.msra.mxu0 0.0
  %3288 = vmatprep.subr.mxu0 0.0
  %3289 = vmatpush1.msra.mxu0 0.0
  %3290 = vmatprep.subr.mxu0 0.0
  %3291 = vmatpush1.msra.mxu0 0.0
  %3292 = vmatprep.subr.mxu0 0.0
  %3293 = vmatpush1.msra.mxu0 0.0
  %3294 = vmatprep.subr.mxu0 0.0
  %3295 = vmatpush1.msra.mxu0 0.0
  %3296 = vmatprep.subr.mxu0 0.0
  %3297 = vmatpush1.msra.mxu0 0.0
  %3298 = vmatprep.subr.mxu0 0.0
  %3299 = vmatpush1.msra.mxu0 0.0
  %3300 = vmatprep.subr.mxu0 0.0
  %3301 = vmatpush1.msra.mxu0 0.0
  %3302 = vmatprep.subr.mxu0 0.0
  %3303 = vmatpush1.msra.mxu0 0.0
  %3304 = vmatprep.subr.mxu0 0.0
  %3305 = vmatpush1.msra.mxu0 0.0
  %3306 = vmatprep.subr.mxu0 0.0
  %3307 = vmatpush1.msra.mxu0 0.0
  %3308 = vmatprep.subr.mxu0 0.0
  %3309 = vmatpush1.msra.mxu0 0.0
  %3310 = vmatprep.subr.mxu0 0.0
  %3311 = vmatpush1.msra.mxu0 0.0
  %3312 = vmatprep.subr.mxu0 0.0
  %3313 = vmatpush1.msra.mxu0 0.0
  %3314 = vmatprep.subr.mxu0 0.0
  %3315 = vmatpush1.msra.mxu0 0.0
  %3316 = vmatprep.subr.mxu0 0.0
  %3317 = vmatpush1.msra.mxu0 0.0
  %3318 = vmatprep.subr.mxu0 0.0
  %3319 = vmatpush1.msra.mxu0 0.0
  %3320 = vmatprep.subr.mxu0 0.0
  %3321 = vmatpush1.msra.mxu0 0.0
  %3322 = vmatprep.subr.mxu0 0.0
  %3323 = vmatpush1.msra.mxu0 0.0
  %3324 = vmatprep.subr.mxu0 0.0
  %3325 = vmatpush1.msra.mxu0 0.0
  %3326 = vmatprep.subr.mxu0 0.0
  %3327 = vmatpush1.msra.mxu0 0.0
  %3328 = vmatprep.subr.mxu0 0.0
  %3329 = vmatpush1.msra.mxu0 0.0
  %3330 = vmatprep.subr.mxu0 0.0
  %3331 = vmatpush1.msra.mxu0 0.0
  %3332 = vmatprep.subr.mxu0 0.0
  %3333 = vmatpush1.msra.mxu0 0.0
  %3334 = vmatprep.subr.mxu0 0.0
  %3335 = vmatpush1.msra.mxu0 0.0
  %3336 = vmatprep.subr.mxu0 0.0
  %3337 = vmatpush1.msra.mxu0 0.0
  %3338 = vmatprep.mubr.f32.mxu0 0.0
  %v3339 = vand.u32 %v3271, 4294901760
  %v3340 = vsub.f32 %v3271, %v3339
  %v3341 = vand.u32 %v3340, 4294901760
  %v3342 = vsub.f32 %v3340, %v3341
  %v3343 = vand.u32 %v3342, 4294901760
  %3344 = vmatmul.mubr.f32.gmra.mrb[0].mxu0 %v3343
  %v3345 = vpop.f32.mrb[0].mxu0
  %v3346 = vadd.f32 0.0, %v3345
  %v3347 = vpop.f32.mrb[0].mxu0
  %3348 = vdwg.mxu0
  %3349 = vmatprep.subr.mxu0 0.0
  %v3350 = vand.u32 %v3237, 4294901760
  %v3351 = vsub.f32 %v3237, %v3350
  %v3352 = vand.u32 %v3351, 4294901760
  %v3353 = vsub.f32 %v3351, %v3352
  %v3354 = vand.u32 %v3353, 4294901760
  %3355 = vmatpush1.msra.mxu0 %v3354
  %3356 = vmatprep.subr.mxu0 0.0
  %3357 = vmatpush1.msra.mxu0 0.0
  %3358 = vmatprep.subr.mxu0 0.0
  %3359 = vmatpush1.msra.mxu0 0.0
  %3360 = vmatprep.subr.mxu0 0.0
  %3361 = vmatpush1.msra.mxu0 0.0
  %3362 = vmatprep.subr.mxu0 0.0
  %3363 = vmatpush1.msra.mxu0 0.0
  %3364 = vmatprep.subr.mxu0 0.0
  %3365 = vmatpush1.msra.mxu0 0.0
  %3366 = vmatprep.subr.mxu0 0.0
  %3367 = vmatpush1.msra.mxu0 0.0
  %3368 = vmatprep.subr.mxu0 0.0
  %3369 = vmatpush1.msra.mxu0 0.0
  %3370 = vmatprep.subr.mxu0 0.0
  %3371 = vmatpush1.msra.mxu0 0.0
  %3372 = vmatprep.subr.mxu0 0.0
  %3373 = vmatpush1.msra.mxu0 0.0
  %3374 = vmatprep.subr.mxu0 0.0
  %3375 = vmatpush1.msra.mxu0 0.0
  %3376 = vmatprep.subr.mxu0 0.0
  %3377 = vmatpush1.msra.mxu0 0.0
  %3378 = vmatprep.subr.mxu0 0.0
  %3379 = vmatpush1.msra.mxu0 0.0
  %3380 = vmatprep.subr.mxu0 0.0
  %3381 = vmatpush1.msra.mxu0 0.0
  %3382 = vmatprep.subr.mxu0 0.0
  %3383 = vmatpush1.msra.mxu0 0.0
  %3384 = vmatprep.subr.mxu0 0.0
  %3385 = vmatpush1.msra.mxu0 0.0
  %3386 = vmatprep.subr.mxu0 0.0
  %3387 = vmatpush1.msra.mxu0 0.0
  %3388 = vmatprep.subr.mxu0 0.0
  %3389 = vmatpush1.msra.mxu0 0.0
  %3390 = vmatprep.subr.mxu0 0.0
  %3391 = vmatpush1.msra.mxu0 0.0
  %3392 = vmatprep.subr.mxu0 0.0
  %3393 = vmatpush1.msra.mxu0 0.0
  %3394 = vmatprep.subr.mxu0 0.0
  %3395 = vmatpush1.msra.mxu0 0.0
  %3396 = vmatprep.subr.mxu0 0.0
  %3397 = vmatpush1.msra.mxu0 0.0
  %3398 = vmatprep.subr.mxu0 0.0
  %3399 = vmatpush1.msra.mxu0 0.0
  %3400 = vmatprep.subr.mxu0 0.0
  %3401 = vmatpush1.msra.mxu0 0.0
  %3402 = vmatprep.subr.mxu0 0.0
  %3403 = vmatpush1.msra.mxu0 0.0
  %3404 = vmatprep.subr.mxu0 0.0
  %3405 = vmatpush1.msra.mxu0 0.0
  %3406 = vmatprep.subr.mxu0 0.0
  %3407 = vmatpush1.msra.mxu0 0.0
  %3408 = vmatprep.subr.mxu0 0.0
  %3409 = vmatpush1.msra.mxu0 0.0
  %3410 = vmatprep.subr.mxu0 0.0
  %3411 = vmatpush1.msra.mxu0 0.0
  %3412 = vmatprep.subr.mxu0 0.0
  %3413 = vmatpush1.msra.mxu0 0.0
  %3414 = vmatprep.subr.mxu0 0.0
  %3415 = vmatpush1.msra.mxu0 0.0
  %3416 = vmatprep.subr.mxu0 0.0
  %3417 = vmatpush1.msra.mxu0 0.0
  %3418 = vmatprep.mubr.f32.mxu0 0.0
  %v3419 = vand.u32 %v3271, 4294901760
  %3420 = vmatmul.mubr.f32.gmra.mrb[0].mxu0 %v3419
  %v3421 = vpop.f32.mrb[0].mxu0
  %v3422 = vadd.f32 %v3346, %v3421
  %v3423 = vpop.f32.mrb[0].mxu0
  %3424 = vdwg.mxu0
  %3425 = vmatprep.subr.mxu0 0.0
  %v3426 = vand.u32 %v3237, 4294901760
  %v3427 = vsub.f32 %v3237, %v3426
  %3428 = vmatpush1.msra.mxu0 %v3427
  %3429 = vmatprep.subr.mxu0 0.0
  %3430 = vmatpush1.msra.mxu0 0.0
  %3431 = vmatprep.subr.mxu0 0.0
  %3432 = vmatpush1.msra.mxu0 0.0
  %3433 = vmatprep.subr.mxu0 0.0
  %3434 = vmatpush1.msra.mxu0 0.0
  %3435 = vmatprep.subr.mxu0 0.0
  %3436 = vmatpush1.msra.mxu0 0.0
  %3437 = vmatprep.subr.mxu0 0.0
  %3438 = vmatpush1.msra.mxu0 0.0
  %3439 = vmatprep.subr.mxu0 0.0
  %3440 = vmatpush1.msra.mxu0 0.0
  %3441 = vmatprep.subr.mxu0 0.0
  %3442 = vmatpush1.msra.mxu0 0.0
  %3443 = vmatprep.subr.mxu0 0.0
  %3444 = vmatpush1.msra.mxu0 0.0
  %3445 = vmatprep.subr.mxu0 0.0
  %3446 = vmatpush1.msra.mxu0 0.0
  %3447 = vmatprep.subr.mxu0 0.0
  %3448 = vmatpush1.msra.mxu0 0.0
  %3449 = vmatprep.subr.mxu0 0.0
  %3450 = vmatpush1.msra.mxu0 0.0
  %3451 = vmatprep.subr.mxu0 0.0
  %3452 = vmatpush1.msra.mxu0 0.0
  %3453 = vmatprep.subr.mxu0 0.0
  %3454 = vmatpush1.msra.mxu0 0.0
  %3455 = vmatprep.subr.mxu0 0.0
  %3456 = vmatpush1.msra.mxu0 0.0
  %3457 = vmatprep.subr.mxu0 0.0
  %3458 = vmatpush1.msra.mxu0 0.0
  %3459 = vmatprep.subr.mxu0 0.0
  %3460 = vmatpush1.msra.mxu0 0.0
  %3461 = vmatprep.subr.mxu0 0.0
  %3462 = vmatpush1.msra.mxu0 0.0
  %3463 = vmatprep.subr.mxu0 0.0
  %3464 = vmatpush1.msra.mxu0 0.0
  %3465 = vmatprep.subr.mxu0 0.0
  %3466 = vmatpush1.msra.mxu0 0.0
  %3467 = vmatprep.subr.mxu0 0.0
  %3468 = vmatpush1.msra.mxu0 0.0
  %3469 = vmatprep.subr.mxu0 0.0
  %3470 = vmatpush1.msra.mxu0 0.0
  %3471 = vmatprep.subr.mxu0 0.0
  %3472 = vmatpush1.msra.mxu0 0.0
  %3473 = vmatprep.subr.mxu0 0.0
  %3474 = vmatpush1.msra.mxu0 0.0
  %3475 = vmatprep.subr.mxu0 0.0
  %3476 = vmatpush1.msra.mxu0 0.0
  %3477 = vmatprep.subr.mxu0 0.0
  %3478 = vmatpush1.msra.mxu0 0.0
  %3479 = vmatprep.subr.mxu0 0.0
  %3480 = vmatpush1.msra.mxu0 0.0
  %3481 = vmatprep.subr.mxu0 0.0
  %3482 = vmatpush1.msra.mxu0 0.0
  %3483 = vmatprep.subr.mxu0 0.0
  %3484 = vmatpush1.msra.mxu0 0.0
  %3485 = vmatprep.subr.mxu0 0.0
  %3486 = vmatpush1.msra.mxu0 0.0
  %3487 = vmatprep.subr.mxu0 0.0
  %3488 = vmatpush1.msra.mxu0 0.0
  %3489 = vmatprep.subr.mxu0 0.0
  %3490 = vmatpush1.msra.mxu0 0.0
  %3491 = vmatprep.mubr.f32.mxu0 0.0
  %v3492 = vand.u32 %v3271, 4294901760
  %v3493 = vsub.f32 %v3271, %v3492
  %3494 = vmatmul.mubr.f32.gmra.mrb[0].mxu0 %v3493
  %v3495 = vpop.f32.mrb[0].mxu0
  %v3496 = vadd.f32 %v3422, %v3495
  %v3497 = vpop.f32.mrb[0].mxu0
  %3498 = vdwg.mxu0
  %3499 = vmatprep.subr.mxu0 0.0
  %v3500 = vand.u32 %v3237, 4294901760
  %3501 = vmatpush1.msra.mxu0 %v3500
  %3502 = vmatprep.subr.mxu0 0.0
  %3503 = vmatpush1.msra.mxu0 0.0
  %3504 = vmatprep.subr.mxu0 0.0
  %3505 = vmatpush1.msra.mxu0 0.0
  %3506 = vmatprep.subr.mxu0 0.0
  %3507 = vmatpush1.msra.mxu0 0.0
  %3508 = vmatprep.subr.mxu0 0.0
  %3509 = vmatpush1.msra.mxu0 0.0
  %3510 = vmatprep.subr.mxu0 0.0
  %3511 = vmatpush1.msra.mxu0 0.0
  %3512 = vmatprep.subr.mxu0 0.0
  %3513 = vmatpush1.msra.mxu0 0.0
  %3514 = vmatprep.subr.mxu0 0.0
  %3515 = vmatpush1.msra.mxu0 0.0
  %3516 = vmatprep.subr.mxu0 0.0
  %3517 = vmatpush1.msra.mxu0 0.0
  %3518 = vmatprep.subr.mxu0 0.0
  %3519 = vmatpush1.msra.mxu0 0.0
  %3520 = vmatprep.subr.mxu0 0.0
  %3521 = vmatpush1.msra.mxu0 0.0
  %3522 = vmatprep.subr.mxu0 0.0
  %3523 = vmatpush1.msra.mxu0 0.0
  %3524 = vmatprep.subr.mxu0 0.0
  %3525 = vmatpush1.msra.mxu0 0.0
  %3526 = vmatprep.subr.mxu0 0.0
  %3527 = vmatpush1.msra.mxu0 0.0
  %3528 = vmatprep.subr.mxu0 0.0
  %3529 = vmatpush1.msra.mxu0 0.0
  %3530 = vmatprep.subr.mxu0 0.0
  %3531 = vmatpush1.msra.mxu0 0.0
  %3532 = vmatprep.subr.mxu0 0.0
  %3533 = vmatpush1.msra.mxu0 0.0
  %3534 = vmatprep.subr.mxu0 0.0
  %3535 = vmatpush1.msra.mxu0 0.0
  %3536 = vmatprep.subr.mxu0 0.0
  %3537 = vmatpush1.msra.mxu0 0.0
  %3538 = vmatprep.subr.mxu0 0.0
  %3539 = vmatpush1.msra.mxu0 0.0
  %3540 = vmatprep.subr.mxu0 0.0
  %3541 = vmatpush1.msra.mxu0 0.0
  %3542 = vmatprep.subr.mxu0 0.0
  %3543 = vmatpush1.msra.mxu0 0.0
  %3544 = vmatprep.subr.mxu0 0.0
  %3545 = vmatpush1.msra.mxu0 0.0
  %3546 = vmatprep.subr.mxu0 0.0
  %3547 = vmatpush1.msra.mxu0 0.0
  %3548 = vmatprep.subr.mxu0 0.0
  %3549 = vmatpush1.msra.mxu0 0.0
  %3550 = vmatprep.subr.mxu0 0.0
  %3551 = vmatpush1.msra.mxu0 0.0
  %3552 = vmatprep.subr.mxu0 0.0
  %3553 = vmatpush1.msra.mxu0 0.0
  %3554 = vmatprep.subr.mxu0 0.0
  %3555 = vmatpush1.msra.mxu0 0.0
  %3556 = vmatprep.subr.mxu0 0.0
  %3557 = vmatpush1.msra.mxu0 0.0
  %3558 = vmatprep.subr.mxu0 0.0
  %3559 = vmatpush1.msra.mxu0 0.0
  %3560 = vmatprep.subr.mxu0 0.0
  %3561 = vmatpush1.msra.mxu0 0.0
  %3562 = vmatprep.subr.mxu0 0.0
  %3563 = vmatpush1.msra.mxu0 0.0
  %3564 = vmatprep.mubr.f32.mxu0 0.0
  %v3565 = vand.u32 %v3271, 4294901760
  %v3566 = vsub.f32 %v3271, %v3565
  %v3567 = vand.u32 %v3566, 4294901760
  %3568 = vmatmul.mubr.f32.gmra.mrb[0].mxu0 %v3567
  %v3569 = vpop.f32.mrb[0].mxu0
  %v3570 = vadd.f32 %v3496, %v3569
  %v3571 = vpop.f32.mrb[0].mxu0
  %3572 = vdwg.mxu0
  %3573 = vmatprep.subr.mxu0 0.0
  %v3574 = vand.u32 %v3237, 4294901760
  %v3575 = vsub.f32 %v3237, %v3574
  %v3576 = vand.u32 %v3575, 4294901760
  %3577 = vmatpush1.msra.mxu0 %v3576
  %3578 = vmatprep.subr.mxu0 0.0
  %3579 = vmatpush1.msra.mxu0 0.0
  %3580 = vmatprep.subr.mxu0 0.0
  %3581 = vmatpush1.msra.mxu0 0.0
  %3582 = vmatprep.subr.mxu0 0.0
  %3583 = vmatpush1.msra.mxu0 0.0
  %3584 = vmatprep.subr.mxu0 0.0
  %3585 = vmatpush1.msra.mxu0 0.0
  %3586 = vmatprep.subr.mxu0 0.0
  %3587 = vmatpush1.msra.mxu0 0.0
  %3588 = vmatprep.subr.mxu0 0.0
  %3589 = vmatpush1.msra.mxu0 0.0
  %3590 = vmatprep.subr.mxu0 0.0
  %3591 = vmatpush1.msra.mxu0 0.0
  %3592 = vmatprep.subr.mxu0 0.0
  %3593 = vmatpush1.msra.mxu0 0.0
  %3594 = vmatprep.subr.mxu0 0.0
  %3595 = vmatpush1.msra.mxu0 0.0
  %3596 = vmatprep.subr.mxu0 0.0
  %3597 = vmatpush1.msra.mxu0 0.0
  %3598 = vmatprep.subr.mxu0 0.0
  %3599 = vmatpush1.msra.mxu0 0.0
  %3600 = vmatprep.subr.mxu0 0.0
  %3601 = vmatpush1.msra.mxu0 0.0
  %3602 = vmatprep.subr.mxu0 0.0
  %3603 = vmatpush1.msra.mxu0 0.0
  %3604 = vmatprep.subr.mxu0 0.0
  %3605 = vmatpush1.msra.mxu0 0.0
  %3606 = vmatprep.subr.mxu0 0.0
  %3607 = vmatpush1.msra.mxu0 0.0
  %3608 = vmatprep.subr.mxu0 0.0
  %3609 = vmatpush1.msra.mxu0 0.0
  %3610 = vmatprep.subr.mxu0 0.0
  %3611 = vmatpush1.msra.mxu0 0.0
  %3612 = vmatprep.subr.mxu0 0.0
  %3613 = vmatpush1.msra.mxu0 0.0
  %3614 = vmatprep.subr.mxu0 0.0
  %3615 = vmatpush1.msra.mxu0 0.0
  %3616 = vmatprep.subr.mxu0 0.0
  %3617 = vmatpush1.msra.mxu0 0.0
  %3618 = vmatprep.subr.mxu0 0.0
  %3619 = vmatpush1.msra.mxu0 0.0
  %3620 = vmatprep.subr.mxu0 0.0
  %3621 = vmatpush1.msra.mxu0 0.0
  %3622 = vmatprep.subr.mxu0 0.0
  %3623 = vmatpush1.msra.mxu0 0.0
  %3624 = vmatprep.subr.mxu0 0.0
  %3625 = vmatpush1.msra.mxu0 0.0
  %3626 = vmatprep.subr.mxu0 0.0
  %3627 = vmatpush1.msra.mxu0 0.0
  %3628 = vmatprep.subr.mxu0 0.0
  %3629 = vmatpush1.msra.mxu0 0.0
  %3630 = vmatprep.subr.mxu0 0.0
  %3631 = vmatpush1.msra.mxu0 0.0
  %3632 = vmatprep.subr.mxu0 0.0
  %3633 = vmatpush1.msra.mxu0 0.0
  %3634 = vmatprep.subr.mxu0 0.0
  %3635 = vmatpush1.msra.mxu0 0.0
  %3636 = vmatprep.subr.mxu0 0.0
  %3637 = vmatpush1.msra.mxu0 0.0
  %3638 = vmatprep.subr.mxu0 0.0
  %3639 = vmatpush1.msra.mxu0 0.0
  %3640 = vmatprep.mubr.f32.mxu0 0.0
  %v3641 = vand.u32 %v3271, 4294901760
  %3642 = vmatmul.mubr.f32.gmra.mrb[0].mxu0 %v3641
  %v3643 = vpop.f32.mrb[0].mxu0
  %v3644 = vadd.f32 %v3570, %v3643
  %v3645 = vpop.f32.mrb[0].mxu0
  %3646 = vdwg.mxu0
  %3647 = vmatprep.subr.mxu0 0.0
  %v3648 = vand.u32 %v3237, 4294901760
  %3649 = vmatpush1.msra.mxu0 %v3648
  %3650 = vmatprep.subr.mxu0 0.0
  %3651 = vmatpush1.msra.mxu0 0.0
  %3652 = vmatprep.subr.mxu0 0.0
  %3653 = vmatpush1.msra.mxu0 0.0
  %3654 = vmatprep.subr.mxu0 0.0
  %3655 = vmatpush1.msra.mxu0 0.0
  %3656 = vmatprep.subr.mxu0 0.0
  %3657 = vmatpush1.msra.mxu0 0.0
  %3658 = vmatprep.subr.mxu0 0.0
  %3659 = vmatpush1.msra.mxu0 0.0
  %3660 = vmatprep.subr.mxu0 0.0
  %3661 = vmatpush1.msra.mxu0 0.0
  %3662 = vmatprep.subr.mxu0 0.0
  %3663 = vmatpush1.msra.mxu0 0.0
  %3664 = vmatprep.subr.mxu0 0.0
  %3665 = vmatpush1.msra.mxu0 0.0
  %3666 = vmatprep.subr.mxu0 0.0
  %3667 = vmatpush1.msra.mxu0 0.0
  %3668 = vmatprep.subr.mxu0 0.0
  %3669 = vmatpush1.msra.mxu0 0.0
  %3670 = vmatprep.subr.mxu0 0.0
  %3671 = vmatpush1.msra.mxu0 0.0
  %3672 = vmatprep.subr.mxu0 0.0
  %3673 = vmatpush1.msra.mxu0 0.0
  %3674 = vmatprep.subr.mxu0 0.0
  %3675 = vmatpush1.msra.mxu0 0.0
  %3676 = vmatprep.subr.mxu0 0.0
  %3677 = vmatpush1.msra.mxu0 0.0
  %3678 = vmatprep.subr.mxu0 0.0
  %3679 = vmatpush1.msra.mxu0 0.0
  %3680 = vmatprep.subr.mxu0 0.0
  %3681 = vmatpush1.msra.mxu0 0.0
  %3682 = vmatprep.subr.mxu0 0.0
  %3683 = vmatpush1.msra.mxu0 0.0
  %3684 = vmatprep.subr.mxu0 0.0
  %3685 = vmatpush1.msra.mxu0 0.0
  %3686 = vmatprep.subr.mxu0 0.0
  %3687 = vmatpush1.msra.mxu0 0.0
  %3688 = vmatprep.subr.mxu0 0.0
  %3689 = vmatpush1.msra.mxu0 0.0
  %3690 = vmatprep.subr.mxu0 0.0
  %3691 = vmatpush1.msra.mxu0 0.0
  %3692 = vmatprep.subr.mxu0 0.0
  %3693 = vmatpush1.msra.mxu0 0.0
  %3694 = vmatprep.subr.mxu0 0.0
  %3695 = vmatpush1.msra.mxu0 0.0
  %3696 = vmatprep.subr.mxu0 0.0
  %3697 = vmatpush1.msra.mxu0 0.0
  %3698 = vmatprep.subr.mxu0 0.0
  %3699 = vmatpush1.msra.mxu0 0.0
  %3700 = vmatprep.subr.mxu0 0.0
  %3701 = vmatpush1.msra.mxu0 0.0
  %3702 = vmatprep.subr.mxu0 0.0
  %3703 = vmatpush1.msra.mxu0 0.0
  %3704 = vmatprep.subr.mxu0 0.0
  %3705 = vmatpush1.msra.mxu0 0.0
  %3706 = vmatprep.subr.mxu0 0.0
  %3707 = vmatpush1.msra.mxu0 0.0
  %3708 = vmatprep.subr.mxu0 0.0
  %3709 = vmatpush1.msra.mxu0 0.0
  %3710 = vmatprep.subr.mxu0 0.0
  %3711 = vmatpush1.msra.mxu0 0.0
  %3712 = vmatprep.mubr.f32.mxu0 0.0
  %v3713 = vand.u32 %v3271, 4294901760
  %3714 = vmatmul.mubr.f32.gmra.mrb[0].mxu0 %v3713
  %v3715 = vpop.f32.mrb[0].mxu0
  %v3716 = vadd.f32 %v3644, %v3715
  %v3717 = vpop.f32.mrb[0].mxu0
  %3718 = vdwg.mxu0
  %v3719 = vadd.f32 %v65, %v3716
  %3721 = vset.pattern.permute.xlu0 27
  %3722 = vperm.xlu0 %3721, %v1999
  %v3723 = vpop.permute.xlu0 %3722
  %v3725 = vmul.f32 %v3163, %v3723
  %3727 = vrot.lane.b32.xlu0 %v3725, 3
  %v3728 = vpop.permute.xlu0 %3727
  %v3730 = vadd.f32 %v3716, %v3728
  %3731 = vset.pattern.permute.xlu0 28
  %3732 = vperm.xlu0 %3731, %v1999
  %v3733 = vpop.permute.xlu0 %3732
  %v3735 = vmul.f32 %v3163, %v3733
  %3737 = vrot.lane.b32.xlu0 %v3735, 6
  %v3738 = vpop.permute.xlu0 %3737
  %v3740 = vadd.f32 %v3716, %v3738
  %3741 = vset.pattern.permute.xlu0 29
  %3742 = vperm.xlu0 %3741, %v1999
  %v3743 = vpop.permute.xlu0 %3742
  %v3745 = vmul.f32 %v3163, %v3743
  %3747 = vrot.lane.b32.xlu0 %v3745, 9
  %v3748 = vpop.permute.xlu0 %3747
  %v3750 = vadd.f32 %v3716, %v3748
  %v3751 = vmul.f32 %v3730, %v3730
  %v3752 = vmul.f32 %v3740, %v3740
  %3754 = vrot.lane.b32.xlu0 %v3752, 125
  %v3755 = vpop.permute.xlu0 %3754
  %v3757 = vadd.f32 %v3751, %v3755
  %v3758 = vmul.f32 %v3750, %v3750
  %3760 = vrot.lane.b32.xlu0 %v3758, 122
  %v3761 = vpop.permute.xlu0 %3760
  %v3763 = vadd.f32 %v3757, %v3761
  %v3764 = vrsqrt.pop %v3763
  %v3765 = vmul.f32 %v3763, %v3764
  %vm3766 = vcmp.eq.f32.partialorder %v3763, inf
  %v3767 = vsel %vm3766, %v3763, %v3765
  %vm3768 = vcmp.eq.f32.partialorder %v3763, 0.0
  %v3769 = vand.u32 %v3763, 2147483648
  %v3770 = vsel %vm3768, %v3769, %v3767
  %v3771 = vld [vmem:[%s16] sm:$0x7]
  %v3772 = vld [vmem:[%s17] sm:$0x1]
  %v3774 = vlaneseq
  %v3775 = vshrl.u32 %v3774, 7
  %v3776 = vsub.s32 0, %v3775
  %v3777 = vrot.slane %v3772, %v3776
  %3780 = vrot.lane.b32.xlu0 %v3770, 125
  %v3781 = vpop.permute.xlu0 %3780
  %v3782 = vsel %vm75, %v3781, 0
  %v3785 = vsel %vm79, %v3771, 0
  %3787 = vmatprep.subr.mxu0 0.0
  %v3788 = vand.u32 %v3785, 4294901760
  %3789 = vmatpush1.msra.mxu0 %v3788
  %3790 = vmatprep.subr.mxu0 0.0
  %3791 = vmatpush1.msra.mxu0 0.0
  %3792 = vmatprep.subr.mxu0 0.0
  %3793 = vmatpush1.msra.mxu0 0.0
  %3794 = vmatprep.subr.mxu0 0.0
  %3795 = vmatpush1.msra.mxu0 0.0
  %3796 = vmatprep.subr.mxu0 0.0
  %3797 = vmatpush1.msra.mxu0 0.0
  %3798 = vmatprep.subr.mxu0 0.0
  %3799 = vmatpush1.msra.mxu0 0.0
  %3800 = vmatprep.subr.mxu0 0.0
  %3801 = vmatpush1.msra.mxu0 0.0
  %3802 = vmatprep.subr.mxu0 0.0
  %3803 = vmatpush1.msra.mxu0 0.0
  %3804 = vmatprep.subr.mxu0 0.0
  %3805 = vmatpush1.msra.mxu0 0.0
  %3806 = vmatprep.subr.mxu0 0.0
  %3807 = vmatpush1.msra.mxu0 0.0
  %3808 = vmatprep.subr.mxu0 0.0
  %3809 = vmatpush1.msra.mxu0 0.0
  %3810 = vmatprep.subr.mxu0 0.0
  %3811 = vmatpush1.msra.mxu0 0.0
  %3812 = vmatprep.subr.mxu0 0.0
  %3813 = vmatpush1.msra.mxu0 0.0
  %3814 = vmatprep.subr.mxu0 0.0
  %3815 = vmatpush1.msra.mxu0 0.0
  %3816 = vmatprep.subr.mxu0 0.0
  %3817 = vmatpush1.msra.mxu0 0.0
  %3818 = vmatprep.subr.mxu0 0.0
  %3819 = vmatpush1.msra.mxu0 0.0
  %3820 = vmatprep.subr.mxu0 0.0
  %3821 = vmatpush1.msra.mxu0 0.0
  %3822 = vmatprep.subr.mxu0 0.0
  %3823 = vmatpush1.msra.mxu0 0.0
  %3824 = vmatprep.subr.mxu0 0.0
  %3825 = vmatpush1.msra.mxu0 0.0
  %3826 = vmatprep.subr.mxu0 0.0
  %3827 = vmatpush1.msra.mxu0 0.0
  %3828 = vmatprep.subr.mxu0 0.0
  %3829 = vmatpush1.msra.mxu0 0.0
  %3830 = vmatprep.subr.mxu0 0.0
  %3831 = vmatpush1.msra.mxu0 0.0
  %3832 = vmatprep.subr.mxu0 0.0
  %3833 = vmatpush1.msra.mxu0 0.0
  %3834 = vmatprep.subr.mxu0 0.0
  %3835 = vmatpush1.msra.mxu0 0.0
  %3836 = vmatprep.subr.mxu0 0.0
  %3837 = vmatpush1.msra.mxu0 0.0
  %3838 = vmatprep.subr.mxu0 0.0
  %3839 = vmatpush1.msra.mxu0 0.0
  %3840 = vmatprep.subr.mxu0 0.0
  %3841 = vmatpush1.msra.mxu0 0.0
  %3842 = vmatprep.subr.mxu0 0.0
  %3843 = vmatpush1.msra.mxu0 0.0
  %3844 = vmatprep.subr.mxu0 0.0
  %3845 = vmatpush1.msra.mxu0 0.0
  %3846 = vmatprep.subr.mxu0 0.0
  %3847 = vmatpush1.msra.mxu0 0.0
  %3848 = vmatprep.subr.mxu0 0.0
  %3849 = vmatpush1.msra.mxu0 0.0
  %3850 = vmatprep.subr.mxu0 0.0
  %3851 = vmatpush1.msra.mxu0 0.0
  %3852 = vmatprep.mubr.f32.mxu0 0.0
  %v3853 = vand.u32 %v3782, 4294901760
  %v3854 = vsub.f32 %v3782, %v3853
  %v3855 = vand.u32 %v3854, 4294901760
  %v3856 = vsub.f32 %v3854, %v3855
  %v3857 = vand.u32 %v3856, 4294901760
  %3858 = vmatmul.mubr.f32.gmra.mrb[0].mxu0 %v3857
  %v3859 = vpop.f32.mrb[0].mxu0
  %v3860 = vadd.f32 %v3777, %v3859
  %v3861 = vpop.f32.mrb[0].mxu0
  %3862 = vdwg.mxu0
  %3863 = vmatprep.subr.mxu0 0.0
  %v3864 = vand.u32 %v3785, 4294901760
  %v3865 = vsub.f32 %v3785, %v3864
  %v3866 = vand.u32 %v3865, 4294901760
  %v3867 = vsub.f32 %v3865, %v3866
  %v3868 = vand.u32 %v3867, 4294901760
  %3869 = vmatpush1.msra.mxu0 %v3868
  %3870 = vmatprep.subr.mxu0 0.0
  %3871 = vmatpush1.msra.mxu0 0.0
  %3872 = vmatprep.subr.mxu0 0.0
  %3873 = vmatpush1.msra.mxu0 0.0
  %3874 = vmatprep.subr.mxu0 0.0
  %3875 = vmatpush1.msra.mxu0 0.0
  %3876 = vmatprep.subr.mxu0 0.0
  %3877 = vmatpush1.msra.mxu0 0.0
  %3878 = vmatprep.subr.mxu0 0.0
  %3879 = vmatpush1.msra.mxu0 0.0
  %3880 = vmatprep.subr.mxu0 0.0
  %3881 = vmatpush1.msra.mxu0 0.0
  %3882 = vmatprep.subr.mxu0 0.0
  %3883 = vmatpush1.msra.mxu0 0.0
  %3884 = vmatprep.subr.mxu0 0.0
  %3885 = vmatpush1.msra.mxu0 0.0
  %3886 = vmatprep.subr.mxu0 0.0
  %3887 = vmatpush1.msra.mxu0 0.0
  %3888 = vmatprep.subr.mxu0 0.0
  %3889 = vmatpush1.msra.mxu0 0.0
  %3890 = vmatprep.subr.mxu0 0.0
  %3891 = vmatpush1.msra.mxu0 0.0
  %3892 = vmatprep.subr.mxu0 0.0
  %3893 = vmatpush1.msra.mxu0 0.0
  %3894 = vmatprep.subr.mxu0 0.0
  %3895 = vmatpush1.msra.mxu0 0.0
  %3896 = vmatprep.subr.mxu0 0.0
  %3897 = vmatpush1.msra.mxu0 0.0
  %3898 = vmatprep.subr.mxu0 0.0
  %3899 = vmatpush1.msra.mxu0 0.0
  %3900 = vmatprep.subr.mxu0 0.0
  %3901 = vmatpush1.msra.mxu0 0.0
  %3902 = vmatprep.subr.mxu0 0.0
  %3903 = vmatpush1.msra.mxu0 0.0
  %3904 = vmatprep.subr.mxu0 0.0
  %3905 = vmatpush1.msra.mxu0 0.0
  %3906 = vmatprep.subr.mxu0 0.0
  %3907 = vmatpush1.msra.mxu0 0.0
  %3908 = vmatprep.subr.mxu0 0.0
  %3909 = vmatpush1.msra.mxu0 0.0
  %3910 = vmatprep.subr.mxu0 0.0
  %3911 = vmatpush1.msra.mxu0 0.0
  %3912 = vmatprep.subr.mxu0 0.0
  %3913 = vmatpush1.msra.mxu0 0.0
  %3914 = vmatprep.subr.mxu0 0.0
  %3915 = vmatpush1.msra.mxu0 0.0
  %3916 = vmatprep.subr.mxu0 0.0
  %3917 = vmatpush1.msra.mxu0 0.0
  %3918 = vmatprep.subr.mxu0 0.0
  %3919 = vmatpush1.msra.mxu0 0.0
  %3920 = vmatprep.subr.mxu0 0.0
  %3921 = vmatpush1.msra.mxu0 0.0
  %3922 = vmatprep.subr.mxu0 0.0
  %3923 = vmatpush1.msra.mxu0 0.0
  %3924 = vmatprep.subr.mxu0 0.0
  %3925 = vmatpush1.msra.mxu0 0.0
  %3926 = vmatprep.subr.mxu0 0.0
  %3927 = vmatpush1.msra.mxu0 0.0
  %3928 = vmatprep.subr.mxu0 0.0
  %3929 = vmatpush1.msra.mxu0 0.0
  %3930 = vmatprep.subr.mxu0 0.0
  %3931 = vmatpush1.msra.mxu0 0.0
  %3932 = vmatprep.mubr.f32.mxu0 0.0
  %v3933 = vand.u32 %v3782, 4294901760
  %3934 = vmatmul.mubr.f32.gmra.mrb[0].mxu0 %v3933
  %v3935 = vpop.f32.mrb[0].mxu0
  %v3936 = vadd.f32 %v3860, %v3935
  %v3937 = vpop.f32.mrb[0].mxu0
  %3938 = vdwg.mxu0
  %3939 = vmatprep.subr.mxu0 0.0
  %v3940 = vand.u32 %v3785, 4294901760
  %v3941 = vsub.f32 %v3785, %v3940
  %3942 = vmatpush1.msra.mxu0 %v3941
  %3943 = vmatprep.subr.mxu0 0.0
  %3944 = vmatpush1.msra.mxu0 0.0
  %3945 = vmatprep.subr.mxu0 0.0
  %3946 = vmatpush1.msra.mxu0 0.0
  %3947 = vmatprep.subr.mxu0 0.0
  %3948 = vmatpush1.msra.mxu0 0.0
  %3949 = vmatprep.subr.mxu0 0.0
  %3950 = vmatpush1.msra.mxu0 0.0
  %3951 = vmatprep.subr.mxu0 0.0
  %3952 = vmatpush1.msra.mxu0 0.0
  %3953 = vmatprep.subr.mxu0 0.0
  %3954 = vmatpush1.msra.mxu0 0.0
  %3955 = vmatprep.subr.mxu0 0.0
  %3956 = vmatpush1.msra.mxu0 0.0
  %3957 = vmatprep.subr.mxu0 0.0
  %3958 = vmatpush1.msra.mxu0 0.0
  %3959 = vmatprep.subr.mxu0 0.0
  %3960 = vmatpush1.msra.mxu0 0.0
  %3961 = vmatprep.subr.mxu0 0.0
  %3962 = vmatpush1.msra.mxu0 0.0
  %3963 = vmatprep.subr.mxu0 0.0
  %3964 = vmatpush1.msra.mxu0 0.0
  %3965 = vmatprep.subr.mxu0 0.0
  %3966 = vmatpush1.msra.mxu0 0.0
  %3967 = vmatprep.subr.mxu0 0.0
  %3968 = vmatpush1.msra.mxu0 0.0
  %3969 = vmatprep.subr.mxu0 0.0
  %3970 = vmatpush1.msra.mxu0 0.0
  %3971 = vmatprep.subr.mxu0 0.0
  %3972 = vmatpush1.msra.mxu0 0.0
  %3973 = vmatprep.subr.mxu0 0.0
  %3974 = vmatpush1.msra.mxu0 0.0
  %3975 = vmatprep.subr.mxu0 0.0
  %3976 = vmatpush1.msra.mxu0 0.0
  %3977 = vmatprep.subr.mxu0 0.0
  %3978 = vmatpush1.msra.mxu0 0.0
  %3979 = vmatprep.subr.mxu0 0.0
  %3980 = vmatpush1.msra.mxu0 0.0
  %3981 = vmatprep.subr.mxu0 0.0
  %3982 = vmatpush1.msra.mxu0 0.0
  %3983 = vmatprep.subr.mxu0 0.0
  %3984 = vmatpush1.msra.mxu0 0.0
  %3985 = vmatprep.subr.mxu0 0.0
  %3986 = vmatpush1.msra.mxu0 0.0
  %3987 = vmatprep.subr.mxu0 0.0
  %3988 = vmatpush1.msra.mxu0 0.0
  %3989 = vmatprep.subr.mxu0 0.0
  %3990 = vmatpush1.msra.mxu0 0.0
  %3991 = vmatprep.subr.mxu0 0.0
  %3992 = vmatpush1.msra.mxu0 0.0
  %3993 = vmatprep.subr.mxu0 0.0
  %3994 = vmatpush1.msra.mxu0 0.0
  %3995 = vmatprep.subr.mxu0 0.0
  %3996 = vmatpush1.msra.mxu0 0.0
  %3997 = vmatprep.subr.mxu0 0.0
  %3998 = vmatpush1.msra.mxu0 0.0
  %3999 = vmatprep.subr.mxu0 0.0
  %4000 = vmatpush1.msra.mxu0 0.0
  %4001 = vmatprep.subr.mxu0 0.0
  %4002 = vmatpush1.msra.mxu0 0.0
  %4003 = vmatprep.subr.mxu0 0.0
  %4004 = vmatpush1.msra.mxu0 0.0
  %4005 = vmatprep.mubr.f32.mxu0 0.0
  %v4006 = vand.u32 %v3782, 4294901760
  %v4007 = vsub.f32 %v3782, %v4006
  %4008 = vmatmul.mubr.f32.gmra.mrb[0].mxu0 %v4007
  %v4009 = vpop.f32.mrb[0].mxu0
  %v4010 = vadd.f32 %v3936, %v4009
  %v4011 = vpop.f32.mrb[0].mxu0
  %4012 = vdwg.mxu0
  %4013 = vmatprep.subr.mxu0 0.0
  %v4014 = vand.u32 %v3785, 4294901760
  %4015 = vmatpush1.msra.mxu0 %v4014
  %4016 = vmatprep.subr.mxu0 0.0
  %4017 = vmatpush1.msra.mxu0 0.0
  %4018 = vmatprep.subr.mxu0 0.0
  %4019 = vmatpush1.msra.mxu0 0.0
  %4020 = vmatprep.subr.mxu0 0.0
  %4021 = vmatpush1.msra.mxu0 0.0
  %4022 = vmatprep.subr.mxu0 0.0
  %4023 = vmatpush1.msra.mxu0 0.0
  %4024 = vmatprep.subr.mxu0 0.0
  %4025 = vmatpush1.msra.mxu0 0.0
  %4026 = vmatprep.subr.mxu0 0.0
  %4027 = vmatpush1.msra.mxu0 0.0
  %4028 = vmatprep.subr.mxu0 0.0
  %4029 = vmatpush1.msra.mxu0 0.0
  %4030 = vmatprep.subr.mxu0 0.0
  %4031 = vmatpush1.msra.mxu0 0.0
  %4032 = vmatprep.subr.mxu0 0.0
  %4033 = vmatpush1.msra.mxu0 0.0
  %4034 = vmatprep.subr.mxu0 0.0
  %4035 = vmatpush1.msra.mxu0 0.0
  %4036 = vmatprep.subr.mxu0 0.0
  %4037 = vmatpush1.msra.mxu0 0.0
  %4038 = vmatprep.subr.mxu0 0.0
  %4039 = vmatpush1.msra.mxu0 0.0
  %4040 = vmatprep.subr.mxu0 0.0
  %4041 = vmatpush1.msra.mxu0 0.0
  %4042 = vmatprep.subr.mxu0 0.0
  %4043 = vmatpush1.msra.mxu0 0.0
  %4044 = vmatprep.subr.mxu0 0.0
  %4045 = vmatpush1.msra.mxu0 0.0
  %4046 = vmatprep.subr.mxu0 0.0
  %4047 = vmatpush1.msra.mxu0 0.0
  %4048 = vmatprep.subr.mxu0 0.0
  %4049 = vmatpush1.msra.mxu0 0.0
  %4050 = vmatprep.subr.mxu0 0.0
  %4051 = vmatpush1.msra.mxu0 0.0
  %4052 = vmatprep.subr.mxu0 0.0
  %4053 = vmatpush1.msra.mxu0 0.0
  %4054 = vmatprep.subr.mxu0 0.0
  %4055 = vmatpush1.msra.mxu0 0.0
  %4056 = vmatprep.subr.mxu0 0.0
  %4057 = vmatpush1.msra.mxu0 0.0
  %4058 = vmatprep.subr.mxu0 0.0
  %4059 = vmatpush1.msra.mxu0 0.0
  %4060 = vmatprep.subr.mxu0 0.0
  %4061 = vmatpush1.msra.mxu0 0.0
  %4062 = vmatprep.subr.mxu0 0.0
  %4063 = vmatpush1.msra.mxu0 0.0
  %4064 = vmatprep.subr.mxu0 0.0
  %4065 = vmatpush1.msra.mxu0 0.0
  %4066 = vmatprep.subr.mxu0 0.0
  %4067 = vmatpush1.msra.mxu0 0.0
  %4068 = vmatprep.subr.mxu0 0.0
  %4069 = vmatpush1.msra.mxu0 0.0
  %4070 = vmatprep.subr.mxu0 0.0
  %4071 = vmatpush1.msra.mxu0 0.0
  %4072 = vmatprep.subr.mxu0 0.0
  %4073 = vmatpush1.msra.mxu0 0.0
  %4074 = vmatprep.subr.mxu0 0.0
  %4075 = vmatpush1.msra.mxu0 0.0
  %4076 = vmatprep.subr.mxu0 0.0
  %4077 = vmatpush1.msra.mxu0 0.0
  %4078 = vmatprep.mubr.f32.mxu0 0.0
  %v4079 = vand.u32 %v3782, 4294901760
  %v4080 = vsub.f32 %v3782, %v4079
  %v4081 = vand.u32 %v4080, 4294901760
  %4082 = vmatmul.mubr.f32.gmra.mrb[0].mxu0 %v4081
  %v4083 = vpop.f32.mrb[0].mxu0
  %v4084 = vadd.f32 %v4010, %v4083
  %v4085 = vpop.f32.mrb[0].mxu0
  %4086 = vdwg.mxu0
  %4087 = vmatprep.subr.mxu0 0.0
  %v4088 = vand.u32 %v3785, 4294901760
  %v4089 = vsub.f32 %v3785, %v4088
  %v4090 = vand.u32 %v4089, 4294901760
  %4091 = vmatpush1.msra.mxu0 %v4090
  %4092 = vmatprep.subr.mxu0 0.0
  %4093 = vmatpush1.msra.mxu0 0.0
  %4094 = vmatprep.subr.mxu0 0.0
  %4095 = vmatpush1.msra.mxu0 0.0
  %4096 = vmatprep.subr.mxu0 0.0
  %4097 = vmatpush1.msra.mxu0 0.0
  %4098 = vmatprep.subr.mxu0 0.0
  %4099 = vmatpush1.msra.mxu0 0.0
  %4100 = vmatprep.subr.mxu0 0.0
  %4101 = vmatpush1.msra.mxu0 0.0
  %4102 = vmatprep.subr.mxu0 0.0
  %4103 = vmatpush1.msra.mxu0 0.0
  %4104 = vmatprep.subr.mxu0 0.0
  %4105 = vmatpush1.msra.mxu0 0.0
  %4106 = vmatprep.subr.mxu0 0.0
  %4107 = vmatpush1.msra.mxu0 0.0
  %4108 = vmatprep.subr.mxu0 0.0
  %4109 = vmatpush1.msra.mxu0 0.0
  %4110 = vmatprep.subr.mxu0 0.0
  %4111 = vmatpush1.msra.mxu0 0.0
  %4112 = vmatprep.subr.mxu0 0.0
  %4113 = vmatpush1.msra.mxu0 0.0
  %4114 = vmatprep.subr.mxu0 0.0
  %4115 = vmatpush1.msra.mxu0 0.0
  %4116 = vmatprep.subr.mxu0 0.0
  %4117 = vmatpush1.msra.mxu0 0.0
  %4118 = vmatprep.subr.mxu0 0.0
  %4119 = vmatpush1.msra.mxu0 0.0
  %4120 = vmatprep.subr.mxu0 0.0
  %4121 = vmatpush1.msra.mxu0 0.0
  %4122 = vmatprep.subr.mxu0 0.0
  %4123 = vmatpush1.msra.mxu0 0.0
  %4124 = vmatprep.subr.mxu0 0.0
  %4125 = vmatpush1.msra.mxu0 0.0
  %4126 = vmatprep.subr.mxu0 0.0
  %4127 = vmatpush1.msra.mxu0 0.0
  %4128 = vmatprep.subr.mxu0 0.0
  %4129 = vmatpush1.msra.mxu0 0.0
  %4130 = vmatprep.subr.mxu0 0.0
  %4131 = vmatpush1.msra.mxu0 0.0
  %4132 = vmatprep.subr.mxu0 0.0
  %4133 = vmatpush1.msra.mxu0 0.0
  %4134 = vmatprep.subr.mxu0 0.0
  %4135 = vmatpush1.msra.mxu0 0.0
  %4136 = vmatprep.subr.mxu0 0.0
  %4137 = vmatpush1.msra.mxu0 0.0
  %4138 = vmatprep.subr.mxu0 0.0
  %4139 = vmatpush1.msra.mxu0 0.0
  %4140 = vmatprep.subr.mxu0 0.0
  %4141 = vmatpush1.msra.mxu0 0.0
  %4142 = vmatprep.subr.mxu0 0.0
  %4143 = vmatpush1.msra.mxu0 0.0
  %4144 = vmatprep.subr.mxu0 0.0
  %4145 = vmatpush1.msra.mxu0 0.0
  %4146 = vmatprep.subr.mxu0 0.0
  %4147 = vmatpush1.msra.mxu0 0.0
  %4148 = vmatprep.subr.mxu0 0.0
  %4149 = vmatpush1.msra.mxu0 0.0
  %4150 = vmatprep.subr.mxu0 0.0
  %4151 = vmatpush1.msra.mxu0 0.0
  %4152 = vmatprep.subr.mxu0 0.0
  %4153 = vmatpush1.msra.mxu0 0.0
  %4154 = vmatprep.mubr.f32.mxu0 0.0
  %v4155 = vand.u32 %v3782, 4294901760
  %4156 = vmatmul.mubr.f32.gmra.mrb[0].mxu0 %v4155
  %v4157 = vpop.f32.mrb[0].mxu0
  %v4158 = vadd.f32 %v4084, %v4157
  %v4159 = vpop.f32.mrb[0].mxu0
  %4160 = vdwg.mxu0
  %4161 = vmatprep.subr.mxu0 0.0
  %v4162 = vand.u32 %v3785, 4294901760
  %4163 = vmatpush1.msra.mxu0 %v4162
  %4164 = vmatprep.subr.mxu0 0.0
  %4165 = vmatpush1.msra.mxu0 0.0
  %4166 = vmatprep.subr.mxu0 0.0
  %4167 = vmatpush1.msra.mxu0 0.0
  %4168 = vmatprep.subr.mxu0 0.0
  %4169 = vmatpush1.msra.mxu0 0.0
  %4170 = vmatprep.subr.mxu0 0.0
  %4171 = vmatpush1.msra.mxu0 0.0
  %4172 = vmatprep.subr.mxu0 0.0
  %4173 = vmatpush1.msra.mxu0 0.0
  %4174 = vmatprep.subr.mxu0 0.0
  %4175 = vmatpush1.msra.mxu0 0.0
  %4176 = vmatprep.subr.mxu0 0.0
  %4177 = vmatpush1.msra.mxu0 0.0
  %4178 = vmatprep.subr.mxu0 0.0
  %4179 = vmatpush1.msra.mxu0 0.0
  %4180 = vmatprep.subr.mxu0 0.0
  %4181 = vmatpush1.msra.mxu0 0.0
  %4182 = vmatprep.subr.mxu0 0.0
  %4183 = vmatpush1.msra.mxu0 0.0
  %4184 = vmatprep.subr.mxu0 0.0
  %4185 = vmatpush1.msra.mxu0 0.0
  %4186 = vmatprep.subr.mxu0 0.0
  %4187 = vmatpush1.msra.mxu0 0.0
  %4188 = vmatprep.subr.mxu0 0.0
  %4189 = vmatpush1.msra.mxu0 0.0
  %4190 = vmatprep.subr.mxu0 0.0
  %4191 = vmatpush1.msra.mxu0 0.0
  %4192 = vmatprep.subr.mxu0 0.0
  %4193 = vmatpush1.msra.mxu0 0.0
  %4194 = vmatprep.subr.mxu0 0.0
  %4195 = vmatpush1.msra.mxu0 0.0
  %4196 = vmatprep.subr.mxu0 0.0
  %4197 = vmatpush1.msra.mxu0 0.0
  %4198 = vmatprep.subr.mxu0 0.0
  %4199 = vmatpush1.msra.mxu0 0.0
  %4200 = vmatprep.subr.mxu0 0.0
  %4201 = vmatpush1.msra.mxu0 0.0
  %4202 = vmatprep.subr.mxu0 0.0
  %4203 = vmatpush1.msra.mxu0 0.0
  %4204 = vmatprep.subr.mxu0 0.0
  %4205 = vmatpush1.msra.mxu0 0.0
  %4206 = vmatprep.subr.mxu0 0.0
  %4207 = vmatpush1.msra.mxu0 0.0
  %4208 = vmatprep.subr.mxu0 0.0
  %4209 = vmatpush1.msra.mxu0 0.0
  %4210 = vmatprep.subr.mxu0 0.0
  %4211 = vmatpush1.msra.mxu0 0.0
  %4212 = vmatprep.subr.mxu0 0.0
  %4213 = vmatpush1.msra.mxu0 0.0
  %4214 = vmatprep.subr.mxu0 0.0
  %4215 = vmatpush1.msra.mxu0 0.0
  %4216 = vmatprep.subr.mxu0 0.0
  %4217 = vmatpush1.msra.mxu0 0.0
  %4218 = vmatprep.subr.mxu0 0.0
  %4219 = vmatpush1.msra.mxu0 0.0
  %4220 = vmatprep.subr.mxu0 0.0
  %4221 = vmatpush1.msra.mxu0 0.0
  %4222 = vmatprep.subr.mxu0 0.0
  %4223 = vmatpush1.msra.mxu0 0.0
  %4224 = vmatprep.subr.mxu0 0.0
  %4225 = vmatpush1.msra.mxu0 0.0
  %4226 = vmatprep.mubr.f32.mxu0 0.0
  %v4227 = vand.u32 %v3782, 4294901760
  %4228 = vmatmul.mubr.f32.gmra.mrb[0].mxu0 %v4227
  %v4229 = vpop.f32.mrb[0].mxu0
  %v4230 = vadd.f32 %v4158, %v4229
  %v4231 = vpop.f32.mrb[0].mxu0
  %4232 = vdwg.mxu0
  %v4233 = vmax.f32 %v4230, 0.0
  %v4234 = vld [vmem:[%s18] sm:$0xff]
  %v4235 = vld [vmem:[%s18 + $0x8] sm:$0xff]
  %v4236 = vld [vmem:[%s18 + $0x10] sm:$0xff]
  %v4237 = vld [vmem:[%s18 + $0x18] sm:$0xff]
  %v4238 = vld [vmem:[%s19] sm:$0x1]
  %v4240 = vlaneseq
  %v4241 = vshrl.u32 %v4240, 7
  %v4242 = vsub.s32 0, %v4241
  %v4243 = vrot.slane %v4238, %v4242
  %v4246 = vsel %vm2563, %v4233, 0
  %4248 = vmatprep.subr.mxu0 0.0
  %v4249 = vand.u32 %v4234, 4294901760
  %4250 = vmatpush1.msra.mxu0 %v4249
  %4251 = vmatprep.subr.mxu0 0.0
  %v4252 = vand.u32 %v4235, 4294901760
  %4253 = vmatpush1.msra.mxu0 %v4252
  %4254 = vmatprep.subr.mxu0 0.0
  %v4255 = vand.u32 %v4236, 4294901760
  %4256 = vmatpush1.msra.mxu0 %v4255
  %4257 = vmatprep.subr.mxu0 0.0
  %v4258 = vand.u32 %v4237, 4294901760
  %4259 = vmatpush1.msra.mxu0 %v4258
  %4260 = vmatprep.subr.mxu0 0.0
  %4261 = vmatpush1.msra.mxu0 0.0
  %4262 = vmatprep.subr.mxu0 0.0
  %4263 = vmatpush1.msra.mxu0 0.0
  %4264 = vmatprep.subr.mxu0 0.0
  %4265 = vmatpush1.msra.mxu0 0.0
  %4266 = vmatprep.subr.mxu0 0.0
  %4267 = vmatpush1.msra.mxu0 0.0
  %4268 = vmatprep.subr.mxu0 0.0
  %4269 = vmatpush1.msra.mxu0 0.0
  %4270 = vmatprep.subr.mxu0 0.0
  %4271 = vmatpush1.msra.mxu0 0.0
  %4272 = vmatprep.subr.mxu0 0.0
  %4273 = vmatpush1.msra.mxu0 0.0
  %4274 = vmatprep.subr.mxu0 0.0
  %4275 = vmatpush1.msra.mxu0 0.0
  %4276 = vmatprep.subr.mxu0 0.0
  %4277 = vmatpush1.msra.mxu0 0.0
  %4278 = vmatprep.subr.mxu0 0.0
  %4279 = vmatpush1.msra.mxu0 0.0
  %4280 = vmatprep.subr.mxu0 0.0
  %4281 = vmatpush1.msra.mxu0 0.0
  %4282 = vmatprep.subr.mxu0 0.0
  %4283 = vmatpush1.msra.mxu0 0.0
  %4284 = vmatprep.subr.mxu0 0.0
  %4285 = vmatpush1.msra.mxu0 0.0
  %4286 = vmatprep.subr.mxu0 0.0
  %4287 = vmatpush1.msra.mxu0 0.0
  %4288 = vmatprep.subr.mxu0 0.0
  %4289 = vmatpush1.msra.mxu0 0.0
  %4290 = vmatprep.subr.mxu0 0.0
  %4291 = vmatpush1.msra.mxu0 0.0
  %4292 = vmatprep.subr.mxu0 0.0
  %4293 = vmatpush1.msra.mxu0 0.0
  %4294 = vmatprep.subr.mxu0 0.0
  %4295 = vmatpush1.msra.mxu0 0.0
  %4296 = vmatprep.subr.mxu0 0.0
  %4297 = vmatpush1.msra.mxu0 0.0
  %4298 = vmatprep.subr.mxu0 0.0
  %4299 = vmatpush1.msra.mxu0 0.0
  %4300 = vmatprep.subr.mxu0 0.0
  %4301 = vmatpush1.msra.mxu0 0.0
  %4302 = vmatprep.subr.mxu0 0.0
  %4303 = vmatpush1.msra.mxu0 0.0
  %4304 = vmatprep.subr.mxu0 0.0
  %4305 = vmatpush1.msra.mxu0 0.0
  %4306 = vmatprep.subr.mxu0 0.0
  %4307 = vmatpush1.msra.mxu0 0.0
  %4308 = vmatprep.subr.mxu0 0.0
  %4309 = vmatpush1.msra.mxu0 0.0
  %4310 = vmatprep.subr.mxu0 0.0
  %4311 = vmatpush1.msra.mxu0 0.0
  %4312 = vmatprep.subr.mxu0 0.0
  %4313 = vmatpush1.msra.mxu0 0.0
  %4314 = vmatprep.subr.mxu0 0.0
  %4315 = vmatpush1.msra.mxu0 0.0
  %4316 = vmatprep.mubr.f32.mxu0 0.0
  %v4317 = vand.u32 %v4246, 4294901760
  %v4318 = vsub.f32 %v4246, %v4317
  %v4319 = vand.u32 %v4318, 4294901760
  %v4320 = vsub.f32 %v4318, %v4319
  %v4321 = vand.u32 %v4320, 4294901760
  %4322 = vmatmul.mubr.f32.gmra.mrb[0].mxu0 %v4321
  %v4323 = vpop.f32.mrb[0].mxu0
  %v4324 = vadd.f32 %v4243, %v4323
  %v4325 = vpop.f32.mrb[0].mxu0
  %4326 = vdwg.mxu0
  %4327 = vmatprep.subr.mxu0 0.0
  %v4328 = vand.u32 %v4234, 4294901760
  %v4329 = vsub.f32 %v4234, %v4328
  %v4330 = vand.u32 %v4329, 4294901760
  %v4331 = vsub.f32 %v4329, %v4330
  %v4332 = vand.u32 %v4331, 4294901760
  %4333 = vmatpush1.msra.mxu0 %v4332
  %4334 = vmatprep.subr.mxu0 0.0
  %v4335 = vand.u32 %v4235, 4294901760
  %v4336 = vsub.f32 %v4235, %v4335
  %v4337 = vand.u32 %v4336, 4294901760
  %v4338 = vsub.f32 %v4336, %v4337
  %v4339 = vand.u32 %v4338, 4294901760
  %4340 = vmatpush1.msra.mxu0 %v4339
  %4341 = vmatprep.subr.mxu0 0.0
  %v4342 = vand.u32 %v4236, 4294901760
  %v4343 = vsub.f32 %v4236, %v4342
  %v4344 = vand.u32 %v4343, 4294901760
  %v4345 = vsub.f32 %v4343, %v4344
  %v4346 = vand.u32 %v4345, 4294901760
  %4347 = vmatpush1.msra.mxu0 %v4346
  %4348 = vmatprep.subr.mxu0 0.0
  %v4349 = vand.u32 %v4237, 4294901760
  %v4350 = vsub.f32 %v4237, %v4349
  %v4351 = vand.u32 %v4350, 4294901760
  %v4352 = vsub.f32 %v4350, %v4351
  %v4353 = vand.u32 %v4352, 4294901760
  %4354 = vmatpush1.msra.mxu0 %v4353
  %4355 = vmatprep.subr.mxu0 0.0
  %4356 = vmatpush1.msra.mxu0 0.0
  %4357 = vmatprep.subr.mxu0 0.0
  %4358 = vmatpush1.msra.mxu0 0.0
  %4359 = vmatprep.subr.mxu0 0.0
  %4360 = vmatpush1.msra.mxu0 0.0
  %4361 = vmatprep.subr.mxu0 0.0
  %4362 = vmatpush1.msra.mxu0 0.0
  %4363 = vmatprep.subr.mxu0 0.0
  %4364 = vmatpush1.msra.mxu0 0.0
  %4365 = vmatprep.subr.mxu0 0.0
  %4366 = vmatpush1.msra.mxu0 0.0
  %4367 = vmatprep.subr.mxu0 0.0
  %4368 = vmatpush1.msra.mxu0 0.0
  %4369 = vmatprep.subr.mxu0 0.0
  %4370 = vmatpush1.msra.mxu0 0.0
  %4371 = vmatprep.subr.mxu0 0.0
  %4372 = vmatpush1.msra.mxu0 0.0
  %4373 = vmatprep.subr.mxu0 0.0
  %4374 = vmatpush1.msra.mxu0 0.0
  %4375 = vmatprep.subr.mxu0 0.0
  %4376 = vmatpush1.msra.mxu0 0.0
  %4377 = vmatprep.subr.mxu0 0.0
  %4378 = vmatpush1.msra.mxu0 0.0
  %4379 = vmatprep.subr.mxu0 0.0
  %4380 = vmatpush1.msra.mxu0 0.0
  %4381 = vmatprep.subr.mxu0 0.0
  %4382 = vmatpush1.msra.mxu0 0.0
  %4383 = vmatprep.subr.mxu0 0.0
  %4384 = vmatpush1.msra.mxu0 0.0
  %4385 = vmatprep.subr.mxu0 0.0
  %4386 = vmatpush1.msra.mxu0 0.0
  %4387 = vmatprep.subr.mxu0 0.0
  %4388 = vmatpush1.msra.mxu0 0.0
  %4389 = vmatprep.subr.mxu0 0.0
  %4390 = vmatpush1.msra.mxu0 0.0
  %4391 = vmatprep.subr.mxu0 0.0
  %4392 = vmatpush1.msra.mxu0 0.0
  %4393 = vmatprep.subr.mxu0 0.0
  %4394 = vmatpush1.msra.mxu0 0.0
  %4395 = vmatprep.subr.mxu0 0.0
  %4396 = vmatpush1.msra.mxu0 0.0
  %4397 = vmatprep.subr.mxu0 0.0
  %4398 = vmatpush1.msra.mxu0 0.0
  %4399 = vmatprep.subr.mxu0 0.0
  %4400 = vmatpush1.msra.mxu0 0.0
  %4401 = vmatprep.subr.mxu0 0.0
  %4402 = vmatpush1.msra.mxu0 0.0
  %4403 = vmatprep.subr.mxu0 0.0
  %4404 = vmatpush1.msra.mxu0 0.0
  %4405 = vmatprep.subr.mxu0 0.0
  %4406 = vmatpush1.msra.mxu0 0.0
  %4407 = vmatprep.subr.mxu0 0.0
  %4408 = vmatpush1.msra.mxu0 0.0
  %4409 = vmatprep.subr.mxu0 0.0
  %4410 = vmatpush1.msra.mxu0 0.0
  %4411 = vmatprep.mubr.f32.mxu0 0.0
  %v4412 = vand.u32 %v4246, 4294901760
  %4413 = vmatmul.mubr.f32.gmra.mrb[0].mxu0 %v4412
  %v4414 = vpop.f32.mrb[0].mxu0
  %v4415 = vadd.f32 %v4324, %v4414
  %v4416 = vpop.f32.mrb[0].mxu0
  %4417 = vdwg.mxu0
  %4418 = vmatprep.subr.mxu0 0.0
  %v4419 = vand.u32 %v4234, 4294901760
  %v4420 = vsub.f32 %v4234, %v4419
  %4421 = vmatpush1.msra.mxu0 %v4420
  %4422 = vmatprep.subr.mxu0 0.0
  %v4423 = vand.u32 %v4235, 4294901760
  %v4424 = vsub.f32 %v4235, %v4423
  %4425 = vmatpush1.msra.mxu0 %v4424
  %4426 = vmatprep.subr.mxu0 0.0
  %v4427 = vand.u32 %v4236, 4294901760
  %v4428 = vsub.f32 %v4236, %v4427
  %4429 = vmatpush1.msra.mxu0 %v4428
  %4430 = vmatprep.subr.mxu0 0.0
  %v4431 = vand.u32 %v4237, 4294901760
  %v4432 = vsub.f32 %v4237, %v4431
  %4433 = vmatpush1.msra.mxu0 %v4432
  %4434 = vmatprep.subr.mxu0 0.0
  %4435 = vmatpush1.msra.mxu0 0.0
  %4436 = vmatprep.subr.mxu0 0.0
  %4437 = vmatpush1.msra.mxu0 0.0
  %4438 = vmatprep.subr.mxu0 0.0
  %4439 = vmatpush1.msra.mxu0 0.0
  %4440 = vmatprep.subr.mxu0 0.0
  %4441 = vmatpush1.msra.mxu0 0.0
  %4442 = vmatprep.subr.mxu0 0.0
  %4443 = vmatpush1.msra.mxu0 0.0
  %4444 = vmatprep.subr.mxu0 0.0
  %4445 = vmatpush1.msra.mxu0 0.0
  %4446 = vmatprep.subr.mxu0 0.0
  %4447 = vmatpush1.msra.mxu0 0.0
  %4448 = vmatprep.subr.mxu0 0.0
  %4449 = vmatpush1.msra.mxu0 0.0
  %4450 = vmatprep.subr.mxu0 0.0
  %4451 = vmatpush1.msra.mxu0 0.0
  %4452 = vmatprep.subr.mxu0 0.0
  %4453 = vmatpush1.msra.mxu0 0.0
  %4454 = vmatprep.subr.mxu0 0.0
  %4455 = vmatpush1.msra.mxu0 0.0
  %4456 = vmatprep.subr.mxu0 0.0
  %4457 = vmatpush1.msra.mxu0 0.0
  %4458 = vmatprep.subr.mxu0 0.0
  %4459 = vmatpush1.msra.mxu0 0.0
  %4460 = vmatprep.subr.mxu0 0.0
  %4461 = vmatpush1.msra.mxu0 0.0
  %4462 = vmatprep.subr.mxu0 0.0
  %4463 = vmatpush1.msra.mxu0 0.0
  %4464 = vmatprep.subr.mxu0 0.0
  %4465 = vmatpush1.msra.mxu0 0.0
  %4466 = vmatprep.subr.mxu0 0.0
  %4467 = vmatpush1.msra.mxu0 0.0
  %4468 = vmatprep.subr.mxu0 0.0
  %4469 = vmatpush1.msra.mxu0 0.0
  %4470 = vmatprep.subr.mxu0 0.0
  %4471 = vmatpush1.msra.mxu0 0.0
  %4472 = vmatprep.subr.mxu0 0.0
  %4473 = vmatpush1.msra.mxu0 0.0
  %4474 = vmatprep.subr.mxu0 0.0
  %4475 = vmatpush1.msra.mxu0 0.0
  %4476 = vmatprep.subr.mxu0 0.0
  %4477 = vmatpush1.msra.mxu0 0.0
  %4478 = vmatprep.subr.mxu0 0.0
  %4479 = vmatpush1.msra.mxu0 0.0
  %4480 = vmatprep.subr.mxu0 0.0
  %4481 = vmatpush1.msra.mxu0 0.0
  %4482 = vmatprep.subr.mxu0 0.0
  %4483 = vmatpush1.msra.mxu0 0.0
  %4484 = vmatprep.subr.mxu0 0.0
  %4485 = vmatpush1.msra.mxu0 0.0
  %4486 = vmatprep.subr.mxu0 0.0
  %4487 = vmatpush1.msra.mxu0 0.0
  %4488 = vmatprep.subr.mxu0 0.0
  %4489 = vmatpush1.msra.mxu0 0.0
  %4490 = vmatprep.mubr.f32.mxu0 0.0
  %v4491 = vand.u32 %v4246, 4294901760
  %v4492 = vsub.f32 %v4246, %v4491
  %4493 = vmatmul.mubr.f32.gmra.mrb[0].mxu0 %v4492
  %v4494 = vpop.f32.mrb[0].mxu0
  %v4495 = vadd.f32 %v4415, %v4494
  %v4496 = vpop.f32.mrb[0].mxu0
  %4497 = vdwg.mxu0
  %4498 = vmatprep.subr.mxu0 0.0
  %v4499 = vand.u32 %v4234, 4294901760
  %4500 = vmatpush1.msra.mxu0 %v4499
  %4501 = vmatprep.subr.mxu0 0.0
  %v4502 = vand.u32 %v4235, 4294901760
  %4503 = vmatpush1.msra.mxu0 %v4502
  %4504 = vmatprep.subr.mxu0 0.0
  %v4505 = vand.u32 %v4236, 4294901760
  %4506 = vmatpush1.msra.mxu0 %v4505
  %4507 = vmatprep.subr.mxu0 0.0
  %v4508 = vand.u32 %v4237, 4294901760
  %4509 = vmatpush1.msra.mxu0 %v4508
  %4510 = vmatprep.subr.mxu0 0.0
  %4511 = vmatpush1.msra.mxu0 0.0
  %4512 = vmatprep.subr.mxu0 0.0
  %4513 = vmatpush1.msra.mxu0 0.0
  %4514 = vmatprep.subr.mxu0 0.0
  %4515 = vmatpush1.msra.mxu0 0.0
  %4516 = vmatprep.subr.mxu0 0.0
  %4517 = vmatpush1.msra.mxu0 0.0
  %4518 = vmatprep.subr.mxu0 0.0
  %4519 = vmatpush1.msra.mxu0 0.0
  %4520 = vmatprep.subr.mxu0 0.0
  %4521 = vmatpush1.msra.mxu0 0.0
  %4522 = vmatprep.subr.mxu0 0.0
  %4523 = vmatpush1.msra.mxu0 0.0
  %4524 = vmatprep.subr.mxu0 0.0
  %4525 = vmatpush1.msra.mxu0 0.0
  %4526 = vmatprep.subr.mxu0 0.0
  %4527 = vmatpush1.msra.mxu0 0.0
  %4528 = vmatprep.subr.mxu0 0.0
  %4529 = vmatpush1.msra.mxu0 0.0
  %4530 = vmatprep.subr.mxu0 0.0
  %4531 = vmatpush1.msra.mxu0 0.0
  %4532 = vmatprep.subr.mxu0 0.0
  %4533 = vmatpush1.msra.mxu0 0.0
  %4534 = vmatprep.subr.mxu0 0.0
  %4535 = vmatpush1.msra.mxu0 0.0
  %4536 = vmatprep.subr.mxu0 0.0
  %4537 = vmatpush1.msra.mxu0 0.0
  %4538 = vmatprep.subr.mxu0 0.0
  %4539 = vmatpush1.msra.mxu0 0.0
  %4540 = vmatprep.subr.mxu0 0.0
  %4541 = vmatpush1.msra.mxu0 0.0
  %4542 = vmatprep.subr.mxu0 0.0
  %4543 = vmatpush1.msra.mxu0 0.0
  %4544 = vmatprep.subr.mxu0 0.0
  %4545 = vmatpush1.msra.mxu0 0.0
  %4546 = vmatprep.subr.mxu0 0.0
  %4547 = vmatpush1.msra.mxu0 0.0
  %4548 = vmatprep.subr.mxu0 0.0
  %4549 = vmatpush1.msra.mxu0 0.0
  %4550 = vmatprep.subr.mxu0 0.0
  %4551 = vmatpush1.msra.mxu0 0.0
  %4552 = vmatprep.subr.mxu0 0.0
  %4553 = vmatpush1.msra.mxu0 0.0
  %4554 = vmatprep.subr.mxu0 0.0
  %4555 = vmatpush1.msra.mxu0 0.0
  %4556 = vmatprep.subr.mxu0 0.0
  %4557 = vmatpush1.msra.mxu0 0.0
  %4558 = vmatprep.subr.mxu0 0.0
  %4559 = vmatpush1.msra.mxu0 0.0
  %4560 = vmatprep.subr.mxu0 0.0
  %4561 = vmatpush1.msra.mxu0 0.0
  %4562 = vmatprep.subr.mxu0 0.0
  %4563 = vmatpush1.msra.mxu0 0.0
  %4564 = vmatprep.subr.mxu0 0.0
  %4565 = vmatpush1.msra.mxu0 0.0
  %4566 = vmatprep.mubr.f32.mxu0 0.0
  %v4567 = vand.u32 %v4246, 4294901760
  %v4568 = vsub.f32 %v4246, %v4567
  %v4569 = vand.u32 %v4568, 4294901760
  %4570 = vmatmul.mubr.f32.gmra.mrb[0].mxu0 %v4569
  %v4571 = vpop.f32.mrb[0].mxu0
  %v4572 = vadd.f32 %v4495, %v4571
  %v4573 = vpop.f32.mrb[0].mxu0
  %4574 = vdwg.mxu0
  %4575 = vmatprep.subr.mxu0 0.0
  %v4576 = vand.u32 %v4234, 4294901760
  %v4577 = vsub.f32 %v4234, %v4576
  %v4578 = vand.u32 %v4577, 4294901760
  %4579 = vmatpush1.msra.mxu0 %v4578
  %4580 = vmatprep.subr.mxu0 0.0
  %v4581 = vand.u32 %v4235, 4294901760
  %v4582 = vsub.f32 %v4235, %v4581
  %v4583 = vand.u32 %v4582, 4294901760
  %4584 = vmatpush1.msra.mxu0 %v4583
  %4585 = vmatprep.subr.mxu0 0.0
  %v4586 = vand.u32 %v4236, 4294901760
  %v4587 = vsub.f32 %v4236, %v4586
  %v4588 = vand.u32 %v4587, 4294901760
  %4589 = vmatpush1.msra.mxu0 %v4588
  %4590 = vmatprep.subr.mxu0 0.0
  %v4591 = vand.u32 %v4237, 4294901760
  %v4592 = vsub.f32 %v4237, %v4591
  %v4593 = vand.u32 %v4592, 4294901760
  %4594 = vmatpush1.msra.mxu0 %v4593
  %4595 = vmatprep.subr.mxu0 0.0
  %4596 = vmatpush1.msra.mxu0 0.0
  %4597 = vmatprep.subr.mxu0 0.0
  %4598 = vmatpush1.msra.mxu0 0.0
  %4599 = vmatprep.subr.mxu0 0.0
  %4600 = vmatpush1.msra.mxu0 0.0
  %4601 = vmatprep.subr.mxu0 0.0
  %4602 = vmatpush1.msra.mxu0 0.0
  %4603 = vmatprep.subr.mxu0 0.0
  %4604 = vmatpush1.msra.mxu0 0.0
  %4605 = vmatprep.subr.mxu0 0.0
  %4606 = vmatpush1.msra.mxu0 0.0
  %4607 = vmatprep.subr.mxu0 0.0
  %4608 = vmatpush1.msra.mxu0 0.0
  %4609 = vmatprep.subr.mxu0 0.0
  %4610 = vmatpush1.msra.mxu0 0.0
  %4611 = vmatprep.subr.mxu0 0.0
  %4612 = vmatpush1.msra.mxu0 0.0
  %4613 = vmatprep.subr.mxu0 0.0
  %4614 = vmatpush1.msra.mxu0 0.0
  %4615 = vmatprep.subr.mxu0 0.0
  %4616 = vmatpush1.msra.mxu0 0.0
  %4617 = vmatprep.subr.mxu0 0.0
  %4618 = vmatpush1.msra.mxu0 0.0
  %4619 = vmatprep.subr.mxu0 0.0
  %4620 = vmatpush1.msra.mxu0 0.0
  %4621 = vmatprep.subr.mxu0 0.0
  %4622 = vmatpush1.msra.mxu0 0.0
  %4623 = vmatprep.subr.mxu0 0.0
  %4624 = vmatpush1.msra.mxu0 0.0
  %4625 = vmatprep.subr.mxu0 0.0
  %4626 = vmatpush1.msra.mxu0 0.0
  %4627 = vmatprep.subr.mxu0 0.0
  %4628 = vmatpush1.msra.mxu0 0.0
  %4629 = vmatprep.subr.mxu0 0.0
  %4630 = vmatpush1.msra.mxu0 0.0
  %4631 = vmatprep.subr.mxu0 0.0
  %4632 = vmatpush1.msra.mxu0 0.0
  %4633 = vmatprep.subr.mxu0 0.0
  %4634 = vmatpush1.msra.mxu0 0.0
  %4635 = vmatprep.subr.mxu0 0.0
  %4636 = vmatpush1.msra.mxu0 0.0
  %4637 = vmatprep.subr.mxu0 0.0
  %4638 = vmatpush1.msra.mxu0 0.0
  %4639 = vmatprep.subr.mxu0 0.0
  %4640 = vmatpush1.msra.mxu0 0.0
  %4641 = vmatprep.subr.mxu0 0.0
  %4642 = vmatpush1.msra.mxu0 0.0
  %4643 = vmatprep.subr.mxu0 0.0
  %4644 = vmatpush1.msra.mxu0 0.0
  %4645 = vmatprep.subr.mxu0 0.0
  %4646 = vmatpush1.msra.mxu0 0.0
  %4647 = vmatprep.subr.mxu0 0.0
  %4648 = vmatpush1.msra.mxu0 0.0
  %4649 = vmatprep.subr.mxu0 0.0
  %4650 = vmatpush1.msra.mxu0 0.0
  %4651 = vmatprep.mubr.f32.mxu0 0.0
  %v4652 = vand.u32 %v4246, 4294901760
  %4653 = vmatmul.mubr.f32.gmra.mrb[0].mxu0 %v4652
  %v4654 = vpop.f32.mrb[0].mxu0
  %v4655 = vadd.f32 %v4572, %v4654
  %v4656 = vpop.f32.mrb[0].mxu0
  %4657 = vdwg.mxu0
  %4658 = vmatprep.subr.mxu0 0.0
  %v4659 = vand.u32 %v4234, 4294901760
  %4660 = vmatpush1.msra.mxu0 %v4659
  %4661 = vmatprep.subr.mxu0 0.0
  %v4662 = vand.u32 %v4235, 4294901760
  %4663 = vmatpush1.msra.mxu0 %v4662
  %4664 = vmatprep.subr.mxu0 0.0
  %v4665 = vand.u32 %v4236, 4294901760
  %4666 = vmatpush1.msra.mxu0 %v4665
  %4667 = vmatprep.subr.mxu0 0.0
  %v4668 = vand.u32 %v4237, 4294901760
  %4669 = vmatpush1.msra.mxu0 %v4668
  %4670 = vmatprep.subr.mxu0 0.0
  %4671 = vmatpush1.msra.mxu0 0.0
  %4672 = vmatprep.subr.mxu0 0.0
  %4673 = vmatpush1.msra.mxu0 0.0
  %4674 = vmatprep.subr.mxu0 0.0
  %4675 = vmatpush1.msra.mxu0 0.0
  %4676 = vmatprep.subr.mxu0 0.0
  %4677 = vmatpush1.msra.mxu0 0.0
  %4678 = vmatprep.subr.mxu0 0.0
  %4679 = vmatpush1.msra.mxu0 0.0
  %4680 = vmatprep.subr.mxu0 0.0
  %4681 = vmatpush1.msra.mxu0 0.0
  %4682 = vmatprep.subr.mxu0 0.0
  %4683 = vmatpush1.msra.mxu0 0.0
  %4684 = vmatprep.subr.mxu0 0.0
  %4685 = vmatpush1.msra.mxu0 0.0
  %4686 = vmatprep.subr.mxu0 0.0
  %4687 = vmatpush1.msra.mxu0 0.0
  %4688 = vmatprep.subr.mxu0 0.0
  %4689 = vmatpush1.msra.mxu0 0.0
  %4690 = vmatprep.subr.mxu0 0.0
  %4691 = vmatpush1.msra.mxu0 0.0
  %4692 = vmatprep.subr.mxu0 0.0
  %4693 = vmatpush1.msra.mxu0 0.0
  %4694 = vmatprep.subr.mxu0 0.0
  %4695 = vmatpush1.msra.mxu0 0.0
  %4696 = vmatprep.subr.mxu0 0.0
  %4697 = vmatpush1.msra.mxu0 0.0
  %4698 = vmatprep.subr.mxu0 0.0
  %4699 = vmatpush1.msra.mxu0 0.0
  %4700 = vmatprep.subr.mxu0 0.0
  %4701 = vmatpush1.msra.mxu0 0.0
  %4702 = vmatprep.subr.mxu0 0.0
  %4703 = vmatpush1.msra.mxu0 0.0
  %4704 = vmatprep.subr.mxu0 0.0
  %4705 = vmatpush1.msra.mxu0 0.0
  %4706 = vmatprep.subr.mxu0 0.0
  %4707 = vmatpush1.msra.mxu0 0.0
  %4708 = vmatprep.subr.mxu0 0.0
  %4709 = vmatpush1.msra.mxu0 0.0
  %4710 = vmatprep.subr.mxu0 0.0
  %4711 = vmatpush1.msra.mxu0 0.0
  %4712 = vmatprep.subr.mxu0 0.0
  %4713 = vmatpush1.msra.mxu0 0.0
  %4714 = vmatprep.subr.mxu0 0.0
  %4715 = vmatpush1.msra.mxu0 0.0
  %4716 = vmatprep.subr.mxu0 0.0
  %4717 = vmatpush1.msra.mxu0 0.0
  %4718 = vmatprep.subr.mxu0 0.0
  %4719 = vmatpush1.msra.mxu0 0.0
  %4720 = vmatprep.subr.mxu0 0.0
  %4721 = vmatpush1.msra.mxu0 0.0
  %4722 = vmatprep.subr.mxu0 0.0
  %4723 = vmatpush1.msra.mxu0 0.0
  %4724 = vmatprep.subr.mxu0 0.0
  %4725 = vmatpush1.msra.mxu0 0.0
  %4726 = vmatprep.mubr.f32.mxu0 0.0
  %v4727 = vand.u32 %v4246, 4294901760
  %4728 = vmatmul.mubr.f32.gmra.mrb[0].mxu0 %v4727
  %v4729 = vpop.f32.mrb[0].mxu0
  %v4730 = vadd.f32 %v4655, %v4729
  %v4731 = vpop.f32.mrb[0].mxu0
  %4732 = vdwg.mxu0
  %4734 = vrot.lane.b32.xlu0 %v3730, 125
  %v4735 = vpop.permute.xlu0 %4734
  %v4737 = vmul.f32 %v4730, %v4735
  %4739 = vrot.lane.b32.xlu0 %v3740, 122
  %v4740 = vpop.permute.xlu0 %4739
  %v4742 = vmul.f32 %v4730, %v4740
  %4744 = vrot.lane.b32.xlu0 %v3750, 119
  %v4745 = vpop.permute.xlu0 %4744
  %v4747 = vmul.f32 %v4730, %v4745
  %v4748 = vmul.f32 %v4730, %v3730
  %4749 = vrot.lane.b32.xlu0 %v3740, 125
  %v4750 = vpop.permute.xlu0 %4749
  %v4752 = vmul.f32 %v4730, %v4750
  %4753 = vrot.lane.b32.xlu0 %v3750, 122
  %v4754 = vpop.permute.xlu0 %4753
  %v4756 = vmul.f32 %v4730, %v4754
  %4757 = vrot.lane.b32.xlu0 %v3730, 3
  %v4758 = vpop.permute.xlu0 %4757
  %v4760 = vmul.f32 %v4730, %v4758
  %v4761 = vmul.f32 %v4730, %v3740
  %4762 = vrot.lane.b32.xlu0 %v3750, 125
  %v4763 = vpop.permute.xlu0 %4762
  %v4765 = vmul.f32 %v4730, %v4763
  %v4766 = vmul.f32 %v4737, %v4735
  %v4767 = vmul.f32 %v4737, %v4740
  %v4768 = vmul.f32 %v4737, %v4745
  %v4769 = vmul.f32 %v4742, %v4740
  %v4770 = vmul.f32 %v4742, %v4745
  %v4771 = vmul.f32 %v4747, %v4745
  %v4772 = vmul.f32 %v4748, %v3730
  %v4773 = vmul.f32 %v4748, %v4750
  %v4774 = vmul.f32 %v4748, %v4754
  %v4775 = vmul.f32 %v4752, %v4750
  %v4776 = vmul.f32 %v4752, %v4754
  %v4777 = vmul.f32 %v4756, %v4754
  %v4778 = vmul.f32 %v4760, %v4758
  %v4779 = vmul.f32 %v4760, %v3740
  %v4780 = vmul.f32 %v4760, %v4763
  %v4781 = vmul.f32 %v4761, %v3740
  %v4782 = vmul.f32 %v4761, %v4763
  %v4783 = vmul.f32 %v4765, %v4763
  %4785 = vrot.lane.b32.xlu0 %v4767, 3
  %v4786 = vpop.permute.xlu0 %4785
  %4789 = vrot.lane.b32.xlu0 %v4768, 6
  %v4790 = vpop.permute.xlu0 %4789
  %4793 = vrot.lane.b32.xlu0 %v4769, 9
  %v4794 = vpop.permute.xlu0 %4793
  %4797 = vrot.lane.b32.xlu0 %v4770, 12
  %v4798 = vpop.permute.xlu0 %4797
  %4801 = vrot.lane.b32.xlu0 %v4771, 15
  %v4802 = vpop.permute.xlu0 %4801
  %4805 = vrot.lane.b32.xlu0 %v4772, 15
  %v4806 = vpop.permute.xlu0 %4805
  %4809 = vrot.lane.b32.xlu0 %v4773, 18
  %v4810 = vpop.permute.xlu0 %4809
  %4813 = vrot.lane.b32.xlu0 %v4774, 21
  %v4814 = vpop.permute.xlu0 %4813
  %4817 = vrot.lane.b32.xlu0 %v4775, 24
  %v4818 = vpop.permute.xlu0 %4817
  %4821 = vrot.lane.b32.xlu0 %v4776, 27
  %v4822 = vpop.permute.xlu0 %4821
  %4825 = vrot.lane.b32.xlu0 %v4777, 30
  %v4826 = vpop.permute.xlu0 %4825
  %4829 = vrot.lane.b32.xlu0 %v4778, 30
  %v4830 = vpop.permute.xlu0 %4829
  %4833 = vrot.lane.b32.xlu0 %v4779, 33
  %v4834 = vpop.permute.xlu0 %4833
  %4837 = vrot.lane.b32.xlu0 %v4780, 36
  %v4838 = vpop.permute.xlu0 %4837
  %4841 = vrot.lane.b32.xlu0 %v4781, 39
  %v4842 = vpop.permute.xlu0 %4841
  %v4844 = vsel %vm75, %v4766, %v4786
  %v4845 = vsel %vm2052, %v4844, %v4790
  %v4846 = vsel %vm1502, %v4845, %v4794
  %vm4847 = vcmask 97280
  %v4848 = vsel %vm4847, %v4846, %v4798
  %vm4849 = vcmask 121856
  %v4850 = vsel %vm4849, %v4848, %v4802
  %v4851 = vsel %vm999, %v4850, %v4806
  %vm4852 = vcmask 171008
  %v4853 = vsel %vm4852, %v4851, %v4810
  %vm4854 = vcmask 195584
  %v4855 = vsel %vm4854, %v4853, %v4814
  %v4856 = vsel %vm1504, %v4855, %v4818
  %vm4857 = vcmask 244736
  %v4858 = vsel %vm4857, %v4856, %v4822
  %vm4859 = vcmask 269312
  %v4860 = vsel %vm4859, %v4858, %v4826
  %vm4861 = vcmask 293888
  %v4862 = vsel %vm4861, %v4860, %v4830
  %vm4863 = vcmask 318464
  %v4864 = vsel %vm4863, %v4862, %v4834
  %vm4865 = vcmask 343040
  %v4866 = vsel %vm4865, %v4864, %v4838
  %vm4867 = vcmask 367616
  %v4868 = vsel %vm4867, %v4866, %v4842
  %4870 = vrot.lane.b32.xlu0 %v4782, 122
  %v4871 = vpop.permute.xlu0 %4870
  %4874 = vrot.lane.b32.xlu0 %v4783, 125
  %v4875 = vpop.permute.xlu0 %4874
  %v4877 = vsel %vm75, %v4871, %v4875
  %4879 = vrot.lane.b32.xlu0 %v4877, 48
  %v4880 = vpop.permute.xlu0 %4879
  %vm4882 = vcmask 392192
  %v4883 = vsel %vm4882, %v4868, %v4880
  %v4884 = vld [vmem:[%s7] sm:$0xff]
  %v4885 = vld [vmem:[%s7 + $0x8] sm:$0xff]
  %v4886 = vld [vmem:[%s7 + $0x10] sm:$0xff]
  %v4887 = vld [vmem:[%s7 + $0x18] sm:$0xff]
  %v4888 = vld [vmem:[%s7 + $0x20] sm:$0xff]
  %v4889 = vld [vmem:[%s7 + $0x28] sm:$0xff]
  %v4890 = vld [vmem:[%s7 + $0x30] sm:$0x3f]
  %vm4891 = vcmask 441344
  %v4893 = vsel %vm4891, %v4883, 0
  %v4896 = vsel %vm2057, %v4890, 0
  %4898 = vmatprep.subr.mxu0 0.0
  %v4899 = vand.u32 %v4884, 4294901760
  %4900 = vmatpush1.msra.mxu0 %v4899
  %4901 = vmatprep.subr.mxu0 0.0
  %v4902 = vand.u32 %v4885, 4294901760
  %4903 = vmatpush1.msra.mxu0 %v4902
  %4904 = vmatprep.subr.mxu0 0.0
  %v4905 = vand.u32 %v4886, 4294901760
  %4906 = vmatpush1.msra.mxu0 %v4905
  %4907 = vmatprep.subr.mxu0 0.0
  %v4908 = vand.u32 %v4887, 4294901760
  %4909 = vmatpush1.msra.mxu0 %v4908
  %4910 = vmatprep.subr.mxu0 0.0
  %v4911 = vand.u32 %v4888, 4294901760
  %4912 = vmatpush1.msra.mxu0 %v4911
  %4913 = vmatprep.subr.mxu0 0.0
  %v4914 = vand.u32 %v4889, 4294901760
  %4915 = vmatpush1.msra.mxu0 %v4914
  %4916 = vmatprep.subr.mxu0 0.0
  %v4917 = vand.u32 %v4896, 4294901760
  %4918 = vmatpush1.msra.mxu0 %v4917
  %4919 = vmatprep.subr.mxu0 0.0
  %4920 = vmatpush1.msra.mxu0 0.0
  %4921 = vmatprep.subr.mxu0 0.0
  %4922 = vmatpush1.msra.mxu0 0.0
  %4923 = vmatprep.subr.mxu0 0.0
  %4924 = vmatpush1.msra.mxu0 0.0
  %4925 = vmatprep.subr.mxu0 0.0
  %4926 = vmatpush1.msra.mxu0 0.0
  %4927 = vmatprep.subr.mxu0 0.0
  %4928 = vmatpush1.msra.mxu0 0.0
  %4929 = vmatprep.subr.mxu0 0.0
  %4930 = vmatpush1.msra.mxu0 0.0
  %4931 = vmatprep.subr.mxu0 0.0
  %4932 = vmatpush1.msra.mxu0 0.0
  %4933 = vmatprep.subr.mxu0 0.0
  %4934 = vmatpush1.msra.mxu0 0.0
  %4935 = vmatprep.subr.mxu0 0.0
  %4936 = vmatpush1.msra.mxu0 0.0
  %4937 = vmatprep.subr.mxu0 0.0
  %4938 = vmatpush1.msra.mxu0 0.0
  %4939 = vmatprep.subr.mxu0 0.0
  %4940 = vmatpush1.msra.mxu0 0.0
  %4941 = vmatprep.subr.mxu0 0.0
  %4942 = vmatpush1.msra.mxu0 0.0
  %4943 = vmatprep.subr.mxu0 0.0
  %4944 = vmatpush1.msra.mxu0 0.0
  %4945 = vmatprep.subr.mxu0 0.0
  %4946 = vmatpush1.msra.mxu0 0.0
  %4947 = vmatprep.subr.mxu0 0.0
  %4948 = vmatpush1.msra.mxu0 0.0
  %4949 = vmatprep.subr.mxu0 0.0
  %4950 = vmatpush1.msra.mxu0 0.0
  %4951 = vmatprep.subr.mxu0 0.0
  %4952 = vmatpush1.msra.mxu0 0.0
  %4953 = vmatprep.subr.mxu0 0.0
  %4954 = vmatpush1.msra.mxu0 0.0
  %4955 = vmatprep.subr.mxu0 0.0
  %4956 = vmatpush1.msra.mxu0 0.0
  %4957 = vmatprep.subr.mxu0 0.0
  %4958 = vmatpush1.msra.mxu0 0.0
  %4959 = vmatprep.subr.mxu0 0.0
  %4960 = vmatpush1.msra.mxu0 0.0
  %4961 = vmatprep.subr.mxu0 0.0
  %4962 = vmatpush1.msra.mxu0 0.0
  %4963 = vmatprep.subr.mxu0 0.0
  %4964 = vmatpush1.msra.mxu0 0.0
  %4965 = vmatprep.subr.mxu0 0.0
  %4966 = vmatpush1.msra.mxu0 0.0
  %4967 = vmatprep.subr.mxu0 0.0
  %4968 = vmatpush1.msra.mxu0 0.0
  %4969 = vmatprep.mubr.f32.mxu0 0.0
  %v4970 = vand.u32 %v4893, 4294901760
  %v4971 = vsub.f32 %v4893, %v4970
  %v4972 = vand.u32 %v4971, 4294901760
  %v4973 = vsub.f32 %v4971, %v4972
  %v4974 = vand.u32 %v4973, 4294901760
  %4975 = vmatmul.mubr.f32.gmra.mrb[0].mxu0 %v4974
  %v4976 = vpop.f32.mrb[0].mxu0
  %v4977 = vadd.f32 0.0, %v4976
  %v4978 = vpop.f32.mrb[0].mxu0
  %4979 = vdwg.mxu0
  %4980 = vmatprep.subr.mxu0 0.0
  %v4981 = vand.u32 %v4884, 4294901760
  %v4982 = vsub.f32 %v4884, %v4981
  %v4983 = vand.u32 %v4982, 4294901760
  %v4984 = vsub.f32 %v4982, %v4983
  %v4985 = vand.u32 %v4984, 4294901760
  %4986 = vmatpush1.msra.mxu0 %v4985
  %4987 = vmatprep.subr.mxu0 0.0
  %v4988 = vand.u32 %v4885, 4294901760
  %v4989 = vsub.f32 %v4885, %v4988
  %v4990 = vand.u32 %v4989, 4294901760
  %v4991 = vsub.f32 %v4989, %v4990
  %v4992 = vand.u32 %v4991, 4294901760
  %4993 = vmatpush1.msra.mxu0 %v4992
  %4994 = vmatprep.subr.mxu0 0.0
  %v4995 = vand.u32 %v4886, 4294901760
  %v4996 = vsub.f32 %v4886, %v4995
  %v4997 = vand.u32 %v4996, 4294901760
  %v4998 = vsub.f32 %v4996, %v4997
  %v4999 = vand.u32 %v4998, 4294901760
  %5000 = vmatpush1.msra.mxu0 %v4999
  %5001 = vmatprep.subr.mxu0 0.0
  %v5002 = vand.u32 %v4887, 4294901760
  %v5003 = vsub.f32 %v4887, %v5002
  %v5004 = vand.u32 %v5003, 4294901760
  %v5005 = vsub.f32 %v5003, %v5004
  %v5006 = vand.u32 %v5005, 4294901760
  %5007 = vmatpush1.msra.mxu0 %v5006
  %5008 = vmatprep.subr.mxu0 0.0
  %v5009 = vand.u32 %v4888, 4294901760
  %v5010 = vsub.f32 %v4888, %v5009
  %v5011 = vand.u32 %v5010, 4294901760
  %v5012 = vsub.f32 %v5010, %v5011
  %v5013 = vand.u32 %v5012, 4294901760
  %5014 = vmatpush1.msra.mxu0 %v5013
  %5015 = vmatprep.subr.mxu0 0.0
  %v5016 = vand.u32 %v4889, 4294901760
  %v5017 = vsub.f32 %v4889, %v5016
  %v5018 = vand.u32 %v5017, 4294901760
  %v5019 = vsub.f32 %v5017, %v5018
  %v5020 = vand.u32 %v5019, 4294901760
  %5021 = vmatpush1.msra.mxu0 %v5020
  %5022 = vmatprep.subr.mxu0 0.0
  %v5023 = vand.u32 %v4896, 4294901760
  %v5024 = vsub.f32 %v4896, %v5023
  %v5025 = vand.u32 %v5024, 4294901760
  %v5026 = vsub.f32 %v5024, %v5025
  %v5027 = vand.u32 %v5026, 4294901760
  %5028 = vmatpush1.msra.mxu0 %v5027
  %5029 = vmatprep.subr.mxu0 0.0
  %5030 = vmatpush1.msra.mxu0 0.0
  %5031 = vmatprep.subr.mxu0 0.0
  %5032 = vmatpush1.msra.mxu0 0.0
  %5033 = vmatprep.subr.mxu0 0.0
  %5034 = vmatpush1.msra.mxu0 0.0
  %5035 = vmatprep.subr.mxu0 0.0
  %5036 = vmatpush1.msra.mxu0 0.0
  %5037 = vmatprep.subr.mxu0 0.0
  %5038 = vmatpush1.msra.mxu0 0.0
  %5039 = vmatprep.subr.mxu0 0.0
  %5040 = vmatpush1.msra.mxu0 0.0
  %5041 = vmatprep.subr.mxu0 0.0
  %5042 = vmatpush1.msra.mxu0 0.0
  %5043 = vmatprep.subr.mxu0 0.0
  %5044 = vmatpush1.msra.mxu0 0.0
  %5045 = vmatprep.subr.mxu0 0.0
  %5046 = vmatpush1.msra.mxu0 0.0
  %5047 = vmatprep.subr.mxu0 0.0
  %5048 = vmatpush1.msra.mxu0 0.0
  %5049 = vmatprep.subr.mxu0 0.0
  %5050 = vmatpush1.msra.mxu0 0.0
  %5051 = vmatprep.subr.mxu0 0.0
  %5052 = vmatpush1.msra.mxu0 0.0
  %5053 = vmatprep.subr.mxu0 0.0
  %5054 = vmatpush1.msra.mxu0 0.0
  %5055 = vmatprep.subr.mxu0 0.0
  %5056 = vmatpush1.msra.mxu0 0.0
  %5057 = vmatprep.subr.mxu0 0.0
  %5058 = vmatpush1.msra.mxu0 0.0
  %5059 = vmatprep.subr.mxu0 0.0
  %5060 = vmatpush1.msra.mxu0 0.0
  %5061 = vmatprep.subr.mxu0 0.0
  %5062 = vmatpush1.msra.mxu0 0.0
  %5063 = vmatprep.subr.mxu0 0.0
  %5064 = vmatpush1.msra.mxu0 0.0
  %5065 = vmatprep.subr.mxu0 0.0
  %5066 = vmatpush1.msra.mxu0 0.0
  %5067 = vmatprep.subr.mxu0 0.0
  %5068 = vmatpush1.msra.mxu0 0.0
  %5069 = vmatprep.subr.mxu0 0.0
  %5070 = vmatpush1.msra.mxu0 0.0
  %5071 = vmatprep.subr.mxu0 0.0
  %5072 = vmatpush1.msra.mxu0 0.0
  %5073 = vmatprep.subr.mxu0 0.0
  %5074 = vmatpush1.msra.mxu0 0.0
  %5075 = vmatprep.subr.mxu0 0.0
  %5076 = vmatpush1.msra.mxu0 0.0
  %5077 = vmatprep.subr.mxu0 0.0
  %5078 = vmatpush1.msra.mxu0 0.0
  %5079 = vmatprep.mubr.f32.mxu0 0.0
  %v5080 = vand.u32 %v4893, 4294901760
  %5081 = vmatmul.mubr.f32.gmra.mrb[0].mxu0 %v5080
  %v5082 = vpop.f32.mrb[0].mxu0
  %v5083 = vadd.f32 %v4977, %v5082
  %v5084 = vpop.f32.mrb[0].mxu0
  %5085 = vdwg.mxu0
  %5086 = vmatprep.subr.mxu0 0.0
  %v5087 = vand.u32 %v4884, 4294901760
  %v5088 = vsub.f32 %v4884, %v5087
  %5089 = vmatpush1.msra.mxu0 %v5088
  %5090 = vmatprep.subr.mxu0 0.0
  %v5091 = vand.u32 %v4885, 4294901760
  %v5092 = vsub.f32 %v4885, %v5091
  %5093 = vmatpush1.msra.mxu0 %v5092
  %5094 = vmatprep.subr.mxu0 0.0
  %v5095 = vand.u32 %v4886, 4294901760
  %v5096 = vsub.f32 %v4886, %v5095
  %5097 = vmatpush1.msra.mxu0 %v5096
  %5098 = vmatprep.subr.mxu0 0.0
  %v5099 = vand.u32 %v4887, 4294901760
  %v5100 = vsub.f32 %v4887, %v5099
  %5101 = vmatpush1.msra.mxu0 %v5100
  %5102 = vmatprep.subr.mxu0 0.0
  %v5103 = vand.u32 %v4888, 4294901760
  %v5104 = vsub.f32 %v4888, %v5103
  %5105 = vmatpush1.msra.mxu0 %v5104
  %5106 = vmatprep.subr.mxu0 0.0
  %v5107 = vand.u32 %v4889, 4294901760
  %v5108 = vsub.f32 %v4889, %v5107
  %5109 = vmatpush1.msra.mxu0 %v5108
  %5110 = vmatprep.subr.mxu0 0.0
  %v5111 = vand.u32 %v4896, 4294901760
  %v5112 = vsub.f32 %v4896, %v5111
  %5113 = vmatpush1.msra.mxu0 %v5112
  %5114 = vmatprep.subr.mxu0 0.0
  %5115 = vmatpush1.msra.mxu0 0.0
  %5116 = vmatprep.subr.mxu0 0.0
  %5117 = vmatpush1.msra.mxu0 0.0
  %5118 = vmatprep.subr.mxu0 0.0
  %5119 = vmatpush1.msra.mxu0 0.0
  %5120 = vmatprep.subr.mxu0 0.0
  %5121 = vmatpush1.msra.mxu0 0.0
  %5122 = vmatprep.subr.mxu0 0.0
  %5123 = vmatpush1.msra.mxu0 0.0
  %5124 = vmatprep.subr.mxu0 0.0
  %5125 = vmatpush1.msra.mxu0 0.0
  %5126 = vmatprep.subr.mxu0 0.0
  %5127 = vmatpush1.msra.mxu0 0.0
  %5128 = vmatprep.subr.mxu0 0.0
  %5129 = vmatpush1.msra.mxu0 0.0
  %5130 = vmatprep.subr.mxu0 0.0
  %5131 = vmatpush1.msra.mxu0 0.0
  %5132 = vmatprep.subr.mxu0 0.0
  %5133 = vmatpush1.msra.mxu0 0.0
  %5134 = vmatprep.subr.mxu0 0.0
  %5135 = vmatpush1.msra.mxu0 0.0
  %5136 = vmatprep.subr.mxu0 0.0
  %5137 = vmatpush1.msra.mxu0 0.0
  %5138 = vmatprep.subr.mxu0 0.0
  %5139 = vmatpush1.msra.mxu0 0.0
  %5140 = vmatprep.subr.mxu0 0.0
  %5141 = vmatpush1.msra.mxu0 0.0
  %5142 = vmatprep.subr.mxu0 0.0
  %5143 = vmatpush1.msra.mxu0 0.0
  %5144 = vmatprep.subr.mxu0 0.0
  %5145 = vmatpush1.msra.mxu0 0.0
  %5146 = vmatprep.subr.mxu0 0.0
  %5147 = vmatpush1.msra.mxu0 0.0
  %5148 = vmatprep.subr.mxu0 0.0
  %5149 = vmatpush1.msra.mxu0 0.0
  %5150 = vmatprep.subr.mxu0 0.0
  %5151 = vmatpush1.msra.mxu0 0.0
  %5152 = vmatprep.subr.mxu0 0.0
  %5153 = vmatpush1.msra.mxu0 0.0
  %5154 = vmatprep.subr.mxu0 0.0
  %5155 = vmatpush1.msra.mxu0 0.0
  %5156 = vmatprep.subr.mxu0 0.0
  %5157 = vmatpush1.msra.mxu0 0.0
  %5158 = vmatprep.subr.mxu0 0.0
  %5159 = vmatpush1.msra.mxu0 0.0
  %5160 = vmatprep.subr.mxu0 0.0
  %5161 = vmatpush1.msra.mxu0 0.0
  %5162 = vmatprep.subr.mxu0 0.0
  %5163 = vmatpush1.msra.mxu0 0.0
  %5164 = vmatprep.mubr.f32.mxu0 0.0
  %v5165 = vand.u32 %v4893, 4294901760
  %v5166 = vsub.f32 %v4893, %v5165
  %5167 = vmatmul.mubr.f32.gmra.mrb[0].mxu0 %v5166
  %v5168 = vpop.f32.mrb[0].mxu0
  %v5169 = vadd.f32 %v5083, %v5168
  %v5170 = vpop.f32.mrb[0].mxu0
  %5171 = vdwg.mxu0
  %5172 = vmatprep.subr.mxu0 0.0
  %v5173 = vand.u32 %v4884, 4294901760
  %5174 = vmatpush1.msra.mxu0 %v5173
  %5175 = vmatprep.subr.mxu0 0.0
  %v5176 = vand.u32 %v4885, 4294901760
  %5177 = vmatpush1.msra.mxu0 %v5176
  %5178 = vmatprep.subr.mxu0 0.0
  %v5179 = vand.u32 %v4886, 4294901760
  %5180 = vmatpush1.msra.mxu0 %v5179
  %5181 = vmatprep.subr.mxu0 0.0
  %v5182 = vand.u32 %v4887, 4294901760
  %5183 = vmatpush1.msra.mxu0 %v5182
  %5184 = vmatprep.subr.mxu0 0.0
  %v5185 = vand.u32 %v4888, 4294901760
  %5186 = vmatpush1.msra.mxu0 %v5185
  %5187 = vmatprep.subr.mxu0 0.0
  %v5188 = vand.u32 %v4889, 4294901760
  %5189 = vmatpush1.msra.mxu0 %v5188
  %5190 = vmatprep.subr.mxu0 0.0
  %v5191 = vand.u32 %v4896, 4294901760
  %5192 = vmatpush1.msra.mxu0 %v5191
  %5193 = vmatprep.subr.mxu0 0.0
  %5194 = vmatpush1.msra.mxu0 0.0
  %5195 = vmatprep.subr.mxu0 0.0
  %5196 = vmatpush1.msra.mxu0 0.0
  %5197 = vmatprep.subr.mxu0 0.0
  %5198 = vmatpush1.msra.mxu0 0.0
  %5199 = vmatprep.subr.mxu0 0.0
  %5200 = vmatpush1.msra.mxu0 0.0
  %5201 = vmatprep.subr.mxu0 0.0
  %5202 = vmatpush1.msra.mxu0 0.0
  %5203 = vmatprep.subr.mxu0 0.0
  %5204 = vmatpush1.msra.mxu0 0.0
  %5205 = vmatprep.subr.mxu0 0.0
  %5206 = vmatpush1.msra.mxu0 0.0
  %5207 = vmatprep.subr.mxu0 0.0
  %5208 = vmatpush1.msra.mxu0 0.0
  %5209 = vmatprep.subr.mxu0 0.0
  %5210 = vmatpush1.msra.mxu0 0.0
  %5211 = vmatprep.subr.mxu0 0.0
  %5212 = vmatpush1.msra.mxu0 0.0
  %5213 = vmatprep.subr.mxu0 0.0
  %5214 = vmatpush1.msra.mxu0 0.0
  %5215 = vmatprep.subr.mxu0 0.0
  %5216 = vmatpush1.msra.mxu0 0.0
  %5217 = vmatprep.subr.mxu0 0.0
  %5218 = vmatpush1.msra.mxu0 0.0
  %5219 = vmatprep.subr.mxu0 0.0
  %5220 = vmatpush1.msra.mxu0 0.0
  %5221 = vmatprep.subr.mxu0 0.0
  %5222 = vmatpush1.msra.mxu0 0.0
  %5223 = vmatprep.subr.mxu0 0.0
  %5224 = vmatpush1.msra.mxu0 0.0
  %5225 = vmatprep.subr.mxu0 0.0
  %5226 = vmatpush1.msra.mxu0 0.0
  %5227 = vmatprep.subr.mxu0 0.0
  %5228 = vmatpush1.msra.mxu0 0.0
  %5229 = vmatprep.subr.mxu0 0.0
  %5230 = vmatpush1.msra.mxu0 0.0
  %5231 = vmatprep.subr.mxu0 0.0
  %5232 = vmatpush1.msra.mxu0 0.0
  %5233 = vmatprep.subr.mxu0 0.0
  %5234 = vmatpush1.msra.mxu0 0.0
  %5235 = vmatprep.subr.mxu0 0.0
  %5236 = vmatpush1.msra.mxu0 0.0
  %5237 = vmatprep.subr.mxu0 0.0
  %5238 = vmatpush1.msra.mxu0 0.0
  %5239 = vmatprep.subr.mxu0 0.0
  %5240 = vmatpush1.msra.mxu0 0.0
  %5241 = vmatprep.subr.mxu0 0.0
  %5242 = vmatpush1.msra.mxu0 0.0
  %5243 = vmatprep.mubr.f32.mxu0 0.0
  %v5244 = vand.u32 %v4893, 4294901760
  %v5245 = vsub.f32 %v4893, %v5244
  %v5246 = vand.u32 %v5245, 4294901760
  %5247 = vmatmul.mubr.f32.gmra.mrb[0].mxu0 %v5246
  %v5248 = vpop.f32.mrb[0].mxu0
  %v5249 = vadd.f32 %v5169, %v5248
  %v5250 = vpop.f32.mrb[0].mxu0
  %5251 = vdwg.mxu0
  %5252 = vmatprep.subr.mxu0 0.0
  %v5253 = vand.u32 %v4884, 4294901760
  %v5254 = vsub.f32 %v4884, %v5253
  %v5255 = vand.u32 %v5254, 4294901760
  %5256 = vmatpush1.msra.mxu0 %v5255
  %5257 = vmatprep.subr.mxu0 0.0
  %v5258 = vand.u32 %v4885, 4294901760
  %v5259 = vsub.f32 %v4885, %v5258
  %v5260 = vand.u32 %v5259, 4294901760
  %5261 = vmatpush1.msra.mxu0 %v5260
  %5262 = vmatprep.subr.mxu0 0.0
  %v5263 = vand.u32 %v4886, 4294901760
  %v5264 = vsub.f32 %v4886, %v5263
  %v5265 = vand.u32 %v5264, 4294901760
  %5266 = vmatpush1.msra.mxu0 %v5265
  %5267 = vmatprep.subr.mxu0 0.0
  %v5268 = vand.u32 %v4887, 4294901760
  %v5269 = vsub.f32 %v4887, %v5268
  %v5270 = vand.u32 %v5269, 4294901760
  %5271 = vmatpush1.msra.mxu0 %v5270
  %5272 = vmatprep.subr.mxu0 0.0
  %v5273 = vand.u32 %v4888, 4294901760
  %v5274 = vsub.f32 %v4888, %v5273
  %v5275 = vand.u32 %v5274, 4294901760
  %5276 = vmatpush1.msra.mxu0 %v5275
  %5277 = vmatprep.subr.mxu0 0.0
  %v5278 = vand.u32 %v4889, 4294901760
  %v5279 = vsub.f32 %v4889, %v5278
  %v5280 = vand.u32 %v5279, 4294901760
  %5281 = vmatpush1.msra.mxu0 %v5280
  %5282 = vmatprep.subr.mxu0 0.0
  %v5283 = vand.u32 %v4896, 4294901760
  %v5284 = vsub.f32 %v4896, %v5283
  %v5285 = vand.u32 %v5284, 4294901760
  %5286 = vmatpush1.msra.mxu0 %v5285
  %5287 = vmatprep.subr.mxu0 0.0
  %5288 = vmatpush1.msra.mxu0 0.0
  %5289 = vmatprep.subr.mxu0 0.0
  %5290 = vmatpush1.msra.mxu0 0.0
  %5291 = vmatprep.subr.mxu0 0.0
  %5292 = vmatpush1.msra.mxu0 0.0
  %5293 = vmatprep.subr.mxu0 0.0
  %5294 = vmatpush1.msra.mxu0 0.0
  %5295 = vmatprep.subr.mxu0 0.0
  %5296 = vmatpush1.msra.mxu0 0.0
  %5297 = vmatprep.subr.mxu0 0.0
  %5298 = vmatpush1.msra.mxu0 0.0
  %5299 = vmatprep.subr.mxu0 0.0
  %5300 = vmatpush1.msra.mxu0 0.0
  %5301 = vmatprep.subr.mxu0 0.0
  %5302 = vmatpush1.msra.mxu0 0.0
  %5303 = vmatprep.subr.mxu0 0.0
  %5304 = vmatpush1.msra.mxu0 0.0
  %5305 = vmatprep.subr.mxu0 0.0
  %5306 = vmatpush1.msra.mxu0 0.0
  %5307 = vmatprep.subr.mxu0 0.0
  %5308 = vmatpush1.msra.mxu0 0.0
  %5309 = vmatprep.subr.mxu0 0.0
  %5310 = vmatpush1.msra.mxu0 0.0
  %5311 = vmatprep.subr.mxu0 0.0
  %5312 = vmatpush1.msra.mxu0 0.0
  %5313 = vmatprep.subr.mxu0 0.0
  %5314 = vmatpush1.msra.mxu0 0.0
  %5315 = vmatprep.subr.mxu0 0.0
  %5316 = vmatpush1.msra.mxu0 0.0
  %5317 = vmatprep.subr.mxu0 0.0
  %5318 = vmatpush1.msra.mxu0 0.0
  %5319 = vmatprep.subr.mxu0 0.0
  %5320 = vmatpush1.msra.mxu0 0.0
  %5321 = vmatprep.subr.mxu0 0.0
  %5322 = vmatpush1.msra.mxu0 0.0
  %5323 = vmatprep.subr.mxu0 0.0
  %5324 = vmatpush1.msra.mxu0 0.0
  %5325 = vmatprep.subr.mxu0 0.0
  %5326 = vmatpush1.msra.mxu0 0.0
  %5327 = vmatprep.subr.mxu0 0.0
  %5328 = vmatpush1.msra.mxu0 0.0
  %5329 = vmatprep.subr.mxu0 0.0
  %5330 = vmatpush1.msra.mxu0 0.0
  %5331 = vmatprep.subr.mxu0 0.0
  %5332 = vmatpush1.msra.mxu0 0.0
  %5333 = vmatprep.subr.mxu0 0.0
  %5334 = vmatpush1.msra.mxu0 0.0
  %5335 = vmatprep.subr.mxu0 0.0
  %5336 = vmatpush1.msra.mxu0 0.0
  %5337 = vmatprep.mubr.f32.mxu0 0.0
  %v5338 = vand.u32 %v4893, 4294901760
  %5339 = vmatmul.mubr.f32.gmra.mrb[0].mxu0 %v5338
  %v5340 = vpop.f32.mrb[0].mxu0
  %v5341 = vadd.f32 %v5249, %v5340
  %v5342 = vpop.f32.mrb[0].mxu0
  %5343 = vdwg.mxu0
  %5344 = vmatprep.subr.mxu0 0.0
  %v5345 = vand.u32 %v4884, 4294901760
  %5346 = vmatpush1.msra.mxu0 %v5345
  %5347 = vmatprep.subr.mxu0 0.0
  %v5348 = vand.u32 %v4885, 4294901760
  %5349 = vmatpush1.msra.mxu0 %v5348
  %5350 = vmatprep.subr.mxu0 0.0
  %v5351 = vand.u32 %v4886, 4294901760
  %5352 = vmatpush1.msra.mxu0 %v5351
  %5353 = vmatprep.subr.mxu0 0.0
  %v5354 = vand.u32 %v4887, 4294901760
  %5355 = vmatpush1.msra.mxu0 %v5354
  %5356 = vmatprep.subr.mxu0 0.0
  %v5357 = vand.u32 %v4888, 4294901760
  %5358 = vmatpush1.msra.mxu0 %v5357
  %5359 = vmatprep.subr.mxu0 0.0
  %v5360 = vand.u32 %v4889, 4294901760
  %5361 = vmatpush1.msra.mxu0 %v5360
  %5362 = vmatprep.subr.mxu0 0.0
  %v5363 = vand.u32 %v4896, 4294901760
  %5364 = vmatpush1.msra.mxu0 %v5363
  %5365 = vmatprep.subr.mxu0 0.0
  %5366 = vmatpush1.msra.mxu0 0.0
  %5367 = vmatprep.subr.mxu0 0.0
  %5368 = vmatpush1.msra.mxu0 0.0
  %5369 = vmatprep.subr.mxu0 0.0
  %5370 = vmatpush1.msra.mxu0 0.0
  %5371 = vmatprep.subr.mxu0 0.0
  %5372 = vmatpush1.msra.mxu0 0.0
  %5373 = vmatprep.subr.mxu0 0.0
  %5374 = vmatpush1.msra.mxu0 0.0
  %5375 = vmatprep.subr.mxu0 0.0
  %5376 = vmatpush1.msra.mxu0 0.0
  %5377 = vmatprep.subr.mxu0 0.0
  %5378 = vmatpush1.msra.mxu0 0.0
  %5379 = vmatprep.subr.mxu0 0.0
  %5380 = vmatpush1.msra.mxu0 0.0
  %5381 = vmatprep.subr.mxu0 0.0
  %5382 = vmatpush1.msra.mxu0 0.0
  %5383 = vmatprep.subr.mxu0 0.0
  %5384 = vmatpush1.msra.mxu0 0.0
  %5385 = vmatprep.subr.mxu0 0.0
  %5386 = vmatpush1.msra.mxu0 0.0
  %5387 = vmatprep.subr.mxu0 0.0
  %5388 = vmatpush1.msra.mxu0 0.0
  %5389 = vmatprep.subr.mxu0 0.0
  %5390 = vmatpush1.msra.mxu0 0.0
  %5391 = vmatprep.subr.mxu0 0.0
  %5392 = vmatpush1.msra.mxu0 0.0
  %5393 = vmatprep.subr.mxu0 0.0
  %5394 = vmatpush1.msra.mxu0 0.0
  %5395 = vmatprep.subr.mxu0 0.0
  %5396 = vmatpush1.msra.mxu0 0.0
  %5397 = vmatprep.subr.mxu0 0.0
  %5398 = vmatpush1.msra.mxu0 0.0
  %5399 = vmatprep.subr.mxu0 0.0
  %5400 = vmatpush1.msra.mxu0 0.0
  %5401 = vmatprep.subr.mxu0 0.0
  %5402 = vmatpush1.msra.mxu0 0.0
  %5403 = vmatprep.subr.mxu0 0.0
  %5404 = vmatpush1.msra.mxu0 0.0
  %5405 = vmatprep.subr.mxu0 0.0
  %5406 = vmatpush1.msra.mxu0 0.0
  %5407 = vmatprep.subr.mxu0 0.0
  %5408 = vmatpush1.msra.mxu0 0.0
  %5409 = vmatprep.subr.mxu0 0.0
  %5410 = vmatpush1.msra.mxu0 0.0
  %5411 = vmatprep.subr.mxu0 0.0
  %5412 = vmatpush1.msra.mxu0 0.0
  %5413 = vmatprep.subr.mxu0 0.0
  %5414 = vmatpush1.msra.mxu0 0.0
  %5415 = vmatprep.mubr.f32.mxu0 0.0
  %v5416 = vand.u32 %v4893, 4294901760
  %5417 = vmatmul.mubr.f32.gmra.mrb[0].mxu0 %v5416
  %v5418 = vpop.f32.mrb[0].mxu0
  %v5419 = vadd.f32 %v5341, %v5418
  %v5420 = vpop.f32.mrb[0].mxu0
  %5421 = vdwg.mxu0
  %5423 = vrot.lane.b32.xlu0 %v5419, 12
  %v5424 = vpop.permute.xlu0 %5423
  %v5426 = vsel %vm75, %v3719, %v3730
  %v5427 = vsel %vm2052, %v5426, %v3740
  %v5428 = vsel %vm1502, %v5427, %v3750
  %v5429 = vsel %vm4847, %v5428, %v5424
  %v5430 = vsel %vm4863, %v5429, 0.0
  %5431 = vst [vmem:[%s20] sm:$0xff] %v5430
  // Predicated region
  $region82: #{painn_interaction.1} parent=0 // pred_check
    _
  $region83: #{painn_interaction.1} parent=0 // pred_check_branch
    %5433 = sbr.rel (0) target = $region85
  $region84: #{painn_interaction.1} parent=0 // pred_region
    _
  $region85: #{painn_interaction.1} parent=0 // pred_fallthru
    _
  // Predicated region
  $region86: #{painn_interaction.1} parent=0 // pred_check
    _
  $region87: #{painn_interaction.1} parent=0 // pred_check_branch
    %5435 = sbr.rel (0) target = $region89
  $region88: #{painn_interaction.1} parent=0 // pred_region
    _
  $region89: #{painn_interaction.1} parent=0 // pred_fallthru
    _

</llo_original>
